<compile_context>
chip_gen: v5e
topology: v5e:2x2
jax: 0.10.0
libtpu: 0.0.40
codegen_flags: <defaults>
</compile_context>

<pallas_src>
import functools

import jax
import jax.numpy as jnp
from jax import lax
from jax.experimental import pallas as pl
from jax.experimental.pallas import tpu as pltpu


def _round_up(n: int, m: int) -> int:
    return ((n + m - 1) // m) * m


def _sublane(dtype) -> int:
    # rows per sublane tile: 8 for f32, 16 for bf16, 32 for int8/fp8
    return max(8, 32 // jnp.dtype(dtype).itemsize)


# --------------------------------------------------------------------------- #
# Kernel: whole ResidualBlock chain, activation stays in VMEM/vregs
# --------------------------------------------------------------------------- #
def _tide_chain_kernel(*refs, block_dims, n_blocks, use_layer_norm, eps):
    x_ref = refs[0]
    o_ref = refs[-1]
    param_refs = refs[1:-1]          # 6 arrays per block

    h = x_ref[...]
    for blk in range(n_blocks):
        w_cat, b_cat, w2, b2, gamma, beta = param_refs[6 * blk: 6 * blk + 6]
        hidden_pad, out_pad, out_true = block_dims[blk]

        # Fused first matmul: h @ [w1 | w_skip]  -> (TB, hidden_pad + out_pad)
        z = jnp.dot(h.astype(w_cat.dtype), w_cat[...],
                    preferred_element_type=jnp.float32) + b_cat[...]
        hid = jnp.maximum(z[:, :hidden_pad], 0.0)       # dense-path hidden (ReLU)
        skip = z[:, hidden_pad:]                         # skip-path Linear output

        dense = jnp.dot(hid.astype(w2.dtype), w2[...],
                        preferred_element_type=jnp.float32) + b2[...]
        # TODO(synk): training-mode dropout not implemented (eval-mode = identity).
        y = dense + skip                                 # padded lanes are exactly 0

        if use_layer_norm:
            inv_d = 1.0 / float(out_true)
            # Padded lanes of y are exactly 0 (zero-padded weights/biases), so the
            # sum over the padded width equals the sum over the true width.
            mean = jnp.sum(y, axis=-1, keepdims=True) * inv_d
            cent = y - mean
            ss = jnp.sum(cent * cent, axis=-1, keepdims=True)
            n_pad = out_pad - out_true
            if n_pad:
                # In padded lanes cent == -mean exactly; remove their variance
                # contribution analytically instead of an iota/select lane mask.
                ss = ss - float(n_pad) * (mean * mean)
            var = jnp.maximum(ss * inv_d, 0.0)
            y = cent * lax.rsqrt(var + eps)              # rsqrt -> EUP slot
            # padded gamma/beta are 0 -> padded output lanes stay exactly 0.
            y = y * gamma[...] + beta[...]
        h = y

    o_ref[...] = h.astype(o_ref.dtype)


# --------------------------------------------------------------------------- #
# Parameter prep (call ONCE, reuse the result across forward passes)
# --------------------------------------------------------------------------- #
def prep_residual_block_params(params, *, lane=128, compute_dtype=None):
    """Zero-pad to lane-dense widths and fuse the two x-matmuls.

    params: (w1, b1, w2, b2, ws, bs, gamma, beta), weights stored (in, out).
    Returns (fused, dims): fused = (w_cat, b_cat, w2p, b2p, gammap, betap),
    dims = (in_pad, hidden_pad, out_pad, out_true).
    """
    w1, b1, w2, b2, ws, bs, gamma, beta = params
    input_dim, hidden = w1.shape
    output_dim = w2.shape[1]
    in_pad = _round_up(input_dim, lane)
    hidden_pad = _round_up(hidden, lane)
    out_pad = _round_up(output_dim, lane)

    def pad2(a, r, c):
        return jnp.pad(a, ((0, r - a.shape[0]), (0, c - a.shape[1])))

    w_cat = jnp.concatenate([pad2(w1, in_pad, hidden_pad),
                             pad2(ws, in_pad, out_pad)], axis=1)
    b_cat = jnp.concatenate([pad2(b1, 1, hidden_pad),
                             pad2(bs, 1, out_pad)], axis=1)
    w2p = pad2(w2, hidden_pad, out_pad)
    if compute_dtype is not None:
        # Cast only the MXU operands; biases/gamma/beta stay in the original
        # dtype and are added to the f32 accumulator.
        w_cat = w_cat.astype(compute_dtype)
        w2p = w2p.astype(compute_dtype)
    fused = (w_cat, b_cat, w2p, pad2(b2, 1, out_pad),
             pad2(gamma, 1, out_pad), pad2(beta, 1, out_pad))
    return fused, (in_pad, hidden_pad, out_pad, output_dim)


def prep_tide_params(block_params_list, *, lane=128, compute_dtype=None):
    """Prep all blocks once (hoisted out of the per-forward path)."""
    prepped = [prep_residual_block_params(p, lane=lane, compute_dtype=compute_dtype)
               for p in block_params_list]
    for (_, da), (_, db) in zip(prepped[:-1], prepped[1:]):
        assert da[2] == db[0], "block chain: out_pad must equal next in_pad"
    return prepped


# --------------------------------------------------------------------------- #
# Forward (single fused pallas_call over the whole block chain)
# --------------------------------------------------------------------------- #
def tide_forward(x, prepped, *, use_layer_norm=True, eps=1e-5,
                 max_block_batch=1024):
    """x: (batch, in_features); prepped: output of prep_tide_params (reuse it!).

    Returns (batch, out_features) where out_features is the last block's output
    width (== in_features for the TiDE spec).
    """
    batch, in_features = x.shape
    n_blocks = len(prepped)
    in_pad0 = prepped[0][1][0]
    out_pad_last = prepped[-1][1][2]
    out_true_last = prepped[-1][1][3]
    assert in_features <= in_pad0

    sub = _sublane(x.dtype)
    batch_pad = _round_up(batch, sub)
    x_pad = jnp.pad(x, ((0, batch_pad - batch), (0, in_pad0 - in_features)))

    # Batch tile: as large as allowed, but prefer >= 2 tiles when the batch
    # allows it so v7x's two TensorCores both get work.
    tb = min(max_block_batch, batch_pad)
    if batch_pad >= 2 * sub:
        tb = min(tb, _round_up(pl.cdiv(batch_pad, 2), sub))
    tb = _round_up(tb, sub)
    grid = (pl.cdiv(batch_pad, tb),)   # last tile may be partial (writes masked)

    block_dims = tuple((d[1], d[2], d[3]) for _, d in prepped)
    param_arrays = []
    for fused, _ in prepped:
        param_arrays.extend(fused)

    kernel = functools.partial(_tide_chain_kernel, block_dims=block_dims,
                               n_blocks=n_blocks, use_layer_norm=use_layer_norm,
                               eps=float(eps))

    itemsize = jnp.dtype(x.dtype).itemsize
    w_bytes = sum(int(a.size) * jnp.dtype(a.dtype).itemsize for a in param_arrays)
    flops = 0
    for _, (ip, hp, op, _ot) in prepped:
        flops += 2 * batch_pad * ip * (hp + op) + 2 * batch_pad * hp * op
    bytes_accessed = batch_pad * (in_pad0 + out_pad_last) * itemsize + w_bytes

    # VMEM budget: double-buffered x/out tiles + resident weights (assume 2x in
    # case single-buffering is unavailable) + in-flight f32 intermediates.
    max_width = max(ip + hp + 2 * op for _, (ip, hp, op, _o) in prepped)
    vmem_need = (2 * tb * (in_pad0 + out_pad_last) * itemsize
                 + 2 * w_bytes
                 + tb * max_width * 4)
    try:
        phys_vmem = int(getattr(pltpu.get_tpu_info(), "vmem_capacity_bytes"))
    except Exception:  # conservative default (v7x per-TC VMEM)
        phys_vmem = 64 * 1024 * 1024
    vmem_cap = max(phys_vmem * 3 // 4, 32 * 1024 * 1024)   # leave headroom
    vmem_limit = int(min(max(vmem_need + vmem_need // 4, 32 * 1024 * 1024),
                         vmem_cap))

    def build(single_buffer_weights):
        def const_spec(a):
            if single_buffer_weights:
                return pl.BlockSpec(a.shape, lambda i: (0, 0),
                                    pipeline_mode=pl.Buffered(1))
            return pl.BlockSpec(a.shape, lambda i: (0, 0))

        in_specs = [pl.BlockSpec((tb, in_pad0), lambda i: (i, 0))]   # x: batch-tiled
        in_specs += [const_spec(a) for a in param_arrays]            # resident weights
        return pl.pallas_call(
            kernel,
            out_shape=jax.ShapeDtypeStruct((batch_pad, out_pad_last), x.dtype),
            grid_spec=pltpu.PrefetchScalarGridSpec(
                num_scalar_prefetch=0,
                grid=grid,
                in_specs=in_specs,
                out_specs=pl.BlockSpec((tb, out_pad_last), lambda i: (i, 0)),
            ),
            compiler_params=pltpu.CompilerParams(
                dimension_semantics=("parallel",),       # shard batch tiles across TCs
                vmem_limit_bytes=vmem_limit),
            cost_estimate=pl.CostEstimate(
                flops=int(flops),
                transcendentals=int(n_blocks * batch_pad if use_layer_norm else 0),
                bytes_accessed=int(bytes_accessed)),
        )

    try:
        out = build(True)(x_pad, *param_arrays)
    except Exception:
        # pipeline_mode=pl.Buffered(1) not supported on this jax -> default buffering.
        out = build(False)(x_pad, *param_arrays)

    return out[:batch, :out_true_last]


# --------------------------------------------------------------------------- #
# Parameter init (matches nn.Linear: uniform +/- 1/sqrt(fan_in); weights (in, out))
# --------------------------------------------------------------------------- #
def init_residual_block_params(key, input_dim, hidden, output_dim, dtype=jnp.float32):
    ks = jax.random.split(key, 6)

    def lin(kw, kb, fan_in, fan_out):
        bound = 1.0 / float(fan_in) ** 0.5
        w = jax.random.uniform(kw, (fan_in, fan_out), dtype, -bound, bound)
        b = jax.random.uniform(kb, (1, fan_out), dtype, -bound, bound)
        return w, b

    w1, b1 = lin(ks[0], ks[1], input_dim, hidden)
    w2, b2 = lin(ks[2], ks[3], hidden, output_dim)
    ws, bs = lin(ks[4], ks[5], input_dim, output_dim)
    gamma = jnp.ones((1, output_dim), dtype)
    beta = jnp.zeros((1, output_dim), dtype)
    return (w1, b1, w2, b2, ws, bs, gamma, beta)


def init_tide_params(key, in_features, latent_features, hidden_size=20,
                     n_encoders=1, n_decoders=1, dtype=jnp.float32):
    keys = jax.random.split(key, n_encoders + n_decoders)
    blocks = []
    for i in range(n_encoders):
        blocks.append(init_residual_block_params(
            keys[i],
            in_features if i == 0 else hidden_size,
            hidden_size,
            latent_features if i == n_encoders - 1 else hidden_size,
            dtype))
    for i in range(n_decoders):
        blocks.append(init_residual_block_params(
            keys[n_encoders + i],
            latent_features if i == 0 else hidden_size,
            hidden_size,
            in_features if i == n_decoders - 1 else hidden_size,
            dtype))
    return blocks


# --------------------------------------------------------------------------- #
# Pure-JAX reference
# --------------------------------------------------------------------------- #
def residual_block_ref(x, params, *, use_layer_norm=True, eps=1e-5):
    w1, b1, w2, b2, ws, bs, gamma, beta = params
    h = jnp.maximum(x @ w1 + b1, 0.0)
    y = (h @ w2 + b2) + (x @ ws + bs)
    if use_layer_norm:
        mean = jnp.mean(y, axis=-1, keepdims=True)
        var = jnp.mean((y - mean) ** 2, axis=-1, keepdims=True)
        y = (y - mean) / jnp.sqrt(var + eps) * gamma + beta
    return y


def tide_forward_ref(x, block_params_list, *, use_layer_norm=True, eps=1e-5):
    h = x
    for p in block_params_list:
        h = residual_block_ref(h, p, use_layer_norm=use_layer_norm, eps=eps)
    return h


if __name__ == "__main__":
    key = jax.random.PRNGKey(0)
    k_x, k_p = jax.random.split(key)

    batch, in_features, latent_features, hidden_size = 8, 32, 16, 20
    n_encoders, n_decoders = 2, 2

    x = jax.random.normal(k_x, (batch, in_features), jnp.float32)
    params = init_tide_params(k_p, in_features, latent_features, hidden_size,
                              n_encoders, n_decoders)

    # Prep (pad/fuse) once, reuse across forward passes.
    prepped = prep_tide_params(params)

    out = tide_forward(x, prepped, use_layer_norm=True)
    out = jax.block_until_ready(out)

    ref = tide_forward_ref(x, params, use_layer_norm=True)
    assert out.shape == (batch, in_features)
    assert jnp.allclose(out, ref, atol=1e-5, rtol=1e-5), "mismatch vs reference"

    print("KERNEL_OK")
</pallas_src>

<mosaic_0001>
module attributes {stable_mosaic.version = 11 : i64} {
  func.func @_tide_chain_kernel(%arg0: i32, %arg1: memref<8x128xf32, #tpu.memory_space<vmem>>, %arg2: memref<128x256xf32, #tpu.memory_space<vmem>>, %arg3: memref<1x256xf32, #tpu.memory_space<vmem>>, %arg4: memref<128x128xf32, #tpu.memory_space<vmem>>, %arg5: memref<1x128xf32, #tpu.memory_space<vmem>>, %arg6: memref<1x128xf32, #tpu.memory_space<vmem>>, %arg7: memref<1x128xf32, #tpu.memory_space<vmem>>, %arg8: memref<128x256xf32, #tpu.memory_space<vmem>>, %arg9: memref<1x256xf32, #tpu.memory_space<vmem>>, %arg10: memref<128x128xf32, #tpu.memory_space<vmem>>, %arg11: memref<1x128xf32, #tpu.memory_space<vmem>>, %arg12: memref<1x128xf32, #tpu.memory_space<vmem>>, %arg13: memref<1x128xf32, #tpu.memory_space<vmem>>, %arg14: memref<128x256xf32, #tpu.memory_space<vmem>>, %arg15: memref<1x256xf32, #tpu.memory_space<vmem>>, %arg16: memref<128x128xf32, #tpu.memory_space<vmem>>, %arg17: memref<1x128xf32, #tpu.memory_space<vmem>>, %arg18: memref<1x128xf32, #tpu.memory_space<vmem>>, %arg19: memref<1x128xf32, #tpu.memory_space<vmem>>, %arg20: memref<128x256xf32, #tpu.memory_space<vmem>>, %arg21: memref<1x256xf32, #tpu.memory_space<vmem>>, %arg22: memref<128x128xf32, #tpu.memory_space<vmem>>, %arg23: memref<1x128xf32, #tpu.memory_space<vmem>>, %arg24: memref<1x128xf32, #tpu.memory_space<vmem>>, %arg25: memref<1x128xf32, #tpu.memory_space<vmem>>, %arg26: memref<8x128xf32, #tpu.memory_space<vmem>>) attributes {dimension_semantics = [#tpu.dimension_semantics<parallel>], iteration_bounds = array<i64: 1>, scalar_prefetch = 0 : i64, scratch_operands = 0 : i64, tpu.core_type = #tpu.core_type<tc>, window_params = [{transform_indices = @transform_0, window_bounds = array<i64: 8, 128>}, {pipeline_mode = #tpu.pipeline_mode<synchronous>, transform_indices = @transform_1, window_bounds = array<i64: 128, 256>}, {pipeline_mode = #tpu.pipeline_mode<synchronous>, transform_indices = @transform_2, window_bounds = array<i64: 1, 256>}, {pipeline_mode = #tpu.pipeline_mode<synchronous>, transform_indices = @transform_3, window_bounds = array<i64: 128, 128>}, {pipeline_mode = #tpu.pipeline_mode<synchronous>, transform_indices = @transform_4, window_bounds = array<i64: 1, 128>}, {pipeline_mode = #tpu.pipeline_mode<synchronous>, transform_indices = @transform_5, window_bounds = array<i64: 1, 128>}, {pipeline_mode = #tpu.pipeline_mode<synchronous>, transform_indices = @transform_6, window_bounds = array<i64: 1, 128>}, {pipeline_mode = #tpu.pipeline_mode<synchronous>, transform_indices = @transform_7, window_bounds = array<i64: 128, 256>}, {pipeline_mode = #tpu.pipeline_mode<synchronous>, transform_indices = @transform_8, window_bounds = array<i64: 1, 256>}, {pipeline_mode = #tpu.pipeline_mode<synchronous>, transform_indices = @transform_9, window_bounds = array<i64: 128, 128>}, {pipeline_mode = #tpu.pipeline_mode<synchronous>, transform_indices = @transform_10, window_bounds = array<i64: 1, 128>}, {pipeline_mode = #tpu.pipeline_mode<synchronous>, transform_indices = @transform_11, window_bounds = array<i64: 1, 128>}, {pipeline_mode = #tpu.pipeline_mode<synchronous>, transform_indices = @transform_12, window_bounds = array<i64: 1, 128>}, {pipeline_mode = #tpu.pipeline_mode<synchronous>, transform_indices = @transform_13, window_bounds = array<i64: 128, 256>}, {pipeline_mode = #tpu.pipeline_mode<synchronous>, transform_indices = @transform_14, window_bounds = array<i64: 1, 256>}, {pipeline_mode = #tpu.pipeline_mode<synchronous>, transform_indices = @transform_15, window_bounds = array<i64: 128, 128>}, {pipeline_mode = #tpu.pipeline_mode<synchronous>, transform_indices = @transform_16, window_bounds = array<i64: 1, 128>}, {pipeline_mode = #tpu.pipeline_mode<synchronous>, transform_indices = @transform_17, window_bounds = array<i64: 1, 128>}, {pipeline_mode = #tpu.pipeline_mode<synchronous>, transform_indices = @transform_18, window_bounds = array<i64: 1, 128>}, {pipeline_mode = #tpu.pipeline_mode<synchronous>, transform_indices = @transform_19, window_bounds = array<i64: 128, 256>}, {pipeline_mode = #tpu.pipeline_mode<synchronous>, transform_indices = @transform_20, window_bounds = array<i64: 1, 256>}, {pipeline_mode = #tpu.pipeline_mode<synchronous>, transform_indices = @transform_21, window_bounds = array<i64: 128, 128>}, {pipeline_mode = #tpu.pipeline_mode<synchronous>, transform_indices = @transform_22, window_bounds = array<i64: 1, 128>}, {pipeline_mode = #tpu.pipeline_mode<synchronous>, transform_indices = @transform_23, window_bounds = array<i64: 1, 128>}, {pipeline_mode = #tpu.pipeline_mode<synchronous>, transform_indices = @transform_24, window_bounds = array<i64: 1, 128>}, {transform_indices = @transform_25, window_bounds = array<i64: 8, 128>}]} {
    %c0 = arith.constant 0 : index
    %c0_0 = arith.constant 0 : index
    %0 = vector.load %arg1[%c0, %c0_0] : memref<8x128xf32, #tpu.memory_space<vmem>>, vector<8x128xf32>
    %c0_1 = arith.constant 0 : index
    %c0_2 = arith.constant 0 : index
    %1 = vector.load %arg2[%c0_1, %c0_2] : memref<128x256xf32, #tpu.memory_space<vmem>>, vector<128x256xf32>
    %cst = arith.constant dense<0.000000e+00> : vector<8x256xf32>
    %2 = tpu.matmul %0, %1, %cst {dimension_numbers = #tpu.dot_dimension_numbers<[1], [0], [0], [1], [0, 0, 1, 1], [], []>} : vector<8x128xf32>, vector<128x256xf32>, vector<8x256xf32> -> vector<8x256xf32>
    %c0_3 = arith.constant 0 : index
    %c0_4 = arith.constant 0 : index
    %3 = vector.load %arg3[%c0_3, %c0_4] : memref<1x256xf32, #tpu.memory_space<vmem>>, vector<1x256xf32>
    %4 = vector.broadcast %3 : vector<1x256xf32> to vector<8x256xf32>
    %5 = arith.addf %2, %4 : vector<8x256xf32>
    %6 = vector.extract_strided_slice %5 {offsets = [0, 0], sizes = [8, 128], strides = [1, 1]} : vector<8x256xf32> to vector<8x128xf32>
    %cst_5 = arith.constant 0.000000e+00 : f32
    %7 = vector.broadcast %cst_5 : f32 to vector<8x128xf32>
    %8 = arith.maximumf %6, %7 : vector<8x128xf32>
    %9 = vector.extract_strided_slice %5 {offsets = [0, 128], sizes = [8, 128], strides = [1, 1]} : vector<8x256xf32> to vector<8x128xf32>
    %c0_6 = arith.constant 0 : index
    %c0_7 = arith.constant 0 : index
    %10 = vector.load %arg4[%c0_6, %c0_7] : memref<128x128xf32, #tpu.memory_space<vmem>>, vector<128x128xf32>
    %cst_8 = arith.constant dense<0.000000e+00> : vector<8x128xf32>
    %11 = tpu.matmul %8, %10, %cst_8 {dimension_numbers = #tpu.dot_dimension_numbers<[1], [0], [0], [1], [0, 0, 1, 1], [], []>} : vector<8x128xf32>, vector<128x128xf32>, vector<8x128xf32> -> vector<8x128xf32>
    %c0_9 = arith.constant 0 : index
    %c0_10 = arith.constant 0 : index
    %12 = vector.load %arg5[%c0_9, %c0_10] : memref<1x128xf32, #tpu.memory_space<vmem>>, vector<1x128xf32>
    %13 = vector.broadcast %12 : vector<1x128xf32> to vector<8x128xf32>
    %14 = arith.addf %11, %13 : vector<8x128xf32>
    %15 = arith.addf %14, %9 : vector<8x128xf32>
    %cst_11 = arith.constant dense<0.000000e+00> : vector<8xf32>
    %16 = vector.multi_reduction <add>, %15, %cst_11 [1] : vector<8x128xf32> to vector<8xf32>
    %17 = vector.shape_cast %16 : vector<8xf32> to vector<8x1xf32>
    %cst_12 = arith.constant 5.000000e-02 : f32
    %18 = vector.broadcast %cst_12 : f32 to vector<8x1xf32>
    %19 = arith.mulf %17, %18 : vector<8x1xf32>
    %20 = vector.broadcast %19 : vector<8x1xf32> to vector<8x128xf32>
    %21 = arith.subf %15, %20 : vector<8x128xf32>
    %22 = arith.mulf %21, %21 : vector<8x128xf32>
    %cst_13 = arith.constant dense<0.000000e+00> : vector<8xf32>
    %23 = vector.multi_reduction <add>, %22, %cst_13 [1] : vector<8x128xf32> to vector<8xf32>
    %24 = vector.shape_cast %23 : vector<8xf32> to vector<8x1xf32>
    %25 = arith.mulf %19, %19 : vector<8x1xf32>
    %cst_14 = arith.constant 1.080000e+02 : f32
    %26 = vector.broadcast %cst_14 : f32 to vector<8x1xf32>
    %27 = arith.mulf %26, %25 : vector<8x1xf32>
    %28 = arith.subf %24, %27 : vector<8x1xf32>
    %cst_15 = arith.constant 5.000000e-02 : f32
    %29 = vector.broadcast %cst_15 : f32 to vector<8x1xf32>
    %30 = arith.mulf %28, %29 : vector<8x1xf32>
    %cst_16 = arith.constant 0.000000e+00 : f32
    %31 = vector.broadcast %cst_16 : f32 to vector<8x1xf32>
    %32 = arith.maximumf %30, %31 : vector<8x1xf32>
    %cst_17 = arith.constant 9.99999974E-6 : f32
    %33 = vector.broadcast %cst_17 : f32 to vector<8x1xf32>
    %34 = arith.addf %32, %33 : vector<8x1xf32>
    %35 = math.rsqrt %34 : vector<8x1xf32>
    %36 = vector.broadcast %35 : vector<8x1xf32> to vector<8x128xf32>
    %37 = arith.mulf %21, %36 : vector<8x128xf32>
    %c0_18 = arith.constant 0 : index
    %c0_19 = arith.constant 0 : index
    %38 = vector.load %arg6[%c0_18, %c0_19] : memref<1x128xf32, #tpu.memory_space<vmem>>, vector<1x128xf32>
    %39 = vector.broadcast %38 : vector<1x128xf32> to vector<8x128xf32>
    %40 = arith.mulf %37, %39 : vector<8x128xf32>
    %c0_20 = arith.constant 0 : index
    %c0_21 = arith.constant 0 : index
    %41 = vector.load %arg7[%c0_20, %c0_21] : memref<1x128xf32, #tpu.memory_space<vmem>>, vector<1x128xf32>
    %42 = vector.broadcast %41 : vector<1x128xf32> to vector<8x128xf32>
    %43 = arith.addf %40, %42 : vector<8x128xf32>
    %c0_22 = arith.constant 0 : index
    %c0_23 = arith.constant 0 : index
    %44 = vector.load %arg8[%c0_22, %c0_23] : memref<128x256xf32, #tpu.memory_space<vmem>>, vector<128x256xf32>
    %cst_24 = arith.constant dense<0.000000e+00> : vector<8x256xf32>
    %45 = tpu.matmul %43, %44, %cst_24 {dimension_numbers = #tpu.dot_dimension_numbers<[1], [0], [0], [1], [0, 0, 1, 1], [], []>} : vector<8x128xf32>, vector<128x256xf32>, vector<8x256xf32> -> vector<8x256xf32>
    %c0_25 = arith.constant 0 : index
    %c0_26 = arith.constant 0 : index
    %46 = vector.load %arg9[%c0_25, %c0_26] : memref<1x256xf32, #tpu.memory_space<vmem>>, vector<1x256xf32>
    %47 = vector.broadcast %46 : vector<1x256xf32> to vector<8x256xf32>
    %48 = arith.addf %45, %47 : vector<8x256xf32>
    %49 = vector.extract_strided_slice %48 {offsets = [0, 0], sizes = [8, 128], strides = [1, 1]} : vector<8x256xf32> to vector<8x128xf32>
    %cst_27 = arith.constant 0.000000e+00 : f32
    %50 = vector.broadcast %cst_27 : f32 to vector<8x128xf32>
    %51 = arith.maximumf %49, %50 : vector<8x128xf32>
    %52 = vector.extract_strided_slice %48 {offsets = [0, 128], sizes = [8, 128], strides = [1, 1]} : vector<8x256xf32> to vector<8x128xf32>
    %c0_28 = arith.constant 0 : index
    %c0_29 = arith.constant 0 : index
    %53 = vector.load %arg10[%c0_28, %c0_29] : memref<128x128xf32, #tpu.memory_space<vmem>>, vector<128x128xf32>
    %cst_30 = arith.constant dense<0.000000e+00> : vector<8x128xf32>
    %54 = tpu.matmul %51, %53, %cst_30 {dimension_numbers = #tpu.dot_dimension_numbers<[1], [0], [0], [1], [0, 0, 1, 1], [], []>} : vector<8x128xf32>, vector<128x128xf32>, vector<8x128xf32> -> vector<8x128xf32>
    %c0_31 = arith.constant 0 : index
    %c0_32 = arith.constant 0 : index
    %55 = vector.load %arg11[%c0_31, %c0_32] : memref<1x128xf32, #tpu.memory_space<vmem>>, vector<1x128xf32>
    %56 = vector.broadcast %55 : vector<1x128xf32> to vector<8x128xf32>
    %57 = arith.addf %54, %56 : vector<8x128xf32>
    %58 = arith.addf %57, %52 : vector<8x128xf32>
    %cst_33 = arith.constant dense<0.000000e+00> : vector<8xf32>
    %59 = vector.multi_reduction <add>, %58, %cst_33 [1] : vector<8x128xf32> to vector<8xf32>
    %60 = vector.shape_cast %59 : vector<8xf32> to vector<8x1xf32>
    %cst_34 = arith.constant 6.250000e-02 : f32
    %61 = vector.broadcast %cst_34 : f32 to vector<8x1xf32>
    %62 = arith.mulf %60, %61 : vector<8x1xf32>
    %63 = vector.broadcast %62 : vector<8x1xf32> to vector<8x128xf32>
    %64 = arith.subf %58, %63 : vector<8x128xf32>
    %65 = arith.mulf %64, %64 : vector<8x128xf32>
    %cst_35 = arith.constant dense<0.000000e+00> : vector<8xf32>
    %66 = vector.multi_reduction <add>, %65, %cst_35 [1] : vector<8x128xf32> to vector<8xf32>
    %67 = vector.shape_cast %66 : vector<8xf32> to vector<8x1xf32>
    %68 = arith.mulf %62, %62 : vector<8x1xf32>
    %cst_36 = arith.constant 1.120000e+02 : f32
    %69 = vector.broadcast %cst_36 : f32 to vector<8x1xf32>
    %70 = arith.mulf %69, %68 : vector<8x1xf32>
    %71 = arith.subf %67, %70 : vector<8x1xf32>
    %cst_37 = arith.constant 6.250000e-02 : f32
    %72 = vector.broadcast %cst_37 : f32 to vector<8x1xf32>
    %73 = arith.mulf %71, %72 : vector<8x1xf32>
    %cst_38 = arith.constant 0.000000e+00 : f32
    %74 = vector.broadcast %cst_38 : f32 to vector<8x1xf32>
    %75 = arith.maximumf %73, %74 : vector<8x1xf32>
    %cst_39 = arith.constant 9.99999974E-6 : f32
    %76 = vector.broadcast %cst_39 : f32 to vector<8x1xf32>
    %77 = arith.addf %75, %76 : vector<8x1xf32>
    %78 = math.rsqrt %77 : vector<8x1xf32>
    %79 = vector.broadcast %78 : vector<8x1xf32> to vector<8x128xf32>
    %80 = arith.mulf %64, %79 : vector<8x128xf32>
    %c0_40 = arith.constant 0 : index
    %c0_41 = arith.constant 0 : index
    %81 = vector.load %arg12[%c0_40, %c0_41] : memref<1x128xf32, #tpu.memory_space<vmem>>, vector<1x128xf32>
    %82 = vector.broadcast %81 : vector<1x128xf32> to vector<8x128xf32>
    %83 = arith.mulf %80, %82 : vector<8x128xf32>
    %c0_42 = arith.constant 0 : index
    %c0_43 = arith.constant 0 : index
    %84 = vector.load %arg13[%c0_42, %c0_43] : memref<1x128xf32, #tpu.memory_space<vmem>>, vector<1x128xf32>
    %85 = vector.broadcast %84 : vector<1x128xf32> to vector<8x128xf32>
    %86 = arith.addf %83, %85 : vector<8x128xf32>
    %c0_44 = arith.constant 0 : index
    %c0_45 = arith.constant 0 : index
    %87 = vector.load %arg14[%c0_44, %c0_45] : memref<128x256xf32, #tpu.memory_space<vmem>>, vector<128x256xf32>
    %cst_46 = arith.constant dense<0.000000e+00> : vector<8x256xf32>
    %88 = tpu.matmul %86, %87, %cst_46 {dimension_numbers = #tpu.dot_dimension_numbers<[1], [0], [0], [1], [0, 0, 1, 1], [], []>} : vector<8x128xf32>, vector<128x256xf32>, vector<8x256xf32> -> vector<8x256xf32>
    %c0_47 = arith.constant 0 : index
    %c0_48 = arith.constant 0 : index
    %89 = vector.load %arg15[%c0_47, %c0_48] : memref<1x256xf32, #tpu.memory_space<vmem>>, vector<1x256xf32>
    %90 = vector.broadcast %89 : vector<1x256xf32> to vector<8x256xf32>
    %91 = arith.addf %88, %90 : vector<8x256xf32>
    %92 = vector.extract_strided_slice %91 {offsets = [0, 0], sizes = [8, 128], strides = [1, 1]} : vector<8x256xf32> to vector<8x128xf32>
    %cst_49 = arith.constant 0.000000e+00 : f32
    %93 = vector.broadcast %cst_49 : f32 to vector<8x128xf32>
    %94 = arith.maximumf %92, %93 : vector<8x128xf32>
    %95 = vector.extract_strided_slice %91 {offsets = [0, 128], sizes = [8, 128], strides = [1, 1]} : vector<8x256xf32> to vector<8x128xf32>
    %c0_50 = arith.constant 0 : index
    %c0_51 = arith.constant 0 : index
    %96 = vector.load %arg16[%c0_50, %c0_51] : memref<128x128xf32, #tpu.memory_space<vmem>>, vector<128x128xf32>
    %cst_52 = arith.constant dense<0.000000e+00> : vector<8x128xf32>
    %97 = tpu.matmul %94, %96, %cst_52 {dimension_numbers = #tpu.dot_dimension_numbers<[1], [0], [0], [1], [0, 0, 1, 1], [], []>} : vector<8x128xf32>, vector<128x128xf32>, vector<8x128xf32> -> vector<8x128xf32>
    %c0_53 = arith.constant 0 : index
    %c0_54 = arith.constant 0 : index
    %98 = vector.load %arg17[%c0_53, %c0_54] : memref<1x128xf32, #tpu.memory_space<vmem>>, vector<1x128xf32>
    %99 = vector.broadcast %98 : vector<1x128xf32> to vector<8x128xf32>
    %100 = arith.addf %97, %99 : vector<8x128xf32>
    %101 = arith.addf %100, %95 : vector<8x128xf32>
    %cst_55 = arith.constant dense<0.000000e+00> : vector<8xf32>
    %102 = vector.multi_reduction <add>, %101, %cst_55 [1] : vector<8x128xf32> to vector<8xf32>
    %103 = vector.shape_cast %102 : vector<8xf32> to vector<8x1xf32>
    %cst_56 = arith.constant 5.000000e-02 : f32
    %104 = vector.broadcast %cst_56 : f32 to vector<8x1xf32>
    %105 = arith.mulf %103, %104 : vector<8x1xf32>
    %106 = vector.broadcast %105 : vector<8x1xf32> to vector<8x128xf32>
    %107 = arith.subf %101, %106 : vector<8x128xf32>
    %108 = arith.mulf %107, %107 : vector<8x128xf32>
    %cst_57 = arith.constant dense<0.000000e+00> : vector<8xf32>
    %109 = vector.multi_reduction <add>, %108, %cst_57 [1] : vector<8x128xf32> to vector<8xf32>
    %110 = vector.shape_cast %109 : vector<8xf32> to vector<8x1xf32>
    %111 = arith.mulf %105, %105 : vector<8x1xf32>
    %cst_58 = arith.constant 1.080000e+02 : f32
    %112 = vector.broadcast %cst_58 : f32 to vector<8x1xf32>
    %113 = arith.mulf %112, %111 : vector<8x1xf32>
    %114 = arith.subf %110, %113 : vector<8x1xf32>
    %cst_59 = arith.constant 5.000000e-02 : f32
    %115 = vector.broadcast %cst_59 : f32 to vector<8x1xf32>
    %116 = arith.mulf %114, %115 : vector<8x1xf32>
    %cst_60 = arith.constant 0.000000e+00 : f32
    %117 = vector.broadcast %cst_60 : f32 to vector<8x1xf32>
    %118 = arith.maximumf %116, %117 : vector<8x1xf32>
    %cst_61 = arith.constant 9.99999974E-6 : f32
    %119 = vector.broadcast %cst_61 : f32 to vector<8x1xf32>
    %120 = arith.addf %118, %119 : vector<8x1xf32>
    %121 = math.rsqrt %120 : vector<8x1xf32>
    %122 = vector.broadcast %121 : vector<8x1xf32> to vector<8x128xf32>
    %123 = arith.mulf %107, %122 : vector<8x128xf32>
    %c0_62 = arith.constant 0 : index
    %c0_63 = arith.constant 0 : index
    %124 = vector.load %arg18[%c0_62, %c0_63] : memref<1x128xf32, #tpu.memory_space<vmem>>, vector<1x128xf32>
    %125 = vector.broadcast %124 : vector<1x128xf32> to vector<8x128xf32>
    %126 = arith.mulf %123, %125 : vector<8x128xf32>
    %c0_64 = arith.constant 0 : index
    %c0_65 = arith.constant 0 : index
    %127 = vector.load %arg19[%c0_64, %c0_65] : memref<1x128xf32, #tpu.memory_space<vmem>>, vector<1x128xf32>
    %128 = vector.broadcast %127 : vector<1x128xf32> to vector<8x128xf32>
    %129 = arith.addf %126, %128 : vector<8x128xf32>
    %c0_66 = arith.constant 0 : index
    %c0_67 = arith.constant 0 : index
    %130 = vector.load %arg20[%c0_66, %c0_67] : memref<128x256xf32, #tpu.memory_space<vmem>>, vector<128x256xf32>
    %cst_68 = arith.constant dense<0.000000e+00> : vector<8x256xf32>
    %131 = tpu.matmul %129, %130, %cst_68 {dimension_numbers = #tpu.dot_dimension_numbers<[1], [0], [0], [1], [0, 0, 1, 1], [], []>} : vector<8x128xf32>, vector<128x256xf32>, vector<8x256xf32> -> vector<8x256xf32>
    %c0_69 = arith.constant 0 : index
    %c0_70 = arith.constant 0 : index
    %132 = vector.load %arg21[%c0_69, %c0_70] : memref<1x256xf32, #tpu.memory_space<vmem>>, vector<1x256xf32>
    %133 = vector.broadcast %132 : vector<1x256xf32> to vector<8x256xf32>
    %134 = arith.addf %131, %133 : vector<8x256xf32>
    %135 = vector.extract_strided_slice %134 {offsets = [0, 0], sizes = [8, 128], strides = [1, 1]} : vector<8x256xf32> to vector<8x128xf32>
    %cst_71 = arith.constant 0.000000e+00 : f32
    %136 = vector.broadcast %cst_71 : f32 to vector<8x128xf32>
    %137 = arith.maximumf %135, %136 : vector<8x128xf32>
    %138 = vector.extract_strided_slice %134 {offsets = [0, 128], sizes = [8, 128], strides = [1, 1]} : vector<8x256xf32> to vector<8x128xf32>
    %c0_72 = arith.constant 0 : index
    %c0_73 = arith.constant 0 : index
    %139 = vector.load %arg22[%c0_72, %c0_73] : memref<128x128xf32, #tpu.memory_space<vmem>>, vector<128x128xf32>
    %cst_74 = arith.constant dense<0.000000e+00> : vector<8x128xf32>
    %140 = tpu.matmul %137, %139, %cst_74 {dimension_numbers = #tpu.dot_dimension_numbers<[1], [0], [0], [1], [0, 0, 1, 1], [], []>} : vector<8x128xf32>, vector<128x128xf32>, vector<8x128xf32> -> vector<8x128xf32>
    %c0_75 = arith.constant 0 : index
    %c0_76 = arith.constant 0 : index
    %141 = vector.load %arg23[%c0_75, %c0_76] : memref<1x128xf32, #tpu.memory_space<vmem>>, vector<1x128xf32>
    %142 = vector.broadcast %141 : vector<1x128xf32> to vector<8x128xf32>
    %143 = arith.addf %140, %142 : vector<8x128xf32>
    %144 = arith.addf %143, %138 : vector<8x128xf32>
    %cst_77 = arith.constant dense<0.000000e+00> : vector<8xf32>
    %145 = vector.multi_reduction <add>, %144, %cst_77 [1] : vector<8x128xf32> to vector<8xf32>
    %146 = vector.shape_cast %145 : vector<8xf32> to vector<8x1xf32>
    %cst_78 = arith.constant 3.125000e-02 : f32
    %147 = vector.broadcast %cst_78 : f32 to vector<8x1xf32>
    %148 = arith.mulf %146, %147 : vector<8x1xf32>
    %149 = vector.broadcast %148 : vector<8x1xf32> to vector<8x128xf32>
    %150 = arith.subf %144, %149 : vector<8x128xf32>
    %151 = arith.mulf %150, %150 : vector<8x128xf32>
    %cst_79 = arith.constant dense<0.000000e+00> : vector<8xf32>
    %152 = vector.multi_reduction <add>, %151, %cst_79 [1] : vector<8x128xf32> to vector<8xf32>
    %153 = vector.shape_cast %152 : vector<8xf32> to vector<8x1xf32>
    %154 = arith.mulf %148, %148 : vector<8x1xf32>
    %cst_80 = arith.constant 9.600000e+01 : f32
    %155 = vector.broadcast %cst_80 : f32 to vector<8x1xf32>
    %156 = arith.mulf %155, %154 : vector<8x1xf32>
    %157 = arith.subf %153, %156 : vector<8x1xf32>
    %cst_81 = arith.constant 3.125000e-02 : f32
    %158 = vector.broadcast %cst_81 : f32 to vector<8x1xf32>
    %159 = arith.mulf %157, %158 : vector<8x1xf32>
    %cst_82 = arith.constant 0.000000e+00 : f32
    %160 = vector.broadcast %cst_82 : f32 to vector<8x1xf32>
    %161 = arith.maximumf %159, %160 : vector<8x1xf32>
    %cst_83 = arith.constant 9.99999974E-6 : f32
    %162 = vector.broadcast %cst_83 : f32 to vector<8x1xf32>
    %163 = arith.addf %161, %162 : vector<8x1xf32>
    %164 = math.rsqrt %163 : vector<8x1xf32>
    %165 = vector.broadcast %164 : vector<8x1xf32> to vector<8x128xf32>
    %166 = arith.mulf %150, %165 : vector<8x128xf32>
    %c0_84 = arith.constant 0 : index
    %c0_85 = arith.constant 0 : index
    %167 = vector.load %arg24[%c0_84, %c0_85] : memref<1x128xf32, #tpu.memory_space<vmem>>, vector<1x128xf32>
    %168 = vector.broadcast %167 : vector<1x128xf32> to vector<8x128xf32>
    %169 = arith.mulf %166, %168 : vector<8x128xf32>
    %c0_86 = arith.constant 0 : index
    %c0_87 = arith.constant 0 : index
    %170 = vector.load %arg25[%c0_86, %c0_87] : memref<1x128xf32, #tpu.memory_space<vmem>>, vector<1x128xf32>
    %171 = vector.broadcast %170 : vector<1x128xf32> to vector<8x128xf32>
    %172 = arith.addf %169, %171 : vector<8x128xf32>
    %c0_88 = arith.constant 0 : index
    %c0_89 = arith.constant 0 : index
    %173 = vector.load %arg26[%c0_88, %c0_89] : memref<8x128xf32, #tpu.memory_space<vmem>>, vector<8x128xf32>
    tpu.vector_store %arg26[%c0_88, %c0_89], %172 {strides = array<i32>} : memref<8x128xf32, #tpu.memory_space<vmem>>, vector<8x128xf32>,
    return
  }
  func.func @transform_0(%arg0: i32) -> (i32, i32) {
    %c0_i32 = arith.constant 0 : i32
    %c0_i32_0 = arith.constant 0 : i32
    return %arg0, %c0_i32 : i32, i32
  }
  func.func @transform_1(%arg0: i32) -> (i32, i32) {
    %c0_i32 = arith.constant 0 : i32
    %c0_i32_0 = arith.constant 0 : i32
    %c0_i32_1 = arith.constant 0 : i32
    return %c0_i32, %c0_i32_0 : i32, i32
  }
  func.func @transform_2(%arg0: i32) -> (i32, i32) {
    %c0_i32 = arith.constant 0 : i32
    %c0_i32_0 = arith.constant 0 : i32
    %c0_i32_1 = arith.constant 0 : i32
    return %c0_i32, %c0_i32_0 : i32, i32
  }
  func.func @transform_3(%arg0: i32) -> (i32, i32) {
    %c0_i32 = arith.constant 0 : i32
    %c0_i32_0 = arith.constant 0 : i32
    %c0_i32_1 = arith.constant 0 : i32
    return %c0_i32, %c0_i32_0 : i32, i32
  }
  func.func @transform_4(%arg0: i32) -> (i32, i32) {
    %c0_i32 = arith.constant 0 : i32
    %c0_i32_0 = arith.constant 0 : i32
    %c0_i32_1 = arith.constant 0 : i32
    return %c0_i32, %c0_i32_0 : i32, i32
  }
  func.func @transform_5(%arg0: i32) -> (i32, i32) {
    %c0_i32 = arith.constant 0 : i32
    %c0_i32_0 = arith.constant 0 : i32
    %c0_i32_1 = arith.constant 0 : i32
    return %c0_i32, %c0_i32_0 : i32, i32
  }
  func.func @transform_6(%arg0: i32) -> (i32, i32) {
    %c0_i32 = arith.constant 0 : i32
    %c0_i32_0 = arith.constant 0 : i32
    %c0_i32_1 = arith.constant 0 : i32
    return %c0_i32, %c0_i32_0 : i32, i32
  }
  func.func @transform_7(%arg0: i32) -> (i32, i32) {
    %c0_i32 = arith.constant 0 : i32
    %c0_i32_0 = arith.constant 0 : i32
    %c0_i32_1 = arith.constant 0 : i32
    return %c0_i32, %c0_i32_0 : i32, i32
  }
  func.func @transform_8(%arg0: i32) -> (i32, i32) {
    %c0_i32 = arith.constant 0 : i32
    %c0_i32_0 = arith.constant 0 : i32
    %c0_i32_1 = arith.constant 0 : i32
    return %c0_i32, %c0_i32_0 : i32, i32
  }
  func.func @transform_9(%arg0: i32) -> (i32, i32) {
    %c0_i32 = arith.constant 0 : i32
    %c0_i32_0 = arith.constant 0 : i32
    %c0_i32_1 = arith.constant 0 : i32
    return %c0_i32, %c0_i32_0 : i32, i32
  }
  func.func @transform_10(%arg0: i32) -> (i32, i32) {
    %c0_i32 = arith.constant 0 : i32
    %c0_i32_0 = arith.constant 0 : i32
    %c0_i32_1 = arith.constant 0 : i32
    return %c0_i32, %c0_i32_0 : i32, i32
  }
  func.func @transform_11(%arg0: i32) -> (i32, i32) {
    %c0_i32 = arith.constant 0 : i32
    %c0_i32_0 = arith.constant 0 : i32
    %c0_i32_1 = arith.constant 0 : i32
    return %c0_i32, %c0_i32_0 : i32, i32
  }
  func.func @transform_12(%arg0: i32) -> (i32, i32) {
    %c0_i32 = arith.constant 0 : i32
    %c0_i32_0 = arith.constant 0 : i32
    %c0_i32_1 = arith.constant 0 : i32
    return %c0_i32, %c0_i32_0 : i32, i32
  }
  func.func @transform_13(%arg0: i32) -> (i32, i32) {
    %c0_i32 = arith.constant 0 : i32
    %c0_i32_0 = arith.constant 0 : i32
    %c0_i32_1 = arith.constant 0 : i32
    return %c0_i32, %c0_i32_0 : i32, i32
  }
  func.func @transform_14(%arg0: i32) -> (i32, i32) {
    %c0_i32 = arith.constant 0 : i32
    %c0_i32_0 = arith.constant 0 : i32
    %c0_i32_1 = arith.constant 0 : i32
    return %c0_i32, %c0_i32_0 : i32, i32
  }
  func.func @transform_15(%arg0: i32) -> (i32, i32) {
    %c0_i32 = arith.constant 0 : i32
    %c0_i32_0 = arith.constant 0 : i32
    %c0_i32_1 = arith.constant 0 : i32
    return %c0_i32, %c0_i32_0 : i32, i32
  }
  func.func @transform_16(%arg0: i32) -> (i32, i32) {
    %c0_i32 = arith.constant 0 : i32
    %c0_i32_0 = arith.constant 0 : i32
    %c0_i32_1 = arith.constant 0 : i32
    return %c0_i32, %c0_i32_0 : i32, i32
  }
  func.func @transform_17(%arg0: i32) -> (i32, i32) {
    %c0_i32 = arith.constant 0 : i32
    %c0_i32_0 = arith.constant 0 : i32
    %c0_i32_1 = arith.constant 0 : i32
    return %c0_i32, %c0_i32_0 : i32, i32
  }
  func.func @transform_18(%arg0: i32) -> (i32, i32) {
    %c0_i32 = arith.constant 0 : i32
    %c0_i32_0 = arith.constant 0 : i32
    %c0_i32_1 = arith.constant 0 : i32
    return %c0_i32, %c0_i32_0 : i32, i32
  }
  func.func @transform_19(%arg0: i32) -> (i32, i32) {
    %c0_i32 = arith.constant 0 : i32
    %c0_i32_0 = arith.constant 0 : i32
    %c0_i32_1 = arith.constant 0 : i32
    return %c0_i32, %c0_i32_0 : i32, i32
  }
  func.func @transform_20(%arg0: i32) -> (i32, i32) {
    %c0_i32 = arith.constant 0 : i32
    %c0_i32_0 = arith.constant 0 : i32
    %c0_i32_1 = arith.constant 0 : i32
    return %c0_i32, %c0_i32_0 : i32, i32
  }
  func.func @transform_21(%arg0: i32) -> (i32, i32) {
    %c0_i32 = arith.constant 0 : i32
    %c0_i32_0 = arith.constant 0 : i32
    %c0_i32_1 = arith.constant 0 : i32
    return %c0_i32, %c0_i32_0 : i32, i32
  }
  func.func @transform_22(%arg0: i32) -> (i32, i32) {
    %c0_i32 = arith.constant 0 : i32
    %c0_i32_0 = arith.constant 0 : i32
    %c0_i32_1 = arith.constant 0 : i32
    return %c0_i32, %c0_i32_0 : i32, i32
  }
  func.func @transform_23(%arg0: i32) -> (i32, i32) {
    %c0_i32 = arith.constant 0 : i32
    %c0_i32_0 = arith.constant 0 : i32
    %c0_i32_1 = arith.constant 0 : i32
    return %c0_i32, %c0_i32_0 : i32, i32
  }
  func.func @transform_24(%arg0: i32) -> (i32, i32) {
    %c0_i32 = arith.constant 0 : i32
    %c0_i32_0 = arith.constant 0 : i32
    %c0_i32_1 = arith.constant 0 : i32
    return %c0_i32, %c0_i32_0 : i32, i32
  }
  func.func @transform_25(%arg0: i32) -> (i32, i32) {
    %c0_i32 = arith.constant 0 : i32
    %c0_i32_0 = arith.constant 0 : i32
    return %arg0, %c0_i32 : i32, i32
  }
}

module attributes {stable_mosaic.version = 11 : i64} {
  func.func @_tide_chain_kernel(%arg0: i32, %arg1: memref<8x128xf32, #tpu.memory_space<vmem>>, %arg2: memref<128x256xf32, #tpu.memory_space<vmem>>, %arg3: memref<1x256xf32, #tpu.memory_space<vmem>>, %arg4: memref<128x128xf32, #tpu.memory_space<vmem>>, %arg5: memref<1x128xf32, #tpu.memory_space<vmem>>, %arg6: memref<1x128xf32, #tpu.memory_space<vmem>>, %arg7: memref<1x128xf32, #tpu.memory_space<vmem>>, %arg8: memref<128x256xf32, #tpu.memory_space<vmem>>, %arg9: memref<1x256xf32, #tpu.memory_space<vmem>>, %arg10: memref<128x128xf32, #tpu.memory_space<vmem>>, %arg11: memref<1x128xf32, #tpu.memory_space<vmem>>, %arg12: memref<1x128xf32, #tpu.memory_space<vmem>>, %arg13: memref<1x128xf32, #tpu.memory_space<vmem>>, %arg14: memref<128x256xf32, #tpu.memory_space<vmem>>, %arg15: memref<1x256xf32, #tpu.memory_space<vmem>>, %arg16: memref<128x128xf32, #tpu.memory_space<vmem>>, %arg17: memref<1x128xf32, #tpu.memory_space<vmem>>, %arg18: memref<1x128xf32, #tpu.memory_space<vmem>>, %arg19: memref<1x128xf32, #tpu.memory_space<vmem>>, %arg20: memref<128x256xf32, #tpu.memory_space<vmem>>, %arg21: memref<1x256xf32, #tpu.memory_space<vmem>>, %arg22: memref<128x128xf32, #tpu.memory_space<vmem>>, %arg23: memref<1x128xf32, #tpu.memory_space<vmem>>, %arg24: memref<1x128xf32, #tpu.memory_space<vmem>>, %arg25: memref<1x128xf32, #tpu.memory_space<vmem>>, %arg26: memref<8x128xf32, #tpu.memory_space<vmem>>) attributes {dimension_semantics = [#tpu.dimension_semantics<parallel>], iteration_bounds = array<i64: 1>, scalar_prefetch = 0 : i64, scratch_operands = 0 : i64, tpu.core_type = #tpu.core_type<tc>, window_params = [{transform_indices = @transform_0, window_bounds = array<i64: 8, 128>}, {pipeline_mode = #tpu.pipeline_mode<synchronous>, transform_indices = @transform_1, window_bounds = array<i64: 128, 256>}, {pipeline_mode = #tpu.pipeline_mode<synchronous>, transform_indices = @transform_2, window_bounds = array<i64: 1, 256>}, {pipeline_mode = #tpu.pipeline_mode<synchronous>, transform_indices = @transform_3, window_bounds = array<i64: 128, 128>}, {pipeline_mode = #tpu.pipeline_mode<synchronous>, transform_indices = @transform_4, window_bounds = array<i64: 1, 128>}, {pipeline_mode = #tpu.pipeline_mode<synchronous>, transform_indices = @transform_5, window_bounds = array<i64: 1, 128>}, {pipeline_mode = #tpu.pipeline_mode<synchronous>, transform_indices = @transform_6, window_bounds = array<i64: 1, 128>}, {pipeline_mode = #tpu.pipeline_mode<synchronous>, transform_indices = @transform_7, window_bounds = array<i64: 128, 256>}, {pipeline_mode = #tpu.pipeline_mode<synchronous>, transform_indices = @transform_8, window_bounds = array<i64: 1, 256>}, {pipeline_mode = #tpu.pipeline_mode<synchronous>, transform_indices = @transform_9, window_bounds = array<i64: 128, 128>}, {pipeline_mode = #tpu.pipeline_mode<synchronous>, transform_indices = @transform_10, window_bounds = array<i64: 1, 128>}, {pipeline_mode = #tpu.pipeline_mode<synchronous>, transform_indices = @transform_11, window_bounds = array<i64: 1, 128>}, {pipeline_mode = #tpu.pipeline_mode<synchronous>, transform_indices = @transform_12, window_bounds = array<i64: 1, 128>}, {pipeline_mode = #tpu.pipeline_mode<synchronous>, transform_indices = @transform_13, window_bounds = array<i64: 128, 256>}, {pipeline_mode = #tpu.pipeline_mode<synchronous>, transform_indices = @transform_14, window_bounds = array<i64: 1, 256>}, {pipeline_mode = #tpu.pipeline_mode<synchronous>, transform_indices = @transform_15, window_bounds = array<i64: 128, 128>}, {pipeline_mode = #tpu.pipeline_mode<synchronous>, transform_indices = @transform_16, window_bounds = array<i64: 1, 128>}, {pipeline_mode = #tpu.pipeline_mode<synchronous>, transform_indices = @transform_17, window_bounds = array<i64: 1, 128>}, {pipeline_mode = #tpu.pipeline_mode<synchronous>, transform_indices = @transform_18, window_bounds = array<i64: 1, 128>}, {pipeline_mode = #tpu.pipeline_mode<synchronous>, transform_indices = @transform_19, window_bounds = array<i64: 128, 256>}, {pipeline_mode = #tpu.pipeline_mode<synchronous>, transform_indices = @transform_20, window_bounds = array<i64: 1, 256>}, {pipeline_mode = #tpu.pipeline_mode<synchronous>, transform_indices = @transform_21, window_bounds = array<i64: 128, 128>}, {pipeline_mode = #tpu.pipeline_mode<synchronous>, transform_indices = @transform_22, window_bounds = array<i64: 1, 128>}, {pipeline_mode = #tpu.pipeline_mode<synchronous>, transform_indices = @transform_23, window_bounds = array<i64: 1, 128>}, {pipeline_mode = #tpu.pipeline_mode<synchronous>, transform_indices = @transform_24, window_bounds = array<i64: 1, 128>}, {transform_indices = @transform_25, window_bounds = array<i64: 8, 128>}]} {
    %c0 = arith.constant 0 : index
    %c0_0 = arith.constant 0 : index
    %0 = vector.load %arg1[%c0, %c0_0] : memref<8x128xf32, #tpu.memory_space<vmem>>, vector<8x128xf32>
    %c0_1 = arith.constant 0 : index
    %c0_2 = arith.constant 0 : index
    %1 = vector.load %arg2[%c0_1, %c0_2] : memref<128x256xf32, #tpu.memory_space<vmem>>, vector<128x256xf32>
    %cst = arith.constant dense<0.000000e+00> : vector<8x256xf32>
    %2 = tpu.matmul %0, %1, %cst {dimension_numbers = #tpu.dot_dimension_numbers<[1], [0], [0], [1], [0, 0, 1, 1], [], []>} : vector<8x128xf32>, vector<128x256xf32>, vector<8x256xf32> -> vector<8x256xf32>
    %c0_3 = arith.constant 0 : index
    %c0_4 = arith.constant 0 : index
    %3 = vector.load %arg3[%c0_3, %c0_4] : memref<1x256xf32, #tpu.memory_space<vmem>>, vector<1x256xf32>
    %4 = vector.broadcast %3 : vector<1x256xf32> to vector<8x256xf32>
    %5 = arith.addf %2, %4 : vector<8x256xf32>
    %6 = vector.extract_strided_slice %5 {offsets = [0, 0], sizes = [8, 128], strides = [1, 1]} : vector<8x256xf32> to vector<8x128xf32>
    %cst_5 = arith.constant 0.000000e+00 : f32
    %7 = vector.broadcast %cst_5 : f32 to vector<8x128xf32>
    %8 = arith.maximumf %6, %7 : vector<8x128xf32>
    %9 = vector.extract_strided_slice %5 {offsets = [0, 128], sizes = [8, 128], strides = [1, 1]} : vector<8x256xf32> to vector<8x128xf32>
    %c0_6 = arith.constant 0 : index
    %c0_7 = arith.constant 0 : index
    %10 = vector.load %arg4[%c0_6, %c0_7] : memref<128x128xf32, #tpu.memory_space<vmem>>, vector<128x128xf32>
    %cst_8 = arith.constant dense<0.000000e+00> : vector<8x128xf32>
    %11 = tpu.matmul %8, %10, %cst_8 {dimension_numbers = #tpu.dot_dimension_numbers<[1], [0], [0], [1], [0, 0, 1, 1], [], []>} : vector<8x128xf32>, vector<128x128xf32>, vector<8x128xf32> -> vector<8x128xf32>
    %c0_9 = arith.constant 0 : index
    %c0_10 = arith.constant 0 : index
    %12 = vector.load %arg5[%c0_9, %c0_10] : memref<1x128xf32, #tpu.memory_space<vmem>>, vector<1x128xf32>
    %13 = vector.broadcast %12 : vector<1x128xf32> to vector<8x128xf32>
    %14 = arith.addf %11, %13 : vector<8x128xf32>
    %15 = arith.addf %14, %9 : vector<8x128xf32>
    %cst_11 = arith.constant dense<0.000000e+00> : vector<8xf32>
    %16 = vector.multi_reduction <add>, %15, %cst_11 [1] : vector<8x128xf32> to vector<8xf32>
    %17 = vector.shape_cast %16 : vector<8xf32> to vector<8x1xf32>
    %cst_12 = arith.constant 5.000000e-02 : f32
    %18 = vector.broadcast %cst_12 : f32 to vector<8x1xf32>
    %19 = arith.mulf %17, %18 : vector<8x1xf32>
    %20 = vector.broadcast %19 : vector<8x1xf32> to vector<8x128xf32>
    %21 = arith.subf %15, %20 : vector<8x128xf32>
    %22 = arith.mulf %21, %21 : vector<8x128xf32>
    %cst_13 = arith.constant dense<0.000000e+00> : vector<8xf32>
    %23 = vector.multi_reduction <add>, %22, %cst_13 [1] : vector<8x128xf32> to vector<8xf32>
    %24 = vector.shape_cast %23 : vector<8xf32> to vector<8x1xf32>
    %25 = arith.mulf %19, %19 : vector<8x1xf32>
    %cst_14 = arith.constant 1.080000e+02 : f32
    %26 = vector.broadcast %cst_14 : f32 to vector<8x1xf32>
    %27 = arith.mulf %26, %25 : vector<8x1xf32>
    %28 = arith.subf %24, %27 : vector<8x1xf32>
    %cst_15 = arith.constant 5.000000e-02 : f32
    %29 = vector.broadcast %cst_15 : f32 to vector<8x1xf32>
    %30 = arith.mulf %28, %29 : vector<8x1xf32>
    %cst_16 = arith.constant 0.000000e+00 : f32
    %31 = vector.broadcast %cst_16 : f32 to vector<8x1xf32>
    %32 = arith.maximumf %30, %31 : vector<8x1xf32>
    %cst_17 = arith.constant 9.99999974E-6 : f32
    %33 = vector.broadcast %cst_17 : f32 to vector<8x1xf32>
    %34 = arith.addf %32, %33 : vector<8x1xf32>
    %35 = math.rsqrt %34 : vector<8x1xf32>
    %36 = vector.broadcast %35 : vector<8x1xf32> to vector<8x128xf32>
    %37 = arith.mulf %21, %36 : vector<8x128xf32>
    %c0_18 = arith.constant 0 : index
    %c0_19 = arith.constant 0 : index
    %38 = vector.load %arg6[%c0_18, %c0_19] : memref<1x128xf32, #tpu.memory_space<vmem>>, vector<1x128xf32>
    %39 = vector.broadcast %38 : vector<1x128xf32> to vector<8x128xf32>
    %40 = arith.mulf %37, %39 : vector<8x128xf32>
    %c0_20 = arith.constant 0 : index
    %c0_21 = arith.constant 0 : index
    %41 = vector.load %arg7[%c0_20, %c0_21] : memref<1x128xf32, #tpu.memory_space<vmem>>, vector<1x128xf32>
    %42 = vector.broadcast %41 : vector<1x128xf32> to vector<8x128xf32>
    %43 = arith.addf %40, %42 : vector<8x128xf32>
    %c0_22 = arith.constant 0 : index
    %c0_23 = arith.constant 0 : index
    %44 = vector.load %arg8[%c0_22, %c0_23] : memref<128x256xf32, #tpu.memory_space<vmem>>, vector<128x256xf32>
    %cst_24 = arith.constant dense<0.000000e+00> : vector<8x256xf32>
    %45 = tpu.matmul %43, %44, %cst_24 {dimension_numbers = #tpu.dot_dimension_numbers<[1], [0], [0], [1], [0, 0, 1, 1], [], []>} : vector<8x128xf32>, vector<128x256xf32>, vector<8x256xf32> -> vector<8x256xf32>
    %c0_25 = arith.constant 0 : index
    %c0_26 = arith.constant 0 : index
    %46 = vector.load %arg9[%c0_25, %c0_26] : memref<1x256xf32, #tpu.memory_space<vmem>>, vector<1x256xf32>
    %47 = vector.broadcast %46 : vector<1x256xf32> to vector<8x256xf32>
    %48 = arith.addf %45, %47 : vector<8x256xf32>
    %49 = vector.extract_strided_slice %48 {offsets = [0, 0], sizes = [8, 128], strides = [1, 1]} : vector<8x256xf32> to vector<8x128xf32>
    %cst_27 = arith.constant 0.000000e+00 : f32
    %50 = vector.broadcast %cst_27 : f32 to vector<8x128xf32>
    %51 = arith.maximumf %49, %50 : vector<8x128xf32>
    %52 = vector.extract_strided_slice %48 {offsets = [0, 128], sizes = [8, 128], strides = [1, 1]} : vector<8x256xf32> to vector<8x128xf32>
    %c0_28 = arith.constant 0 : index
    %c0_29 = arith.constant 0 : index
    %53 = vector.load %arg10[%c0_28, %c0_29] : memref<128x128xf32, #tpu.memory_space<vmem>>, vector<128x128xf32>
    %cst_30 = arith.constant dense<0.000000e+00> : vector<8x128xf32>
    %54 = tpu.matmul %51, %53, %cst_30 {dimension_numbers = #tpu.dot_dimension_numbers<[1], [0], [0], [1], [0, 0, 1, 1], [], []>} : vector<8x128xf32>, vector<128x128xf32>, vector<8x128xf32> -> vector<8x128xf32>
    %c0_31 = arith.constant 0 : index
    %c0_32 = arith.constant 0 : index
    %55 = vector.load %arg11[%c0_31, %c0_32] : memref<1x128xf32, #tpu.memory_space<vmem>>, vector<1x128xf32>
    %56 = vector.broadcast %55 : vector<1x128xf32> to vector<8x128xf32>
    %57 = arith.addf %54, %56 : vector<8x128xf32>
    %58 = arith.addf %57, %52 : vector<8x128xf32>
    %cst_33 = arith.constant dense<0.000000e+00> : vector<8xf32>
    %59 = vector.multi_reduction <add>, %58, %cst_33 [1] : vector<8x128xf32> to vector<8xf32>
    %60 = vector.shape_cast %59 : vector<8xf32> to vector<8x1xf32>
    %cst_34 = arith.constant 6.250000e-02 : f32
    %61 = vector.broadcast %cst_34 : f32 to vector<8x1xf32>
    %62 = arith.mulf %60, %61 : vector<8x1xf32>
    %63 = vector.broadcast %62 : vector<8x1xf32> to vector<8x128xf32>
    %64 = arith.subf %58, %63 : vector<8x128xf32>
    %65 = arith.mulf %64, %64 : vector<8x128xf32>
    %cst_35 = arith.constant dense<0.000000e+00> : vector<8xf32>
    %66 = vector.multi_reduction <add>, %65, %cst_35 [1] : vector<8x128xf32> to vector<8xf32>
    %67 = vector.shape_cast %66 : vector<8xf32> to vector<8x1xf32>
    %68 = arith.mulf %62, %62 : vector<8x1xf32>
    %cst_36 = arith.constant 1.120000e+02 : f32
    %69 = vector.broadcast %cst_36 : f32 to vector<8x1xf32>
    %70 = arith.mulf %69, %68 : vector<8x1xf32>
    %71 = arith.subf %67, %70 : vector<8x1xf32>
    %cst_37 = arith.constant 6.250000e-02 : f32
    %72 = vector.broadcast %cst_37 : f32 to vector<8x1xf32>
    %73 = arith.mulf %71, %72 : vector<8x1xf32>
    %cst_38 = arith.constant 0.000000e+00 : f32
    %74 = vector.broadcast %cst_38 : f32 to vector<8x1xf32>
    %75 = arith.maximumf %73, %74 : vector<8x1xf32>
    %cst_39 = arith.constant 9.99999974E-6 : f32
    %76 = vector.broadcast %cst_39 : f32 to vector<8x1xf32>
    %77 = arith.addf %75, %76 : vector<8x1xf32>
    %78 = math.rsqrt %77 : vector<8x1xf32>
    %79 = vector.broadcast %78 : vector<8x1xf32> to vector<8x128xf32>
    %80 = arith.mulf %64, %79 : vector<8x128xf32>
    %c0_40 = arith.constant 0 : index
    %c0_41 = arith.constant 0 : index
    %81 = vector.load %arg12[%c0_40, %c0_41] : memref<1x128xf32, #tpu.memory_space<vmem>>, vector<1x128xf32>
    %82 = vector.broadcast %81 : vector<1x128xf32> to vector<8x128xf32>
    %83 = arith.mulf %80, %82 : vector<8x128xf32>
    %c0_42 = arith.constant 0 : index
    %c0_43 = arith.constant 0 : index
    %84 = vector.load %arg13[%c0_42, %c0_43] : memref<1x128xf32, #tpu.memory_space<vmem>>, vector<1x128xf32>
    %85 = vector.broadcast %84 : vector<1x128xf32> to vector<8x128xf32>
    %86 = arith.addf %83, %85 : vector<8x128xf32>
    %c0_44 = arith.constant 0 : index
    %c0_45 = arith.constant 0 : index
    %87 = vector.load %arg14[%c0_44, %c0_45] : memref<128x256xf32, #tpu.memory_space<vmem>>, vector<128x256xf32>
    %cst_46 = arith.constant dense<0.000000e+00> : vector<8x256xf32>
    %88 = tpu.matmul %86, %87, %cst_46 {dimension_numbers = #tpu.dot_dimension_numbers<[1], [0], [0], [1], [0, 0, 1, 1], [], []>} : vector<8x128xf32>, vector<128x256xf32>, vector<8x256xf32> -> vector<8x256xf32>
    %c0_47 = arith.constant 0 : index
    %c0_48 = arith.constant 0 : index
    %89 = vector.load %arg15[%c0_47, %c0_48] : memref<1x256xf32, #tpu.memory_space<vmem>>, vector<1x256xf32>
    %90 = vector.broadcast %89 : vector<1x256xf32> to vector<8x256xf32>
    %91 = arith.addf %88, %90 : vector<8x256xf32>
    %92 = vector.extract_strided_slice %91 {offsets = [0, 0], sizes = [8, 128], strides = [1, 1]} : vector<8x256xf32> to vector<8x128xf32>
    %cst_49 = arith.constant 0.000000e+00 : f32
    %93 = vector.broadcast %cst_49 : f32 to vector<8x128xf32>
    %94 = arith.maximumf %92, %93 : vector<8x128xf32>
    %95 = vector.extract_strided_slice %91 {offsets = [0, 128], sizes = [8, 128], strides = [1, 1]} : vector<8x256xf32> to vector<8x128xf32>
    %c0_50 = arith.constant 0 : index
    %c0_51 = arith.constant 0 : index
    %96 = vector.load %arg16[%c0_50, %c0_51] : memref<128x128xf32, #tpu.memory_space<vmem>>, vector<128x128xf32>
    %cst_52 = arith.constant dense<0.000000e+00> : vector<8x128xf32>
    %97 = tpu.matmul %94, %96, %cst_52 {dimension_numbers = #tpu.dot_dimension_numbers<[1], [0], [0], [1], [0, 0, 1, 1], [], []>} : vector<8x128xf32>, vector<128x128xf32>, vector<8x128xf32> -> vector<8x128xf32>
    %c0_53 = arith.constant 0 : index
    %c0_54 = arith.constant 0 : index
    %98 = vector.load %arg17[%c0_53, %c0_54] : memref<1x128xf32, #tpu.memory_space<vmem>>, vector<1x128xf32>
    %99 = vector.broadcast %98 : vector<1x128xf32> to vector<8x128xf32>
    %100 = arith.addf %97, %99 : vector<8x128xf32>
    %101 = arith.addf %100, %95 : vector<8x128xf32>
    %cst_55 = arith.constant dense<0.000000e+00> : vector<8xf32>
    %102 = vector.multi_reduction <add>, %101, %cst_55 [1] : vector<8x128xf32> to vector<8xf32>
    %103 = vector.shape_cast %102 : vector<8xf32> to vector<8x1xf32>
    %cst_56 = arith.constant 5.000000e-02 : f32
    %104 = vector.broadcast %cst_56 : f32 to vector<8x1xf32>
    %105 = arith.mulf %103, %104 : vector<8x1xf32>
    %106 = vector.broadcast %105 : vector<8x1xf32> to vector<8x128xf32>
    %107 = arith.subf %101, %106 : vector<8x128xf32>
    %108 = arith.mulf %107, %107 : vector<8x128xf32>
    %cst_57 = arith.constant dense<0.000000e+00> : vector<8xf32>
    %109 = vector.multi_reduction <add>, %108, %cst_57 [1] : vector<8x128xf32> to vector<8xf32>
    %110 = vector.shape_cast %109 : vector<8xf32> to vector<8x1xf32>
    %111 = arith.mulf %105, %105 : vector<8x1xf32>
    %cst_58 = arith.constant 1.080000e+02 : f32
    %112 = vector.broadcast %cst_58 : f32 to vector<8x1xf32>
    %113 = arith.mulf %112, %111 : vector<8x1xf32>
    %114 = arith.subf %110, %113 : vector<8x1xf32>
    %cst_59 = arith.constant 5.000000e-02 : f32
    %115 = vector.broadcast %cst_59 : f32 to vector<8x1xf32>
    %116 = arith.mulf %114, %115 : vector<8x1xf32>
    %cst_60 = arith.constant 0.000000e+00 : f32
    %117 = vector.broadcast %cst_60 : f32 to vector<8x1xf32>
    %118 = arith.maximumf %116, %117 : vector<8x1xf32>
    %cst_61 = arith.constant 9.99999974E-6 : f32
    %119 = vector.broadcast %cst_61 : f32 to vector<8x1xf32>
    %120 = arith.addf %118, %119 : vector<8x1xf32>
    %121 = math.rsqrt %120 : vector<8x1xf32>
    %122 = vector.broadcast %121 : vector<8x1xf32> to vector<8x128xf32>
    %123 = arith.mulf %107, %122 : vector<8x128xf32>
    %c0_62 = arith.constant 0 : index
    %c0_63 = arith.constant 0 : index
    %124 = vector.load %arg18[%c0_62, %c0_63] : memref<1x128xf32, #tpu.memory_space<vmem>>, vector<1x128xf32>
    %125 = vector.broadcast %124 : vector<1x128xf32> to vector<8x128xf32>
    %126 = arith.mulf %123, %125 : vector<8x128xf32>
    %c0_64 = arith.constant 0 : index
    %c0_65 = arith.constant 0 : index
    %127 = vector.load %arg19[%c0_64, %c0_65] : memref<1x128xf32, #tpu.memory_space<vmem>>, vector<1x128xf32>
    %128 = vector.broadcast %127 : vector<1x128xf32> to vector<8x128xf32>
    %129 = arith.addf %126, %128 : vector<8x128xf32>
    %c0_66 = arith.constant 0 : index
    %c0_67 = arith.constant 0 : index
    %130 = vector.load %arg20[%c0_66, %c0_67] : memref<128x256xf32, #tpu.memory_space<vmem>>, vector<128x256xf32>
    %cst_68 = arith.constant dense<0.000000e+00> : vector<8x256xf32>
    %131 = tpu.matmul %129, %130, %cst_68 {dimension_numbers = #tpu.dot_dimension_numbers<[1], [0], [0], [1], [0, 0, 1, 1], [], []>} : vector<8x128xf32>, vector<128x256xf32>, vector<8x256xf32> -> vector<8x256xf32>
    %c0_69 = arith.constant 0 : index
    %c0_70 = arith.constant 0 : index
    %132 = vector.load %arg21[%c0_69, %c0_70] : memref<1x256xf32, #tpu.memory_space<vmem>>, vector<1x256xf32>
    %133 = vector.broadcast %132 : vector<1x256xf32> to vector<8x256xf32>
    %134 = arith.addf %131, %133 : vector<8x256xf32>
    %135 = vector.extract_strided_slice %134 {offsets = [0, 0], sizes = [8, 128], strides = [1, 1]} : vector<8x256xf32> to vector<8x128xf32>
    %cst_71 = arith.constant 0.000000e+00 : f32
    %136 = vector.broadcast %cst_71 : f32 to vector<8x128xf32>
    %137 = arith.maximumf %135, %136 : vector<8x128xf32>
    %138 = vector.extract_strided_slice %134 {offsets = [0, 128], sizes = [8, 128], strides = [1, 1]} : vector<8x256xf32> to vector<8x128xf32>
    %c0_72 = arith.constant 0 : index
    %c0_73 = arith.constant 0 : index
    %139 = vector.load %arg22[%c0_72, %c0_73] : memref<128x128xf32, #tpu.memory_space<vmem>>, vector<128x128xf32>
    %cst_74 = arith.constant dense<0.000000e+00> : vector<8x128xf32>
    %140 = tpu.matmul %137, %139, %cst_74 {dimension_numbers = #tpu.dot_dimension_numbers<[1], [0], [0], [1], [0, 0, 1, 1], [], []>} : vector<8x128xf32>, vector<128x128xf32>, vector<8x128xf32> -> vector<8x128xf32>
    %c0_75 = arith.constant 0 : index
    %c0_76 = arith.constant 0 : index
    %141 = vector.load %arg23[%c0_75, %c0_76] : memref<1x128xf32, #tpu.memory_space<vmem>>, vector<1x128xf32>
    %142 = vector.broadcast %141 : vector<1x128xf32> to vector<8x128xf32>
    %143 = arith.addf %140, %142 : vector<8x128xf32>
    %144 = arith.addf %143, %138 : vector<8x128xf32>
    %cst_77 = arith.constant dense<0.000000e+00> : vector<8xf32>
    %145 = vector.multi_reduction <add>, %144, %cst_77 [1] : vector<8x128xf32> to vector<8xf32>
    %146 = vector.shape_cast %145 : vector<8xf32> to vector<8x1xf32>
    %cst_78 = arith.constant 3.125000e-02 : f32
    %147 = vector.broadcast %cst_78 : f32 to vector<8x1xf32>
    %148 = arith.mulf %146, %147 : vector<8x1xf32>
    %149 = vector.broadcast %148 : vector<8x1xf32> to vector<8x128xf32>
    %150 = arith.subf %144, %149 : vector<8x128xf32>
    %151 = arith.mulf %150, %150 : vector<8x128xf32>
    %cst_79 = arith.constant dense<0.000000e+00> : vector<8xf32>
    %152 = vector.multi_reduction <add>, %151, %cst_79 [1] : vector<8x128xf32> to vector<8xf32>
    %153 = vector.shape_cast %152 : vector<8xf32> to vector<8x1xf32>
    %154 = arith.mulf %148, %148 : vector<8x1xf32>
    %cst_80 = arith.constant 9.600000e+01 : f32
    %155 = vector.broadcast %cst_80 : f32 to vector<8x1xf32>
    %156 = arith.mulf %155, %154 : vector<8x1xf32>
    %157 = arith.subf %153, %156 : vector<8x1xf32>
    %cst_81 = arith.constant 3.125000e-02 : f32
    %158 = vector.broadcast %cst_81 : f32 to vector<8x1xf32>
    %159 = arith.mulf %157, %158 : vector<8x1xf32>
    %cst_82 = arith.constant 0.000000e+00 : f32
    %160 = vector.broadcast %cst_82 : f32 to vector<8x1xf32>
    %161 = arith.maximumf %159, %160 : vector<8x1xf32>
    %cst_83 = arith.constant 9.99999974E-6 : f32
    %162 = vector.broadcast %cst_83 : f32 to vector<8x1xf32>
    %163 = arith.addf %161, %162 : vector<8x1xf32>
    %164 = math.rsqrt %163 : vector<8x1xf32>
    %165 = vector.broadcast %164 : vector<8x1xf32> to vector<8x128xf32>
    %166 = arith.mulf %150, %165 : vector<8x128xf32>
    %c0_84 = arith.constant 0 : index
    %c0_85 = arith.constant 0 : index
    %167 = vector.load %arg24[%c0_84, %c0_85] : memref<1x128xf32, #tpu.memory_space<vmem>>, vector<1x128xf32>
    %168 = vector.broadcast %167 : vector<1x128xf32> to vector<8x128xf32>
    %169 = arith.mulf %166, %168 : vector<8x128xf32>
    %c0_86 = arith.constant 0 : index
    %c0_87 = arith.constant 0 : index
    %170 = vector.load %arg25[%c0_86, %c0_87] : memref<1x128xf32, #tpu.memory_space<vmem>>, vector<1x128xf32>
    %171 = vector.broadcast %170 : vector<1x128xf32> to vector<8x128xf32>
    %172 = arith.addf %169, %171 : vector<8x128xf32>
    %c0_88 = arith.constant 0 : index
    %c0_89 = arith.constant 0 : index
    %173 = vector.load %arg26[%c0_88, %c0_89] : memref<8x128xf32, #tpu.memory_space<vmem>>, vector<8x128xf32>
    tpu.vector_store %arg26[%c0_88, %c0_89], %172 {strides = array<i32>} : memref<8x128xf32, #tpu.memory_space<vmem>>, vector<8x128xf32>,
    return
  }
  func.func @transform_0(%arg0: i32) -> (i32, i32) {
    %c0_i32 = arith.constant 0 : i32
    %c0_i32_0 = arith.constant 0 : i32
    return %arg0, %c0_i32 : i32, i32
  }
  func.func @transform_1(%arg0: i32) -> (i32, i32) {
    %c0_i32 = arith.constant 0 : i32
    %c0_i32_0 = arith.constant 0 : i32
    %c0_i32_1 = arith.constant 0 : i32
    return %c0_i32, %c0_i32_0 : i32, i32
  }
  func.func @transform_2(%arg0: i32) -> (i32, i32) {
    %c0_i32 = arith.constant 0 : i32
    %c0_i32_0 = arith.constant 0 : i32
    %c0_i32_1 = arith.constant 0 : i32
    return %c0_i32, %c0_i32_0 : i32, i32
  }
  func.func @transform_3(%arg0: i32) -> (i32, i32) {
    %c0_i32 = arith.constant 0 : i32
    %c0_i32_0 = arith.constant 0 : i32
    %c0_i32_1 = arith.constant 0 : i32
    return %c0_i32, %c0_i32_0 : i32, i32
  }
  func.func @transform_4(%arg0: i32) -> (i32, i32) {
    %c0_i32 = arith.constant 0 : i32
    %c0_i32_0 = arith.constant 0 : i32
    %c0_i32_1 = arith.constant 0 : i32
    return %c0_i32, %c0_i32_0 : i32, i32
  }
  func.func @transform_5(%arg0: i32) -> (i32, i32) {
    %c0_i32 = arith.constant 0 : i32
    %c0_i32_0 = arith.constant 0 : i32
    %c0_i32_1 = arith.constant 0 : i32
    return %c0_i32, %c0_i32_0 : i32, i32
  }
  func.func @transform_6(%arg0: i32) -> (i32, i32) {
    %c0_i32 = arith.constant 0 : i32
    %c0_i32_0 = arith.constant 0 : i32
    %c0_i32_1 = arith.constant 0 : i32
    return %c0_i32, %c0_i32_0 : i32, i32
  }
  func.func @transform_7(%arg0: i32) -> (i32, i32) {
    %c0_i32 = arith.constant 0 : i32
    %c0_i32_0 = arith.constant 0 : i32
    %c0_i32_1 = arith.constant 0 : i32
    return %c0_i32, %c0_i32_0 : i32, i32
  }
  func.func @transform_8(%arg0: i32) -> (i32, i32) {
    %c0_i32 = arith.constant 0 : i32
    %c0_i32_0 = arith.constant 0 : i32
    %c0_i32_1 = arith.constant 0 : i32
    return %c0_i32, %c0_i32_0 : i32, i32
  }
  func.func @transform_9(%arg0: i32) -> (i32, i32) {
    %c0_i32 = arith.constant 0 : i32
    %c0_i32_0 = arith.constant 0 : i32
    %c0_i32_1 = arith.constant 0 : i32
    return %c0_i32, %c0_i32_0 : i32, i32
  }
  func.func @transform_10(%arg0: i32) -> (i32, i32) {
    %c0_i32 = arith.constant 0 : i32
    %c0_i32_0 = arith.constant 0 : i32
    %c0_i32_1 = arith.constant 0 : i32
    return %c0_i32, %c0_i32_0 : i32, i32
  }
  func.func @transform_11(%arg0: i32) -> (i32, i32) {
    %c0_i32 = arith.constant 0 : i32
    %c0_i32_0 = arith.constant 0 : i32
    %c0_i32_1 = arith.constant 0 : i32
    return %c0_i32, %c0_i32_0 : i32, i32
  }
  func.func @transform_12(%arg0: i32) -> (i32, i32) {
    %c0_i32 = arith.constant 0 : i32
    %c0_i32_0 = arith.constant 0 : i32
    %c0_i32_1 = arith.constant 0 : i32
    return %c0_i32, %c0_i32_0 : i32, i32
  }
  func.func @transform_13(%arg0: i32) -> (i32, i32) {
    %c0_i32 = arith.constant 0 : i32
    %c0_i32_0 = arith.constant 0 : i32
    %c0_i32_1 = arith.constant 0 : i32
    return %c0_i32, %c0_i32_0 : i32, i32
  }
  func.func @transform_14(%arg0: i32) -> (i32, i32) {
    %c0_i32 = arith.constant 0 : i32
    %c0_i32_0 = arith.constant 0 : i32
    %c0_i32_1 = arith.constant 0 : i32
    return %c0_i32, %c0_i32_0 : i32, i32
  }
  func.func @transform_15(%arg0: i32) -> (i32, i32) {
    %c0_i32 = arith.constant 0 : i32
    %c0_i32_0 = arith.constant 0 : i32
    %c0_i32_1 = arith.constant 0 : i32
    return %c0_i32, %c0_i32_0 : i32, i32
  }
  func.func @transform_16(%arg0: i32) -> (i32, i32) {
    %c0_i32 = arith.constant 0 : i32
    %c0_i32_0 = arith.constant 0 : i32
    %c0_i32_1 = arith.constant 0 : i32
    return %c0_i32, %c0_i32_0 : i32, i32
  }
  func.func @transform_17(%arg0: i32) -> (i32, i32) {
    %c0_i32 = arith.constant 0 : i32
    %c0_i32_0 = arith.constant 0 : i32
    %c0_i32_1 = arith.constant 0 : i32
    return %c0_i32, %c0_i32_0 : i32, i32
  }
  func.func @transform_18(%arg0: i32) -> (i32, i32) {
    %c0_i32 = arith.constant 0 : i32
    %c0_i32_0 = arith.constant 0 : i32
    %c0_i32_1 = arith.constant 0 : i32
    return %c0_i32, %c0_i32_0 : i32, i32
  }
  func.func @transform_19(%arg0: i32) -> (i32, i32) {
    %c0_i32 = arith.constant 0 : i32
    %c0_i32_0 = arith.constant 0 : i32
    %c0_i32_1 = arith.constant 0 : i32
    return %c0_i32, %c0_i32_0 : i32, i32
  }
  func.func @transform_20(%arg0: i32) -> (i32, i32) {
    %c0_i32 = arith.constant 0 : i32
    %c0_i32_0 = arith.constant 0 : i32
    %c0_i32_1 = arith.constant 0 : i32
    return %c0_i32, %c0_i32_0 : i32, i32
  }
  func.func @transform_21(%arg0: i32) -> (i32, i32) {
    %c0_i32 = arith.constant 0 : i32
    %c0_i32_0 = arith.constant 0 : i32
    %c0_i32_1 = arith.constant 0 : i32
    return %c0_i32, %c0_i32_0 : i32, i32
  }
  func.func @transform_22(%arg0: i32) -> (i32, i32) {
    %c0_i32 = arith.constant 0 : i32
    %c0_i32_0 = arith.constant 0 : i32
    %c0_i32_1 = arith.constant 0 : i32
    return %c0_i32, %c0_i32_0 : i32, i32
  }
  func.func @transform_23(%arg0: i32) -> (i32, i32) {
    %c0_i32 = arith.constant 0 : i32
    %c0_i32_0 = arith.constant 0 : i32
    %c0_i32_1 = arith.constant 0 : i32
    return %c0_i32, %c0_i32_0 : i32, i32
  }
  func.func @transform_24(%arg0: i32) -> (i32, i32) {
    %c0_i32 = arith.constant 0 : i32
    %c0_i32_0 = arith.constant 0 : i32
    %c0_i32_1 = arith.constant 0 : i32
    return %c0_i32, %c0_i32_0 : i32, i32
  }
  func.func @transform_25(%arg0: i32) -> (i32, i32) {
    %c0_i32 = arith.constant 0 : i32
    %c0_i32_0 = arith.constant 0 : i32
    return %arg0, %c0_i32 : i32, i32
  }
}

</mosaic_0001>

<llo_original>
// kernel: tpu_custom_call.1
$region0: #{tpu_custom_call.1}
  #allocation0 [shape = 'u32[]', space=smem, size = 0x4, offset = 0x4, fixed_abs, tag = 'smem constant byte address 0x4 - core index']
  #allocation1 [shape = 'u32[72,128]{1,0:T(1,128)}', space=vmem, size = 0x9000, scoped, tag = 'internal scratch']
  %s0 = inlined_call_operand.hbm [shape: f32[8,128], index: 0, kind: input, shape index: {}]
  %s1 = inlined_call_operand.hbm [shape: f32[128,256], index: 1, kind: input, shape index: {}]
  %s2 = inlined_call_operand.hbm [shape: f32[1,256], index: 2, kind: input, shape index: {}]
  %s3 = inlined_call_operand.hbm [shape: f32[128,128], index: 3, kind: input, shape index: {}]
  %s4 = inlined_call_operand.hbm [shape: f32[1,128], index: 4, kind: input, shape index: {}]
  %s5 = inlined_call_operand.hbm [shape: f32[1,128], index: 5, kind: input, shape index: {}]
  %s6 = inlined_call_operand.hbm [shape: f32[1,128], index: 6, kind: input, shape index: {}]
  %s7 = inlined_call_operand.hbm [shape: f32[128,256], index: 7, kind: input, shape index: {}]
  %s8 = inlined_call_operand.vmem [shape: f32[1,256], index: 8, kind: input, shape index: {}]
  %s9 = inlined_call_operand.hbm [shape: f32[128,128], index: 9, kind: input, shape index: {}]
  %s10 = inlined_call_operand.vmem [shape: f32[1,128], index: 10, kind: input, shape index: {}]
  %s11 = inlined_call_operand.vmem [shape: f32[1,128], index: 11, kind: input, shape index: {}]
  %s12 = inlined_call_operand.vmem [shape: f32[1,128], index: 12, kind: input, shape index: {}]
  %s13 = inlined_call_operand.hbm [shape: f32[128,256], index: 13, kind: input, shape index: {}]
  %s14 = inlined_call_operand.vmem [shape: f32[1,256], index: 14, kind: input, shape index: {}]
  %s15 = inlined_call_operand.hbm [shape: f32[128,128], index: 15, kind: input, shape index: {}]
  %s16 = inlined_call_operand.vmem [shape: f32[1,128], index: 16, kind: input, shape index: {}]
  %s17 = inlined_call_operand.vmem [shape: f32[1,128], index: 17, kind: input, shape index: {}]
  %s18 = inlined_call_operand.vmem [shape: f32[1,128], index: 18, kind: input, shape index: {}]
  %s19 = inlined_call_operand.hbm [shape: f32[128,256], index: 19, kind: input, shape index: {}]
  %s20 = inlined_call_operand.vmem [shape: f32[1,256], index: 20, kind: input, shape index: {}]
  %s21 = inlined_call_operand.hbm [shape: f32[128,128], index: 21, kind: input, shape index: {}]
  %s22 = inlined_call_operand.vmem [shape: f32[1,128], index: 22, kind: input, shape index: {}]
  %s23 = inlined_call_operand.vmem [shape: f32[1,128], index: 23, kind: input, shape index: {}]
  %s24 = inlined_call_operand.vmem [shape: f32[1,128], index: 24, kind: input, shape index: {}]
  %s25 = inlined_call_operand.hbm [shape: f32[8,128], index: 25, kind: output, shape index: {}]
  %s26 = sld [smem:[#allocation0]]
  $region162: #{tpu_custom_call.1} parent=0
    _
  %s28 = ssub.s32 1, %s26
  %s29 = scalar_select 0, %s28, %s26
  $region1: #{tpu_custom_call.1} parent=0
    #allocation2 [shape = 'u8[4096]{0}', space=vmem, size = 0x1000, scoped, tag = 'input window, operand 0, single buffered']
    #allocation3 [shape = 's32[1]{0}', space=sflag, size = 0x4, scoped, tag = 'scoped memory for tpu_custom_call.1']
    #allocation4 [shape = 's32[1]{0}', space=sflag, size = 0x4, scoped, tag = 'scoped memory for tpu_custom_call.1']
    #allocation5 [shape = 'u8[131072]{0}', space=vmem, size = 0x20000, scoped, tag = 'input window, operand 1, single buffered']
    #allocation6 [shape = 's32[1]{0}', space=sflag, size = 0x4, scoped, tag = 'scoped memory for tpu_custom_call.1']
    #allocation7 [shape = 'u8[1024]{0}', space=vmem, size = 0x400, scoped, tag = 'input window, operand 2, single buffered']
    #allocation8 [shape = 'u8[65536]{0}', space=vmem, size = 0x10000, scoped, tag = 'input window, operand 3, single buffered']
    #allocation9 [shape = 's32[1]{0}', space=sflag, size = 0x4, scoped, tag = 'scoped memory for tpu_custom_call.1']
    #allocation10 [shape = 'u8[512]{0}', space=vmem, size = 0x400, scoped, tag = 'input window, operand 4, single buffered']
    #allocation11 [shape = 'u8[512]{0}', space=vmem, size = 0x400, scoped, tag = 'input window, operand 5, single buffered']
    #allocation12 [shape = 's32[1]{0}', space=sflag, size = 0x4, scoped, tag = 'scoped memory for tpu_custom_call.1']
    #allocation13 [shape = 'u8[512]{0}', space=vmem, size = 0x400, scoped, tag = 'input window, operand 6, single buffered']
    #allocation14 [shape = 'u8[131072]{0}', space=vmem, size = 0x20000, scoped, tag = 'input window, operand 7, single buffered']
    #allocation15 [shape = 's32[1]{0}', space=sflag, size = 0x4, scoped, tag = 'scoped memory for tpu_custom_call.1']
    #allocation16 [shape = 'u8[65536]{0}', space=vmem, size = 0x10000, scoped, tag = 'input window, operand 9, single buffered']
    #allocation17 [shape = 'u8[131072]{0}', space=vmem, size = 0x20000, scoped, tag = 'input window, operand 13, single buffered']
    #allocation18 [shape = 's32[1]{0}', space=sflag, size = 0x4, scoped, tag = 'scoped memory for tpu_custom_call.1']
    #allocation19 [shape = 'u8[65536]{0}', space=vmem, size = 0x10000, scoped, tag = 'input window, operand 15, single buffered']
    #allocation20 [shape = 'u8[131072]{0}', space=vmem, size = 0x20000, scoped, tag = 'input window, operand 19, single buffered']
    #allocation21 [shape = 's32[1]{0}', space=sflag, size = 0x4, scoped, tag = 'scoped memory for tpu_custom_call.1']
    #allocation22 [shape = 'u8[65536]{0}', space=vmem, size = 0x10000, scoped, tag = 'input window, operand 21, single buffered']
    #allocation23 [shape = 'u8[4096]{0}', space=vmem, size = 0x1000, scoped, tag = 'output window, operand 0, single buffered']
    %30 = vsyncpa [#allocation3], 0
    %31 = vsyncpa [#allocation6], 0
    %32 = vsyncpa [#allocation9], 0
    %33 = vsyncpa [#allocation12], 0
    %34 = vsyncpa [#allocation15], 0
    %35 = vsyncpa [#allocation18], 0
    %36 = vsyncpa [#allocation21], 0
    %37 = vsyncpa [#allocation4], 0
    // Predicated region
    $region2: #{tpu_custom_call.1} parent=1 // pred_check
      _
    $region3: #{tpu_custom_call.1} parent=1 // pred_check_branch
      %39 = sbr.rel (0) target = $region5
    $region4: #{tpu_custom_call.1} parent=1 // pred_region
      %41 = vsyncadd [#allocation3], 0
      %s43 = sshll.u32 %s0, 4
      %s44 = int_to_ptr.hbm [resolvable:$true] %s43
      %s45 = sshll.u32 [#allocation2], 4
      %s46 = int_to_ptr.vmem [resolvable:$true] %s45
      %48 = dma.hbm_to_vmem [thread:$0]  %s44, 128, %s46, [#allocation3]
    $region5: #{tpu_custom_call.1} parent=1 // pred_fallthru
      _
    // Predicated region
    $region6: #{tpu_custom_call.1} parent=1 // pred_check
      _
    $region7: #{tpu_custom_call.1} parent=1 // pred_check_branch
      %50 = sbr.rel (0) target = $region9
    $region8: #{tpu_custom_call.1} parent=1 // pred_region
      %52 = vsyncadd [#allocation6], 0
      %s53 = sshll.u32 %s1, 4
      %s54 = int_to_ptr.hbm [resolvable:$true] %s53
      %s55 = sshll.u32 [#allocation5], 4
      %s56 = int_to_ptr.vmem [resolvable:$true] %s55
      %61 = dma.hbm_to_vmem [thread:$0]  %s54, 4096, %s56, [#allocation6], 256, 256, 16
    $region9: #{tpu_custom_call.1} parent=1 // pred_fallthru
      _
    // Predicated region
    $region10: #{tpu_custom_call.1} parent=1 // pred_check
      _
    $region11: #{tpu_custom_call.1} parent=1 // pred_check_branch
      %63 = sbr.rel (0) target = $region13
    $region12: #{tpu_custom_call.1} parent=1 // pred_region
      %65 = vsyncadd [#allocation6], 0
      %s67 = sshll.u32 %s2, 4
      %s68 = int_to_ptr.hbm [resolvable:$true] %s67
      %s69 = sshll.u32 [#allocation7], 4
      %s70 = int_to_ptr.vmem [resolvable:$true] %s69
      %72 = dma.hbm_to_vmem [thread:$0]  %s68, 32, %s70, [#allocation6]
    $region13: #{tpu_custom_call.1} parent=1 // pred_fallthru
      _
    // Predicated region
    $region14: #{tpu_custom_call.1} parent=1 // pred_check
      _
    $region15: #{tpu_custom_call.1} parent=1 // pred_check_branch
      %74 = sbr.rel (0) target = $region17
    $region16: #{tpu_custom_call.1} parent=1 // pred_region
      %76 = vsyncadd [#allocation9], 0
      %s77 = sshll.u32 %s3, 4
      %s78 = int_to_ptr.hbm [resolvable:$true] %s77
      %s79 = sshll.u32 [#allocation8], 4
      %s80 = int_to_ptr.vmem [resolvable:$true] %s79
      %85 = dma.hbm_to_vmem [thread:$0]  %s78, 2048, %s80, [#allocation9], 128, 128, 8
    $region17: #{tpu_custom_call.1} parent=1 // pred_fallthru
      _
    // Predicated region
    $region18: #{tpu_custom_call.1} parent=1 // pred_check
      _
    $region19: #{tpu_custom_call.1} parent=1 // pred_check_branch
      %87 = sbr.rel (0) target = $region21
    $region20: #{tpu_custom_call.1} parent=1 // pred_region
      %89 = vsyncadd [#allocation9], 0
      %s91 = sshll.u32 %s4, 4
      %s92 = int_to_ptr.hbm [resolvable:$true] %s91
      %s93 = sshll.u32 [#allocation10], 4
      %s94 = int_to_ptr.vmem [resolvable:$true] %s93
      %96 = dma.hbm_to_vmem [thread:$0]  %s92, 16, %s94, [#allocation9]
    $region21: #{tpu_custom_call.1} parent=1 // pred_fallthru
      _
    // Predicated region
    $region22: #{tpu_custom_call.1} parent=1 // pred_check
      _
    $region23: #{tpu_custom_call.1} parent=1 // pred_check_branch
      %98 = sbr.rel (0) target = $region25
    $region24: #{tpu_custom_call.1} parent=1 // pred_region
      %100 = vsyncadd [#allocation12], 0
      %s102 = sshll.u32 %s5, 4
      %s103 = int_to_ptr.hbm [resolvable:$true] %s102
      %s104 = sshll.u32 [#allocation11], 4
      %s105 = int_to_ptr.vmem [resolvable:$true] %s104
      %107 = dma.hbm_to_vmem [thread:$0]  %s103, 16, %s105, [#allocation12]
    $region25: #{tpu_custom_call.1} parent=1 // pred_fallthru
      _
    // Predicated region
    $region26: #{tpu_custom_call.1} parent=1 // pred_check
      _
    $region27: #{tpu_custom_call.1} parent=1 // pred_check_branch
      %109 = sbr.rel (0) target = $region29
    $region28: #{tpu_custom_call.1} parent=1 // pred_region
      %111 = vsyncadd [#allocation12], 0
      %s113 = sshll.u32 %s6, 4
      %s114 = int_to_ptr.hbm [resolvable:$true] %s113
      %s115 = sshll.u32 [#allocation13], 4
      %s116 = int_to_ptr.vmem [resolvable:$true] %s115
      %118 = dma.hbm_to_vmem [thread:$0]  %s114, 16, %s116, [#allocation12]
    $region29: #{tpu_custom_call.1} parent=1 // pred_fallthru
      _
    // Predicated region
    $region30: #{tpu_custom_call.1} parent=1 // pred_check
      _
    $region31: #{tpu_custom_call.1} parent=1 // pred_check_branch
      %120 = sbr.rel (0) target = $region33
    $region32: #{tpu_custom_call.1} parent=1 // pred_region
      %122 = vsyncadd [#allocation15], 0
      %s123 = sshll.u32 %s7, 4
      %s124 = int_to_ptr.hbm [resolvable:$true] %s123
      %s125 = sshll.u32 [#allocation14], 4
      %s126 = int_to_ptr.vmem [resolvable:$true] %s125
      %131 = dma.hbm_to_vmem [thread:$0]  %s124, 4096, %s126, [#allocation15], 256, 256, 16
    $region33: #{tpu_custom_call.1} parent=1 // pred_fallthru
      _
    // Predicated region
    $region34: #{tpu_custom_call.1} parent=1 // pred_check
      _
    $region35: #{tpu_custom_call.1} parent=1 // pred_check_branch
      %133 = sbr.rel (0) target = $region37
    $region36: #{tpu_custom_call.1} parent=1 // pred_region
      _
    $region37: #{tpu_custom_call.1} parent=1 // pred_fallthru
      _
    // Predicated region
    $region38: #{tpu_custom_call.1} parent=1 // pred_check
      _
    $region39: #{tpu_custom_call.1} parent=1 // pred_check_branch
      %135 = sbr.rel (0) target = $region41
    $region40: #{tpu_custom_call.1} parent=1 // pred_region
      %137 = vsyncadd [#allocation15], 0
      %s138 = sshll.u32 %s9, 4
      %s139 = int_to_ptr.hbm [resolvable:$true] %s138
      %s140 = sshll.u32 [#allocation16], 4
      %s141 = int_to_ptr.vmem [resolvable:$true] %s140
      %146 = dma.hbm_to_vmem [thread:$0]  %s139, 2048, %s141, [#allocation15], 128, 128, 8
    $region41: #{tpu_custom_call.1} parent=1 // pred_fallthru
      _
    // Predicated region
    $region42: #{tpu_custom_call.1} parent=1 // pred_check
      _
    $region43: #{tpu_custom_call.1} parent=1 // pred_check_branch
      %148 = sbr.rel (0) target = $region45
    $region44: #{tpu_custom_call.1} parent=1 // pred_region
      _
    $region45: #{tpu_custom_call.1} parent=1 // pred_fallthru
      _
    // Predicated region
    $region46: #{tpu_custom_call.1} parent=1 // pred_check
      _
    $region47: #{tpu_custom_call.1} parent=1 // pred_check_branch
      %150 = sbr.rel (0) target = $region49
    $region48: #{tpu_custom_call.1} parent=1 // pred_region
      _
    $region49: #{tpu_custom_call.1} parent=1 // pred_fallthru
      _
    // Predicated region
    $region50: #{tpu_custom_call.1} parent=1 // pred_check
      _
    $region51: #{tpu_custom_call.1} parent=1 // pred_check_branch
      %152 = sbr.rel (0) target = $region53
    $region52: #{tpu_custom_call.1} parent=1 // pred_region
      _
    $region53: #{tpu_custom_call.1} parent=1 // pred_fallthru
      _
    // Predicated region
    $region54: #{tpu_custom_call.1} parent=1 // pred_check
      _
    $region55: #{tpu_custom_call.1} parent=1 // pred_check_branch
      %154 = sbr.rel (0) target = $region57
    $region56: #{tpu_custom_call.1} parent=1 // pred_region
      %156 = vsyncadd [#allocation18], 0
      %s157 = sshll.u32 %s13, 4
      %s158 = int_to_ptr.hbm [resolvable:$true] %s157
      %s159 = sshll.u32 [#allocation17], 4
      %s160 = int_to_ptr.vmem [resolvable:$true] %s159
      %165 = dma.hbm_to_vmem [thread:$0]  %s158, 4096, %s160, [#allocation18], 256, 256, 16
    $region57: #{tpu_custom_call.1} parent=1 // pred_fallthru
      _
    // Predicated region
    $region58: #{tpu_custom_call.1} parent=1 // pred_check
      _
    $region59: #{tpu_custom_call.1} parent=1 // pred_check_branch
      %167 = sbr.rel (0) target = $region61
    $region60: #{tpu_custom_call.1} parent=1 // pred_region
      _
    $region61: #{tpu_custom_call.1} parent=1 // pred_fallthru
      _
    // Predicated region
    $region62: #{tpu_custom_call.1} parent=1 // pred_check
      _
    $region63: #{tpu_custom_call.1} parent=1 // pred_check_branch
      %169 = sbr.rel (0) target = $region65
    $region64: #{tpu_custom_call.1} parent=1 // pred_region
      %171 = vsyncadd [#allocation18], 0
      %s172 = sshll.u32 %s15, 4
      %s173 = int_to_ptr.hbm [resolvable:$true] %s172
      %s174 = sshll.u32 [#allocation19], 4
      %s175 = int_to_ptr.vmem [resolvable:$true] %s174
      %180 = dma.hbm_to_vmem [thread:$0]  %s173, 2048, %s175, [#allocation18], 128, 128, 8
    $region65: #{tpu_custom_call.1} parent=1 // pred_fallthru
      _
    // Predicated region
    $region66: #{tpu_custom_call.1} parent=1 // pred_check
      _
    $region67: #{tpu_custom_call.1} parent=1 // pred_check_branch
      %182 = sbr.rel (0) target = $region69
    $region68: #{tpu_custom_call.1} parent=1 // pred_region
      _
    $region69: #{tpu_custom_call.1} parent=1 // pred_fallthru
      _
    // Predicated region
    $region70: #{tpu_custom_call.1} parent=1 // pred_check
      _
    $region71: #{tpu_custom_call.1} parent=1 // pred_check_branch
      %184 = sbr.rel (0) target = $region73
    $region72: #{tpu_custom_call.1} parent=1 // pred_region
      _
    $region73: #{tpu_custom_call.1} parent=1 // pred_fallthru
      _
    // Predicated region
    $region74: #{tpu_custom_call.1} parent=1 // pred_check
      _
    $region75: #{tpu_custom_call.1} parent=1 // pred_check_branch
      %186 = sbr.rel (0) target = $region77
    $region76: #{tpu_custom_call.1} parent=1 // pred_region
      _
    $region77: #{tpu_custom_call.1} parent=1 // pred_fallthru
      _
    // Predicated region
    $region78: #{tpu_custom_call.1} parent=1 // pred_check
      _
    $region79: #{tpu_custom_call.1} parent=1 // pred_check_branch
      %188 = sbr.rel (0) target = $region81
    $region80: #{tpu_custom_call.1} parent=1 // pred_region
      %190 = vsyncadd [#allocation21], 0
      %s191 = sshll.u32 %s19, 4
      %s192 = int_to_ptr.hbm [resolvable:$true] %s191
      %s193 = sshll.u32 [#allocation20], 4
      %s194 = int_to_ptr.vmem [resolvable:$true] %s193
      %199 = dma.hbm_to_vmem [thread:$0]  %s192, 4096, %s194, [#allocation21], 256, 256, 16
    $region81: #{tpu_custom_call.1} parent=1 // pred_fallthru
      _
    // Predicated region
    $region82: #{tpu_custom_call.1} parent=1 // pred_check
      _
    $region83: #{tpu_custom_call.1} parent=1 // pred_check_branch
      %201 = sbr.rel (0) target = $region85
    $region84: #{tpu_custom_call.1} parent=1 // pred_region
      _
    $region85: #{tpu_custom_call.1} parent=1 // pred_fallthru
      _
    // Predicated region
    $region86: #{tpu_custom_call.1} parent=1 // pred_check
      _
    $region87: #{tpu_custom_call.1} parent=1 // pred_check_branch
      %203 = sbr.rel (0) target = $region89
    $region88: #{tpu_custom_call.1} parent=1 // pred_region
      %205 = vsyncadd [#allocation21], 0
      %s206 = sshll.u32 %s21, 4
      %s207 = int_to_ptr.hbm [resolvable:$true] %s206
      %s208 = sshll.u32 [#allocation22], 4
      %s209 = int_to_ptr.vmem [resolvable:$true] %s208
      %214 = dma.hbm_to_vmem [thread:$0]  %s207, 2048, %s209, [#allocation21], 128, 128, 8
    $region89: #{tpu_custom_call.1} parent=1 // pred_fallthru
      _
    // Predicated region
    $region90: #{tpu_custom_call.1} parent=1 // pred_check
      _
    $region91: #{tpu_custom_call.1} parent=1 // pred_check_branch
      %216 = sbr.rel (0) target = $region93
    $region92: #{tpu_custom_call.1} parent=1 // pred_region
      _
    $region93: #{tpu_custom_call.1} parent=1 // pred_fallthru
      _
    // Predicated region
    $region94: #{tpu_custom_call.1} parent=1 // pred_check
      _
    $region95: #{tpu_custom_call.1} parent=1 // pred_check_branch
      %218 = sbr.rel (0) target = $region97
    $region96: #{tpu_custom_call.1} parent=1 // pred_region
      _
    $region97: #{tpu_custom_call.1} parent=1 // pred_fallthru
      _
    // Predicated region
    $region98: #{tpu_custom_call.1} parent=1 // pred_check
      _
    $region99: #{tpu_custom_call.1} parent=1 // pred_check_branch
      %220 = sbr.rel (0) target = $region101
    $region100: #{tpu_custom_call.1} parent=1 // pred_region
      _
    $region101: #{tpu_custom_call.1} parent=1 // pred_fallthru
      _
    // Predicated region
    $region102: #{tpu_custom_call.1} parent=1 // pred_check
      _
    $region103: #{tpu_custom_call.1} parent=1 // pred_check_branch
      %222 = sbr.rel (0) target = $region105
    $region104: #{tpu_custom_call.1} parent=1 // pred_region
      %224 = dma.done [#allocation3], 128
    $region105: #{tpu_custom_call.1} parent=1 // pred_fallthru
      _
    // Predicated region
    $region106: #{tpu_custom_call.1} parent=1 // pred_check
      _
    $region107: #{tpu_custom_call.1} parent=1 // pred_check_branch
      %226 = sbr.rel (0) target = $region109
    $region108: #{tpu_custom_call.1} parent=1 // pred_region
      %228 = dma.done [#allocation6], 4096
    $region109: #{tpu_custom_call.1} parent=1 // pred_fallthru
      _
    // Predicated region
    $region110: #{tpu_custom_call.1} parent=1 // pred_check
      _
    $region111: #{tpu_custom_call.1} parent=1 // pred_check_branch
      %230 = sbr.rel (0) target = $region113
    $region112: #{tpu_custom_call.1} parent=1 // pred_region
      %232 = dma.done [#allocation6], 32
    $region113: #{tpu_custom_call.1} parent=1 // pred_fallthru
      _
    // Predicated region
    $region114: #{tpu_custom_call.1} parent=1 // pred_check
      _
    $region115: #{tpu_custom_call.1} parent=1 // pred_check_branch
      %234 = sbr.rel (0) target = $region117
    $region116: #{tpu_custom_call.1} parent=1 // pred_region
      %236 = dma.done [#allocation9], 2048
    $region117: #{tpu_custom_call.1} parent=1 // pred_fallthru
      _
    // Predicated region
    $region118: #{tpu_custom_call.1} parent=1 // pred_check
      _
    $region119: #{tpu_custom_call.1} parent=1 // pred_check_branch
      %238 = sbr.rel (0) target = $region121
    $region120: #{tpu_custom_call.1} parent=1 // pred_region
      %240 = dma.done [#allocation9], 16
    $region121: #{tpu_custom_call.1} parent=1 // pred_fallthru
      _
    // Predicated region
    $region122: #{tpu_custom_call.1} parent=1 // pred_check
      _
    $region123: #{tpu_custom_call.1} parent=1 // pred_check_branch
      %242 = sbr.rel (0) target = $region125
    $region124: #{tpu_custom_call.1} parent=1 // pred_region
      %244 = dma.done [#allocation12], 16
    $region125: #{tpu_custom_call.1} parent=1 // pred_fallthru
      _
    // Predicated region
    $region126: #{tpu_custom_call.1} parent=1 // pred_check
      _
    $region127: #{tpu_custom_call.1} parent=1 // pred_check_branch
      %246 = sbr.rel (0) target = $region129
    $region128: #{tpu_custom_call.1} parent=1 // pred_region
      %248 = dma.done [#allocation12], 16
    $region129: #{tpu_custom_call.1} parent=1 // pred_fallthru
      _
    // Predicated region
    $region130: #{tpu_custom_call.1} parent=1 // pred_check
      _
    $region131: #{tpu_custom_call.1} parent=1 // pred_check_branch
      %250 = sbr.rel (0) target = $region133
    $region132: #{tpu_custom_call.1} parent=1 // pred_region
      %252 = dma.done [#allocation15], 4096
    $region133: #{tpu_custom_call.1} parent=1 // pred_fallthru
      _
    // Predicated region
    $region134: #{tpu_custom_call.1} parent=1 // pred_check
      _
    $region135: #{tpu_custom_call.1} parent=1 // pred_check_branch
      %254 = sbr.rel (0) target = $region137
    $region136: #{tpu_custom_call.1} parent=1 // pred_region
      %256 = dma.done [#allocation15], 2048
    $region137: #{tpu_custom_call.1} parent=1 // pred_fallthru
      _
    // Predicated region
    $region138: #{tpu_custom_call.1} parent=1 // pred_check
      _
    $region139: #{tpu_custom_call.1} parent=1 // pred_check_branch
      %258 = sbr.rel (0) target = $region141
    $region140: #{tpu_custom_call.1} parent=1 // pred_region
      %260 = dma.done [#allocation18], 4096
    $region141: #{tpu_custom_call.1} parent=1 // pred_fallthru
      _
    // Predicated region
    $region142: #{tpu_custom_call.1} parent=1 // pred_check
      _
    $region143: #{tpu_custom_call.1} parent=1 // pred_check_branch
      %262 = sbr.rel (0) target = $region145
    $region144: #{tpu_custom_call.1} parent=1 // pred_region
      %264 = dma.done [#allocation18], 2048
    $region145: #{tpu_custom_call.1} parent=1 // pred_fallthru
      _
    // Predicated region
    $region146: #{tpu_custom_call.1} parent=1 // pred_check
      _
    $region147: #{tpu_custom_call.1} parent=1 // pred_check_branch
      %266 = sbr.rel (0) target = $region149
    $region148: #{tpu_custom_call.1} parent=1 // pred_region
      %268 = dma.done [#allocation21], 4096
    $region149: #{tpu_custom_call.1} parent=1 // pred_fallthru
      _
    // Predicated region
    $region150: #{tpu_custom_call.1} parent=1 // pred_check
      _
    $region151: #{tpu_custom_call.1} parent=1 // pred_check_branch
      %270 = sbr.rel (0) target = $region153
    $region152: #{tpu_custom_call.1} parent=1 // pred_region
      %272 = dma.done [#allocation21], 2048
    $region153: #{tpu_custom_call.1} parent=1 // pred_fallthru
      _
    %v273 = vld [vmem:[#allocation2] sm:$0xff]
    %v274 = vld [vmem:[#allocation5] sm:$0xff]
    %v275 = vld [vmem:[#allocation5 + $0x8] sm:$0xff]
    %v276 = vld [vmem:[#allocation5 + $0x10] sm:$0xff]
    %v277 = vld [vmem:[#allocation5 + $0x18] sm:$0xff]
    %v278 = vld [vmem:[#allocation5 + $0x20] sm:$0xff]
    %v279 = vld [vmem:[#allocation5 + $0x28] sm:$0xff]
    %v280 = vld [vmem:[#allocation5 + $0x30] sm:$0xff]
    %v281 = vld [vmem:[#allocation5 + $0x38] sm:$0xff]
    %v282 = vld [vmem:[#allocation5 + $0x40] sm:$0xff]
    %v283 = vld [vmem:[#allocation5 + $0x48] sm:$0xff]
    %v284 = vld [vmem:[#allocation5 + $0x50] sm:$0xff]
    %v285 = vld [vmem:[#allocation5 + $0x58] sm:$0xff]
    %v286 = vld [vmem:[#allocation5 + $0x60] sm:$0xff]
    %v287 = vld [vmem:[#allocation5 + $0x68] sm:$0xff]
    %v288 = vld [vmem:[#allocation5 + $0x70] sm:$0xff]
    %v289 = vld [vmem:[#allocation5 + $0x78] sm:$0xff]
    %v290 = vld [vmem:[#allocation5 + $0x80] sm:$0xff]
    %v291 = vld [vmem:[#allocation5 + $0x88] sm:$0xff]
    %v292 = vld [vmem:[#allocation5 + $0x90] sm:$0xff]
    %v293 = vld [vmem:[#allocation5 + $0x98] sm:$0xff]
    %v294 = vld [vmem:[#allocation5 + $0xa0] sm:$0xff]
    %v295 = vld [vmem:[#allocation5 + $0xa8] sm:$0xff]
    %v296 = vld [vmem:[#allocation5 + $0xb0] sm:$0xff]
    %v297 = vld [vmem:[#allocation5 + $0xb8] sm:$0xff]
    %v298 = vld [vmem:[#allocation5 + $0xc0] sm:$0xff]
    %v299 = vld [vmem:[#allocation5 + $0xc8] sm:$0xff]
    %v300 = vld [vmem:[#allocation5 + $0xd0] sm:$0xff]
    %v301 = vld [vmem:[#allocation5 + $0xd8] sm:$0xff]
    %v302 = vld [vmem:[#allocation5 + $0xe0] sm:$0xff]
    %v303 = vld [vmem:[#allocation5 + $0xe8] sm:$0xff]
    %v304 = vld [vmem:[#allocation5 + $0xf0] sm:$0xff]
    %v305 = vld [vmem:[#allocation5 + $0xf8] sm:$0xff]
    %v306 = vld [vmem:[#allocation7] sm:$0x3]
    %v308 = vperm.slane %v306, 0
    %v309 = vperm.slane %v306, 1
    %312 = vmatpush.msra.mxu0 %v304
    %313 = vmatpush.msra.mxu0 %v302
    %314 = vmatpush.msra.mxu0 %v300
    %315 = vmatpush.msra.mxu0 %v298
    %316 = vmatpush.msra.mxu0 %v296
    %317 = vmatpush.msra.mxu0 %v294
    %318 = vmatpush.msra.mxu0 %v292
    %319 = vmatpush.msra.mxu0 %v290
    %320 = vmatpush.msra.mxu0 %v288
    %321 = vmatpush.msra.mxu0 %v286
    %322 = vmatpush.msra.mxu0 %v284
    %323 = vmatpush.msra.mxu0 %v282
    %324 = vmatpush.msra.mxu0 %v280
    %325 = vmatpush.msra.mxu0 %v278
    %326 = vmatpush.msra.mxu0 %v276
    %327 = vmatpush.msra.mxu0 %v274
    %328 = vmatmul.f32.gmra.mxu0 %v273
    %v329 = vpop.f32.mrf.mxu0
    %v330 = vadd.f32 %v308, %v329
    %331 = vdwg.mxu0
    %332 = vmatpush.msra.mxu0 %v305
    %333 = vmatpush.msra.mxu0 %v303
    %334 = vmatpush.msra.mxu0 %v301
    %335 = vmatpush.msra.mxu0 %v299
    %336 = vmatpush.msra.mxu0 %v297
    %337 = vmatpush.msra.mxu0 %v295
    %338 = vmatpush.msra.mxu0 %v293
    %339 = vmatpush.msra.mxu0 %v291
    %340 = vmatpush.msra.mxu0 %v289
    %341 = vmatpush.msra.mxu0 %v287
    %342 = vmatpush.msra.mxu0 %v285
    %343 = vmatpush.msra.mxu0 %v283
    %344 = vmatpush.msra.mxu0 %v281
    %345 = vmatpush.msra.mxu0 %v279
    %346 = vmatpush.msra.mxu0 %v277
    %347 = vmatpush.msra.mxu0 %v275
    %348 = vmatmul.f32.gmra.mxu0 %v273
    %v349 = vpop.f32.mrf.mxu0
    %v350 = vadd.f32 %v309, %v349
    %351 = vdwg.mxu0
    %v352 = vmax.f32 %v330, 0.0
    %v353 = vld [vmem:[#allocation8] sm:$0xff]
    %v354 = vld [vmem:[#allocation8 + $0x8] sm:$0xff]
    %v355 = vld [vmem:[#allocation8 + $0x10] sm:$0xff]
    %v356 = vld [vmem:[#allocation8 + $0x18] sm:$0xff]
    %v357 = vld [vmem:[#allocation8 + $0x20] sm:$0xff]
    %v358 = vld [vmem:[#allocation8 + $0x28] sm:$0xff]
    %v359 = vld [vmem:[#allocation8 + $0x30] sm:$0xff]
    %v360 = vld [vmem:[#allocation8 + $0x38] sm:$0xff]
    %v361 = vld [vmem:[#allocation8 + $0x40] sm:$0xff]
    %v362 = vld [vmem:[#allocation8 + $0x48] sm:$0xff]
    %v363 = vld [vmem:[#allocation8 + $0x50] sm:$0xff]
    %v364 = vld [vmem:[#allocation8 + $0x58] sm:$0xff]
    %v365 = vld [vmem:[#allocation8 + $0x60] sm:$0xff]
    %v366 = vld [vmem:[#allocation8 + $0x68] sm:$0xff]
    %v367 = vld [vmem:[#allocation8 + $0x70] sm:$0xff]
    %v368 = vld [vmem:[#allocation8 + $0x78] sm:$0xff]
    %v369 = vld [vmem:[#allocation10] sm:$0x1]
    %v371 = vperm.slane %v369, 0
    %373 = vmatpush.msra.mxu0 %v368
    %374 = vmatpush.msra.mxu0 %v367
    %375 = vmatpush.msra.mxu0 %v366
    %376 = vmatpush.msra.mxu0 %v365
    %377 = vmatpush.msra.mxu0 %v364
    %378 = vmatpush.msra.mxu0 %v363
    %379 = vmatpush.msra.mxu0 %v362
    %380 = vmatpush.msra.mxu0 %v361
    %381 = vmatpush.msra.mxu0 %v360
    %382 = vmatpush.msra.mxu0 %v359
    %383 = vmatpush.msra.mxu0 %v358
    %384 = vmatpush.msra.mxu0 %v357
    %385 = vmatpush.msra.mxu0 %v356
    %386 = vmatpush.msra.mxu0 %v355
    %387 = vmatpush.msra.mxu0 %v354
    %388 = vmatpush.msra.mxu0 %v353
    %389 = vmatmul.f32.gmra.mxu0 %v352
    %v390 = vpop.f32.mrf.mxu0
    %v391 = vadd.f32 %v371, %v390
    %392 = vdwg.mxu0
    %v393 = vadd.f32 %v391, %v350
    %394 = vadd.xlane.f32.xlu0 %v393
    %v395 = vpop.xlane.xlu0 %394
    %v396 = vmul.f32 %v395, 0.05
    %v397 = vsub.f32 %v393, %v396
    %v398 = vmul.f32 %v397, %v397
    %399 = vadd.xlane.f32.xlu0 %v398
    %v400 = vpop.xlane.xlu0 %399
    %v401 = vmul.f32 %v396, %v396
    %v402 = vmul.f32 %v401, 108.0
    %v403 = vsub.f32 %v400, %v402
    %v404 = vmul.f32 %v403, 0.05
    %v405 = vmax.f32 %v404, 0.0
    %v406 = vadd.f32 %v405, 1e-05
    %v407 = vrsqrt.pop %v406
    %v408 = vmul.f32 %v407, %v406
    %v409 = vmul.f32 %v408, %v407
    %v410 = vmul.f32 0.5, %v409
    %v411 = vsub.f32 1.5, %v410
    %v412 = vmul.f32 %v407, %v411
    %vm413 = vweird.f32 %v406
    %vm414 = vweird.f32 %v407
    %vm415 = vmor %vm413, %vm414
    %v416 = vsel %vm415, %v407, %v412
    %v417 = vmul.f32 %v397, %v416
    %v418 = vld [vmem:[#allocation11] sm:$0x1]
    %v420 = vperm.slane %v418, 0
    %v422 = vmul.f32 %v417, %v420
    %v423 = vld [vmem:[#allocation13] sm:$0x1]
    %v425 = vperm.slane %v423, 0
    %v427 = vadd.f32 %v422, %v425
    %v428 = vld [vmem:[#allocation14] sm:$0xff]
    %v429 = vld [vmem:[#allocation14 + $0x8] sm:$0xff]
    %v430 = vld [vmem:[#allocation14 + $0x10] sm:$0xff]
    %v431 = vld [vmem:[#allocation14 + $0x18] sm:$0xff]
    %v432 = vld [vmem:[#allocation14 + $0x20] sm:$0xff]
    %v433 = vld [vmem:[#allocation14 + $0x28] sm:$0xff]
    %v434 = vld [vmem:[#allocation14 + $0x30] sm:$0xff]
    %v435 = vld [vmem:[#allocation14 + $0x38] sm:$0xff]
    %v436 = vld [vmem:[#allocation14 + $0x40] sm:$0xff]
    %v437 = vld [vmem:[#allocation14 + $0x48] sm:$0xff]
    %v438 = vld [vmem:[#allocation14 + $0x50] sm:$0xff]
    %v439 = vld [vmem:[#allocation14 + $0x58] sm:$0xff]
    %v440 = vld [vmem:[#allocation14 + $0x60] sm:$0xff]
    %v441 = vld [vmem:[#allocation14 + $0x68] sm:$0xff]
    %v442 = vld [vmem:[#allocation14 + $0x70] sm:$0xff]
    %v443 = vld [vmem:[#allocation14 + $0x78] sm:$0xff]
    %v444 = vld [vmem:[#allocation14 + $0x80] sm:$0xff]
    %v445 = vld [vmem:[#allocation14 + $0x88] sm:$0xff]
    %v446 = vld [vmem:[#allocation14 + $0x90] sm:$0xff]
    %v447 = vld [vmem:[#allocation14 + $0x98] sm:$0xff]
    %v448 = vld [vmem:[#allocation14 + $0xa0] sm:$0xff]
    %v449 = vld [vmem:[#allocation14 + $0xa8] sm:$0xff]
    %v450 = vld [vmem:[#allocation14 + $0xb0] sm:$0xff]
    %v451 = vld [vmem:[#allocation14 + $0xb8] sm:$0xff]
    %v452 = vld [vmem:[#allocation14 + $0xc0] sm:$0xff]
    %v453 = vld [vmem:[#allocation14 + $0xc8] sm:$0xff]
    %v454 = vld [vmem:[#allocation14 + $0xd0] sm:$0xff]
    %v455 = vld [vmem:[#allocation14 + $0xd8] sm:$0xff]
    %v456 = vld [vmem:[#allocation14 + $0xe0] sm:$0xff]
    %v457 = vld [vmem:[#allocation14 + $0xe8] sm:$0xff]
    %v458 = vld [vmem:[#allocation14 + $0xf0] sm:$0xff]
    %v459 = vld [vmem:[#allocation14 + $0xf8] sm:$0xff]
    %v460 = vld [vmem:[%s8] sm:$0x3]
    %v462 = vperm.slane %v460, 0
    %v463 = vperm.slane %v460, 1
    %466 = vmatpush.msra.mxu0 %v458
    %467 = vmatpush.msra.mxu0 %v456
    %468 = vmatpush.msra.mxu0 %v454
    %469 = vmatpush.msra.mxu0 %v452
    %470 = vmatpush.msra.mxu0 %v450
    %471 = vmatpush.msra.mxu0 %v448
    %472 = vmatpush.msra.mxu0 %v446
    %473 = vmatpush.msra.mxu0 %v444
    %474 = vmatpush.msra.mxu0 %v442
    %475 = vmatpush.msra.mxu0 %v440
    %476 = vmatpush.msra.mxu0 %v438
    %477 = vmatpush.msra.mxu0 %v436
    %478 = vmatpush.msra.mxu0 %v434
    %479 = vmatpush.msra.mxu0 %v432
    %480 = vmatpush.msra.mxu0 %v430
    %481 = vmatpush.msra.mxu0 %v428
    %482 = vmatmul.f32.gmra.mxu0 %v427
    %v483 = vpop.f32.mrf.mxu0
    %v484 = vadd.f32 %v462, %v483
    %485 = vdwg.mxu0
    %486 = vmatpush.msra.mxu0 %v459
    %487 = vmatpush.msra.mxu0 %v457
    %488 = vmatpush.msra.mxu0 %v455
    %489 = vmatpush.msra.mxu0 %v453
    %490 = vmatpush.msra.mxu0 %v451
    %491 = vmatpush.msra.mxu0 %v449
    %492 = vmatpush.msra.mxu0 %v447
    %493 = vmatpush.msra.mxu0 %v445
    %494 = vmatpush.msra.mxu0 %v443
    %495 = vmatpush.msra.mxu0 %v441
    %496 = vmatpush.msra.mxu0 %v439
    %497 = vmatpush.msra.mxu0 %v437
    %498 = vmatpush.msra.mxu0 %v435
    %499 = vmatpush.msra.mxu0 %v433
    %500 = vmatpush.msra.mxu0 %v431
    %501 = vmatpush.msra.mxu0 %v429
    %502 = vmatmul.f32.gmra.mxu0 %v427
    %v503 = vpop.f32.mrf.mxu0
    %v504 = vadd.f32 %v463, %v503
    %505 = vdwg.mxu0
    %v506 = vmax.f32 %v484, 0.0
    %v507 = vld [vmem:[#allocation16] sm:$0xff]
    %v508 = vld [vmem:[#allocation16 + $0x8] sm:$0xff]
    %v509 = vld [vmem:[#allocation16 + $0x10] sm:$0xff]
    %v510 = vld [vmem:[#allocation16 + $0x18] sm:$0xff]
    %v511 = vld [vmem:[#allocation16 + $0x20] sm:$0xff]
    %v512 = vld [vmem:[#allocation16 + $0x28] sm:$0xff]
    %v513 = vld [vmem:[#allocation16 + $0x30] sm:$0xff]
    %v514 = vld [vmem:[#allocation16 + $0x38] sm:$0xff]
    %v515 = vld [vmem:[#allocation16 + $0x40] sm:$0xff]
    %v516 = vld [vmem:[#allocation16 + $0x48] sm:$0xff]
    %v517 = vld [vmem:[#allocation16 + $0x50] sm:$0xff]
    %v518 = vld [vmem:[#allocation16 + $0x58] sm:$0xff]
    %v519 = vld [vmem:[#allocation16 + $0x60] sm:$0xff]
    %v520 = vld [vmem:[#allocation16 + $0x68] sm:$0xff]
    %v521 = vld [vmem:[#allocation16 + $0x70] sm:$0xff]
    %v522 = vld [vmem:[#allocation16 + $0x78] sm:$0xff]
    %v523 = vld [vmem:[%s10] sm:$0x1]
    %v525 = vperm.slane %v523, 0
    %527 = vmatpush.msra.mxu0 %v522
    %528 = vmatpush.msra.mxu0 %v521
    %529 = vmatpush.msra.mxu0 %v520
    %530 = vmatpush.msra.mxu0 %v519
    %531 = vmatpush.msra.mxu0 %v518
    %532 = vmatpush.msra.mxu0 %v517
    %533 = vmatpush.msra.mxu0 %v516
    %534 = vmatpush.msra.mxu0 %v515
    %535 = vmatpush.msra.mxu0 %v514
    %536 = vmatpush.msra.mxu0 %v513
    %537 = vmatpush.msra.mxu0 %v512
    %538 = vmatpush.msra.mxu0 %v511
    %539 = vmatpush.msra.mxu0 %v510
    %540 = vmatpush.msra.mxu0 %v509
    %541 = vmatpush.msra.mxu0 %v508
    %542 = vmatpush.msra.mxu0 %v507
    %543 = vmatmul.f32.gmra.mxu0 %v506
    %v544 = vpop.f32.mrf.mxu0
    %v545 = vadd.f32 %v525, %v544
    %546 = vdwg.mxu0
    %v547 = vadd.f32 %v545, %v504
    %548 = vadd.xlane.f32.xlu0 %v547
    %v549 = vpop.xlane.xlu0 %548
    %v550 = vmul.f32 %v549, 0.0625
    %v551 = vsub.f32 %v547, %v550
    %v552 = vmul.f32 %v551, %v551
    %553 = vadd.xlane.f32.xlu0 %v552
    %v554 = vpop.xlane.xlu0 %553
    %v555 = vmul.f32 %v550, %v550
    %v556 = vmul.f32 %v555, 112.0
    %v557 = vsub.f32 %v554, %v556
    %v558 = vmul.f32 %v557, 0.0625
    %v559 = vmax.f32 %v558, 0.0
    %v560 = vadd.f32 %v559, 1e-05
    %v561 = vrsqrt.pop %v560
    %v562 = vmul.f32 %v561, %v560
    %v563 = vmul.f32 %v562, %v561
    %v564 = vmul.f32 0.5, %v563
    %v565 = vsub.f32 1.5, %v564
    %v566 = vmul.f32 %v561, %v565
    %vm567 = vweird.f32 %v560
    %vm568 = vweird.f32 %v561
    %vm569 = vmor %vm567, %vm568
    %v570 = vsel %vm569, %v561, %v566
    %v571 = vmul.f32 %v551, %v570
    %v572 = vld [vmem:[%s11] sm:$0x1]
    %v574 = vperm.slane %v572, 0
    %v576 = vmul.f32 %v571, %v574
    %v577 = vld [vmem:[%s12] sm:$0x1]
    %v579 = vperm.slane %v577, 0
    %v581 = vadd.f32 %v576, %v579
    %v582 = vld [vmem:[#allocation17] sm:$0xff]
    %v583 = vld [vmem:[#allocation17 + $0x8] sm:$0xff]
    %v584 = vld [vmem:[#allocation17 + $0x10] sm:$0xff]
    %v585 = vld [vmem:[#allocation17 + $0x18] sm:$0xff]
    %v586 = vld [vmem:[#allocation17 + $0x20] sm:$0xff]
    %v587 = vld [vmem:[#allocation17 + $0x28] sm:$0xff]
    %v588 = vld [vmem:[#allocation17 + $0x30] sm:$0xff]
    %v589 = vld [vmem:[#allocation17 + $0x38] sm:$0xff]
    %v590 = vld [vmem:[#allocation17 + $0x40] sm:$0xff]
    %v591 = vld [vmem:[#allocation17 + $0x48] sm:$0xff]
    %v592 = vld [vmem:[#allocation17 + $0x50] sm:$0xff]
    %v593 = vld [vmem:[#allocation17 + $0x58] sm:$0xff]
    %v594 = vld [vmem:[#allocation17 + $0x60] sm:$0xff]
    %v595 = vld [vmem:[#allocation17 + $0x68] sm:$0xff]
    %v596 = vld [vmem:[#allocation17 + $0x70] sm:$0xff]
    %v597 = vld [vmem:[#allocation17 + $0x78] sm:$0xff]
    %v598 = vld [vmem:[#allocation17 + $0x80] sm:$0xff]
    %v599 = vld [vmem:[#allocation17 + $0x88] sm:$0xff]
    %v600 = vld [vmem:[#allocation17 + $0x90] sm:$0xff]
    %v601 = vld [vmem:[#allocation17 + $0x98] sm:$0xff]
    %v602 = vld [vmem:[#allocation17 + $0xa0] sm:$0xff]
    %v603 = vld [vmem:[#allocation17 + $0xa8] sm:$0xff]
    %v604 = vld [vmem:[#allocation17 + $0xb0] sm:$0xff]
    %v605 = vld [vmem:[#allocation17 + $0xb8] sm:$0xff]
    %v606 = vld [vmem:[#allocation17 + $0xc0] sm:$0xff]
    %v607 = vld [vmem:[#allocation17 + $0xc8] sm:$0xff]
    %v608 = vld [vmem:[#allocation17 + $0xd0] sm:$0xff]
    %v609 = vld [vmem:[#allocation17 + $0xd8] sm:$0xff]
    %v610 = vld [vmem:[#allocation17 + $0xe0] sm:$0xff]
    %v611 = vld [vmem:[#allocation17 + $0xe8] sm:$0xff]
    %v612 = vld [vmem:[#allocation17 + $0xf0] sm:$0xff]
    %v613 = vld [vmem:[#allocation17 + $0xf8] sm:$0xff]
    %v614 = vld [vmem:[%s14] sm:$0x3]
    %v616 = vperm.slane %v614, 0
    %v617 = vperm.slane %v614, 1
    %620 = vmatpush.msra.mxu0 %v612
    %621 = vmatpush.msra.mxu0 %v610
    %622 = vmatpush.msra.mxu0 %v608
    %623 = vmatpush.msra.mxu0 %v606
    %624 = vmatpush.msra.mxu0 %v604
    %625 = vmatpush.msra.mxu0 %v602
    %626 = vmatpush.msra.mxu0 %v600
    %627 = vmatpush.msra.mxu0 %v598
    %628 = vmatpush.msra.mxu0 %v596
    %629 = vmatpush.msra.mxu0 %v594
    %630 = vmatpush.msra.mxu0 %v592
    %631 = vmatpush.msra.mxu0 %v590
    %632 = vmatpush.msra.mxu0 %v588
    %633 = vmatpush.msra.mxu0 %v586
    %634 = vmatpush.msra.mxu0 %v584
    %635 = vmatpush.msra.mxu0 %v582
    %636 = vmatmul.f32.gmra.mxu0 %v581
    %v637 = vpop.f32.mrf.mxu0
    %v638 = vadd.f32 %v616, %v637
    %639 = vdwg.mxu0
    %640 = vmatpush.msra.mxu0 %v613
    %641 = vmatpush.msra.mxu0 %v611
    %642 = vmatpush.msra.mxu0 %v609
    %643 = vmatpush.msra.mxu0 %v607
    %644 = vmatpush.msra.mxu0 %v605
    %645 = vmatpush.msra.mxu0 %v603
    %646 = vmatpush.msra.mxu0 %v601
    %647 = vmatpush.msra.mxu0 %v599
    %648 = vmatpush.msra.mxu0 %v597
    %649 = vmatpush.msra.mxu0 %v595
    %650 = vmatpush.msra.mxu0 %v593
    %651 = vmatpush.msra.mxu0 %v591
    %652 = vmatpush.msra.mxu0 %v589
    %653 = vmatpush.msra.mxu0 %v587
    %654 = vmatpush.msra.mxu0 %v585
    %655 = vmatpush.msra.mxu0 %v583
    %656 = vmatmul.f32.gmra.mxu0 %v581
    %v657 = vpop.f32.mrf.mxu0
    %v658 = vadd.f32 %v617, %v657
    %659 = vdwg.mxu0
    %v660 = vmax.f32 %v638, 0.0
    %v661 = vld [vmem:[#allocation19] sm:$0xff]
    %v662 = vld [vmem:[#allocation19 + $0x8] sm:$0xff]
    %v663 = vld [vmem:[#allocation19 + $0x10] sm:$0xff]
    %v664 = vld [vmem:[#allocation19 + $0x18] sm:$0xff]
    %v665 = vld [vmem:[#allocation19 + $0x20] sm:$0xff]
    %v666 = vld [vmem:[#allocation19 + $0x28] sm:$0xff]
    %v667 = vld [vmem:[#allocation19 + $0x30] sm:$0xff]
    %v668 = vld [vmem:[#allocation19 + $0x38] sm:$0xff]
    %v669 = vld [vmem:[#allocation19 + $0x40] sm:$0xff]
    %v670 = vld [vmem:[#allocation19 + $0x48] sm:$0xff]
    %v671 = vld [vmem:[#allocation19 + $0x50] sm:$0xff]
    %v672 = vld [vmem:[#allocation19 + $0x58] sm:$0xff]
    %v673 = vld [vmem:[#allocation19 + $0x60] sm:$0xff]
    %v674 = vld [vmem:[#allocation19 + $0x68] sm:$0xff]
    %v675 = vld [vmem:[#allocation19 + $0x70] sm:$0xff]
    %v676 = vld [vmem:[#allocation19 + $0x78] sm:$0xff]
    %v677 = vld [vmem:[%s16] sm:$0x1]
    %v679 = vperm.slane %v677, 0
    %681 = vmatpush.msra.mxu0 %v676
    %682 = vmatpush.msra.mxu0 %v675
    %683 = vmatpush.msra.mxu0 %v674
    %684 = vmatpush.msra.mxu0 %v673
    %685 = vmatpush.msra.mxu0 %v672
    %686 = vmatpush.msra.mxu0 %v671
    %687 = vmatpush.msra.mxu0 %v670
    %688 = vmatpush.msra.mxu0 %v669
    %689 = vmatpush.msra.mxu0 %v668
    %690 = vmatpush.msra.mxu0 %v667
    %691 = vmatpush.msra.mxu0 %v666
    %692 = vmatpush.msra.mxu0 %v665
    %693 = vmatpush.msra.mxu0 %v664
    %694 = vmatpush.msra.mxu0 %v663
    %695 = vmatpush.msra.mxu0 %v662
    %696 = vmatpush.msra.mxu0 %v661
    %697 = vmatmul.f32.gmra.mxu0 %v660
    %v698 = vpop.f32.mrf.mxu0
    %v699 = vadd.f32 %v679, %v698
    %700 = vdwg.mxu0
    %v701 = vadd.f32 %v699, %v658
    %702 = vadd.xlane.f32.xlu0 %v701
    %v703 = vpop.xlane.xlu0 %702
    %v704 = vmul.f32 %v703, 0.05
    %v705 = vsub.f32 %v701, %v704
    %v706 = vmul.f32 %v705, %v705
    %707 = vadd.xlane.f32.xlu0 %v706
    %v708 = vpop.xlane.xlu0 %707
    %v709 = vmul.f32 %v704, %v704
    %v710 = vmul.f32 %v709, 108.0
    %v711 = vsub.f32 %v708, %v710
    %v712 = vmul.f32 %v711, 0.05
    %v713 = vmax.f32 %v712, 0.0
    %v714 = vadd.f32 %v713, 1e-05
    %v715 = vrsqrt.pop %v714
    %v716 = vmul.f32 %v715, %v714
    %v717 = vmul.f32 %v716, %v715
    %v718 = vmul.f32 0.5, %v717
    %v719 = vsub.f32 1.5, %v718
    %v720 = vmul.f32 %v715, %v719
    %vm721 = vweird.f32 %v714
    %vm722 = vweird.f32 %v715
    %vm723 = vmor %vm721, %vm722
    %v724 = vsel %vm723, %v715, %v720
    %v725 = vmul.f32 %v705, %v724
    %v726 = vld [vmem:[%s17] sm:$0x1]
    %v728 = vperm.slane %v726, 0
    %v730 = vmul.f32 %v725, %v728
    %v731 = vld [vmem:[%s18] sm:$0x1]
    %v733 = vperm.slane %v731, 0
    %v735 = vadd.f32 %v730, %v733
    %v736 = vld [vmem:[#allocation20] sm:$0xff]
    %v737 = vld [vmem:[#allocation20 + $0x8] sm:$0xff]
    %v738 = vld [vmem:[#allocation20 + $0x10] sm:$0xff]
    %v739 = vld [vmem:[#allocation20 + $0x18] sm:$0xff]
    %v740 = vld [vmem:[#allocation20 + $0x20] sm:$0xff]
    %v741 = vld [vmem:[#allocation20 + $0x28] sm:$0xff]
    %v742 = vld [vmem:[#allocation20 + $0x30] sm:$0xff]
    %v743 = vld [vmem:[#allocation20 + $0x38] sm:$0xff]
    %v744 = vld [vmem:[#allocation20 + $0x40] sm:$0xff]
    %v745 = vld [vmem:[#allocation20 + $0x48] sm:$0xff]
    %v746 = vld [vmem:[#allocation20 + $0x50] sm:$0xff]
    %v747 = vld [vmem:[#allocation20 + $0x58] sm:$0xff]
    %v748 = vld [vmem:[#allocation20 + $0x60] sm:$0xff]
    %v749 = vld [vmem:[#allocation20 + $0x68] sm:$0xff]
    %v750 = vld [vmem:[#allocation20 + $0x70] sm:$0xff]
    %v751 = vld [vmem:[#allocation20 + $0x78] sm:$0xff]
    %v752 = vld [vmem:[#allocation20 + $0x80] sm:$0xff]
    %v753 = vld [vmem:[#allocation20 + $0x88] sm:$0xff]
    %v754 = vld [vmem:[#allocation20 + $0x90] sm:$0xff]
    %v755 = vld [vmem:[#allocation20 + $0x98] sm:$0xff]
    %v756 = vld [vmem:[#allocation20 + $0xa0] sm:$0xff]
    %v757 = vld [vmem:[#allocation20 + $0xa8] sm:$0xff]
    %v758 = vld [vmem:[#allocation20 + $0xb0] sm:$0xff]
    %v759 = vld [vmem:[#allocation20 + $0xb8] sm:$0xff]
    %v760 = vld [vmem:[#allocation20 + $0xc0] sm:$0xff]
    %v761 = vld [vmem:[#allocation20 + $0xc8] sm:$0xff]
    %v762 = vld [vmem:[#allocation20 + $0xd0] sm:$0xff]
    %v763 = vld [vmem:[#allocation20 + $0xd8] sm:$0xff]
    %v764 = vld [vmem:[#allocation20 + $0xe0] sm:$0xff]
    %v765 = vld [vmem:[#allocation20 + $0xe8] sm:$0xff]
    %v766 = vld [vmem:[#allocation20 + $0xf0] sm:$0xff]
    %v767 = vld [vmem:[#allocation20 + $0xf8] sm:$0xff]
    %v768 = vld [vmem:[%s20] sm:$0x3]
    %v770 = vperm.slane %v768, 0
    %v771 = vperm.slane %v768, 1
    %774 = vmatpush.msra.mxu0 %v766
    %775 = vmatpush.msra.mxu0 %v764
    %776 = vmatpush.msra.mxu0 %v762
    %777 = vmatpush.msra.mxu0 %v760
    %778 = vmatpush.msra.mxu0 %v758
    %779 = vmatpush.msra.mxu0 %v756
    %780 = vmatpush.msra.mxu0 %v754
    %781 = vmatpush.msra.mxu0 %v752
    %782 = vmatpush.msra.mxu0 %v750
    %783 = vmatpush.msra.mxu0 %v748
    %784 = vmatpush.msra.mxu0 %v746
    %785 = vmatpush.msra.mxu0 %v744
    %786 = vmatpush.msra.mxu0 %v742
    %787 = vmatpush.msra.mxu0 %v740
    %788 = vmatpush.msra.mxu0 %v738
    %789 = vmatpush.msra.mxu0 %v736
    %790 = vmatmul.f32.gmra.mxu0 %v735
    %v791 = vpop.f32.mrf.mxu0
    %v792 = vadd.f32 %v770, %v791
    %793 = vdwg.mxu0
    %794 = vmatpush.msra.mxu0 %v767
    %795 = vmatpush.msra.mxu0 %v765
    %796 = vmatpush.msra.mxu0 %v763
    %797 = vmatpush.msra.mxu0 %v761
    %798 = vmatpush.msra.mxu0 %v759
    %799 = vmatpush.msra.mxu0 %v757
    %800 = vmatpush.msra.mxu0 %v755
    %801 = vmatpush.msra.mxu0 %v753
    %802 = vmatpush.msra.mxu0 %v751
    %803 = vmatpush.msra.mxu0 %v749
    %804 = vmatpush.msra.mxu0 %v747
    %805 = vmatpush.msra.mxu0 %v745
    %806 = vmatpush.msra.mxu0 %v743
    %807 = vmatpush.msra.mxu0 %v741
    %808 = vmatpush.msra.mxu0 %v739
    %809 = vmatpush.msra.mxu0 %v737
    %810 = vmatmul.f32.gmra.mxu0 %v735
    %v811 = vpop.f32.mrf.mxu0
    %v812 = vadd.f32 %v771, %v811
    %813 = vdwg.mxu0
    %v814 = vmax.f32 %v792, 0.0
    %v815 = vld [vmem:[#allocation22] sm:$0xff]
    %v816 = vld [vmem:[#allocation22 + $0x8] sm:$0xff]
    %v817 = vld [vmem:[#allocation22 + $0x10] sm:$0xff]
    %v818 = vld [vmem:[#allocation22 + $0x18] sm:$0xff]
    %v819 = vld [vmem:[#allocation22 + $0x20] sm:$0xff]
    %v820 = vld [vmem:[#allocation22 + $0x28] sm:$0xff]
    %v821 = vld [vmem:[#allocation22 + $0x30] sm:$0xff]
    %v822 = vld [vmem:[#allocation22 + $0x38] sm:$0xff]
    %v823 = vld [vmem:[#allocation22 + $0x40] sm:$0xff]
    %v824 = vld [vmem:[#allocation22 + $0x48] sm:$0xff]
    %v825 = vld [vmem:[#allocation22 + $0x50] sm:$0xff]
    %v826 = vld [vmem:[#allocation22 + $0x58] sm:$0xff]
    %v827 = vld [vmem:[#allocation22 + $0x60] sm:$0xff]
    %v828 = vld [vmem:[#allocation22 + $0x68] sm:$0xff]
    %v829 = vld [vmem:[#allocation22 + $0x70] sm:$0xff]
    %v830 = vld [vmem:[#allocation22 + $0x78] sm:$0xff]
    %v831 = vld [vmem:[%s22] sm:$0x1]
    %v833 = vperm.slane %v831, 0
    %835 = vmatpush.msra.mxu0 %v830
    %836 = vmatpush.msra.mxu0 %v829
    %837 = vmatpush.msra.mxu0 %v828
    %838 = vmatpush.msra.mxu0 %v827
    %839 = vmatpush.msra.mxu0 %v826
    %840 = vmatpush.msra.mxu0 %v825
    %841 = vmatpush.msra.mxu0 %v824
    %842 = vmatpush.msra.mxu0 %v823
    %843 = vmatpush.msra.mxu0 %v822
    %844 = vmatpush.msra.mxu0 %v821
    %845 = vmatpush.msra.mxu0 %v820
    %846 = vmatpush.msra.mxu0 %v819
    %847 = vmatpush.msra.mxu0 %v818
    %848 = vmatpush.msra.mxu0 %v817
    %849 = vmatpush.msra.mxu0 %v816
    %850 = vmatpush.msra.mxu0 %v815
    %851 = vmatmul.f32.gmra.mxu0 %v814
    %v852 = vpop.f32.mrf.mxu0
    %v853 = vadd.f32 %v833, %v852
    %854 = vdwg.mxu0
    %v855 = vadd.f32 %v853, %v812
    %856 = vadd.xlane.f32.xlu0 %v855
    %v857 = vpop.xlane.xlu0 %856
    %v858 = vmul.f32 %v857, 0.03125
    %v859 = vsub.f32 %v855, %v858
    %v860 = vmul.f32 %v859, %v859
    %861 = vadd.xlane.f32.xlu0 %v860
    %v862 = vpop.xlane.xlu0 %861
    %v863 = vmul.f32 %v858, %v858
    %v864 = vmul.f32 %v863, 96.0
    %v865 = vsub.f32 %v862, %v864
    %v866 = vmul.f32 %v865, 0.03125
    %v867 = vmax.f32 %v866, 0.0
    %v868 = vadd.f32 %v867, 1e-05
    %v869 = vrsqrt.pop %v868
    %v870 = vmul.f32 %v869, %v868
    %v871 = vmul.f32 %v870, %v869
    %v872 = vmul.f32 0.5, %v871
    %v873 = vsub.f32 1.5, %v872
    %v874 = vmul.f32 %v869, %v873
    %vm875 = vweird.f32 %v868
    %vm876 = vweird.f32 %v869
    %vm877 = vmor %vm875, %vm876
    %v878 = vsel %vm877, %v869, %v874
    %v879 = vmul.f32 %v859, %v878
    %v880 = vld [vmem:[%s23] sm:$0x1]
    %v882 = vperm.slane %v880, 0
    %v884 = vmul.f32 %v879, %v882
    %v885 = vld [vmem:[%s24] sm:$0x1]
    %v887 = vperm.slane %v885, 0
    %v889 = vadd.f32 %v884, %v887
    %890 = vst [vmem:[#allocation23] sm:$0xff] %v889
    // Predicated region
    $region154: #{tpu_custom_call.1} parent=1 // pred_check
      _
    $region155: #{tpu_custom_call.1} parent=1 // pred_check_branch
      %892 = sbr.rel (0) target = $region157
    $region156: #{tpu_custom_call.1} parent=1 // pred_region
      %894 = vsyncadd [#allocation4], 0
      %s896 = sshll.u32 [#allocation23], 4
      %s897 = int_to_ptr.vmem [resolvable:$true] %s896
      %s898 = sshll.u32 %s25, 4
      %s899 = int_to_ptr.hbm [resolvable:$true] %s898
      %901 = dma.vmem_to_hbm [thread:$0]  %s897, 128, %s899, [#allocation4]
    $region157: #{tpu_custom_call.1} parent=1 // pred_fallthru
      _
    // Predicated region
    $region158: #{tpu_custom_call.1} parent=1 // pred_check
      _
    $region159: #{tpu_custom_call.1} parent=1 // pred_check_branch
      %903 = sbr.rel (0) target = $region161
    $region160: #{tpu_custom_call.1} parent=1 // pred_region
      %905 = dma.done [#allocation4], 128
    $region161: #{tpu_custom_call.1} parent=1 // pred_fallthru
      _
    %906 = vsyncpa [#allocation3], 1
    %907 = vsyncpa [#allocation6], 1
    %908 = vsyncpa [#allocation9], 1
    %909 = vsyncpa [#allocation12], 1
    %910 = vsyncpa [#allocation15], 1
    %911 = vsyncpa [#allocation18], 1
    %912 = vsyncpa [#allocation21], 1
    %913 = vsyncpa [#allocation4], 1

// kernel: tpu_custom_call.1
$region0: #{tpu_custom_call.1}
  #allocation0 [shape = 'u32[]', space=smem, size = 0x4, offset = 0x4, fixed_abs, tag = 'smem constant byte address 0x4 - core index']
  #allocation1 [shape = 'u32[72,128]{1,0:T(1,128)}', space=vmem, size = 0x9000, scoped, tag = 'internal scratch']
  %s0 = inlined_call_operand.hbm [shape: f32[8,128], index: 0, kind: input, shape index: {}]
  %s1 = inlined_call_operand.hbm [shape: f32[128,256], index: 1, kind: input, shape index: {}]
  %s2 = inlined_call_operand.hbm [shape: f32[1,256], index: 2, kind: input, shape index: {}]
  %s3 = inlined_call_operand.hbm [shape: f32[128,128], index: 3, kind: input, shape index: {}]
  %s4 = inlined_call_operand.hbm [shape: f32[1,128], index: 4, kind: input, shape index: {}]
  %s5 = inlined_call_operand.hbm [shape: f32[1,128], index: 5, kind: input, shape index: {}]
  %s6 = inlined_call_operand.hbm [shape: f32[1,128], index: 6, kind: input, shape index: {}]
  %s7 = inlined_call_operand.hbm [shape: f32[128,256], index: 7, kind: input, shape index: {}]
  %s8 = inlined_call_operand.vmem [shape: f32[1,256], index: 8, kind: input, shape index: {}]
  %s9 = inlined_call_operand.hbm [shape: f32[128,128], index: 9, kind: input, shape index: {}]
  %s10 = inlined_call_operand.vmem [shape: f32[1,128], index: 10, kind: input, shape index: {}]
  %s11 = inlined_call_operand.vmem [shape: f32[1,128], index: 11, kind: input, shape index: {}]
  %s12 = inlined_call_operand.vmem [shape: f32[1,128], index: 12, kind: input, shape index: {}]
  %s13 = inlined_call_operand.hbm [shape: f32[128,256], index: 13, kind: input, shape index: {}]
  %s14 = inlined_call_operand.vmem [shape: f32[1,256], index: 14, kind: input, shape index: {}]
  %s15 = inlined_call_operand.hbm [shape: f32[128,128], index: 15, kind: input, shape index: {}]
  %s16 = inlined_call_operand.vmem [shape: f32[1,128], index: 16, kind: input, shape index: {}]
  %s17 = inlined_call_operand.vmem [shape: f32[1,128], index: 17, kind: input, shape index: {}]
  %s18 = inlined_call_operand.vmem [shape: f32[1,128], index: 18, kind: input, shape index: {}]
  %s19 = inlined_call_operand.hbm [shape: f32[128,256], index: 19, kind: input, shape index: {}]
  %s20 = inlined_call_operand.vmem [shape: f32[1,256], index: 20, kind: input, shape index: {}]
  %s21 = inlined_call_operand.hbm [shape: f32[128,128], index: 21, kind: input, shape index: {}]
  %s22 = inlined_call_operand.vmem [shape: f32[1,128], index: 22, kind: input, shape index: {}]
  %s23 = inlined_call_operand.vmem [shape: f32[1,128], index: 23, kind: input, shape index: {}]
  %s24 = inlined_call_operand.vmem [shape: f32[1,128], index: 24, kind: input, shape index: {}]
  %s25 = inlined_call_operand.hbm [shape: f32[8,128], index: 25, kind: output, shape index: {}]
  %s26 = sld [smem:[#allocation0]]
  $region162: #{tpu_custom_call.1} parent=0
    _
  %s28 = ssub.s32 1, %s26
  %s29 = scalar_select 0, %s28, %s26
  $region1: #{tpu_custom_call.1} parent=0
    #allocation2 [shape = 'u8[4096]{0}', space=vmem, size = 0x1000, scoped, tag = 'input window, operand 0, single buffered']
    #allocation3 [shape = 's32[1]{0}', space=sflag, size = 0x4, scoped, tag = 'scoped memory for tpu_custom_call.1']
    #allocation4 [shape = 's32[1]{0}', space=sflag, size = 0x4, scoped, tag = 'scoped memory for tpu_custom_call.1']
    #allocation5 [shape = 'u8[131072]{0}', space=vmem, size = 0x20000, scoped, tag = 'input window, operand 1, single buffered']
    #allocation6 [shape = 's32[1]{0}', space=sflag, size = 0x4, scoped, tag = 'scoped memory for tpu_custom_call.1']
    #allocation7 [shape = 'u8[1024]{0}', space=vmem, size = 0x400, scoped, tag = 'input window, operand 2, single buffered']
    #allocation8 [shape = 'u8[65536]{0}', space=vmem, size = 0x10000, scoped, tag = 'input window, operand 3, single buffered']
    #allocation9 [shape = 's32[1]{0}', space=sflag, size = 0x4, scoped, tag = 'scoped memory for tpu_custom_call.1']
    #allocation10 [shape = 'u8[512]{0}', space=vmem, size = 0x400, scoped, tag = 'input window, operand 4, single buffered']
    #allocation11 [shape = 'u8[512]{0}', space=vmem, size = 0x400, scoped, tag = 'input window, operand 5, single buffered']
    #allocation12 [shape = 's32[1]{0}', space=sflag, size = 0x4, scoped, tag = 'scoped memory for tpu_custom_call.1']
    #allocation13 [shape = 'u8[512]{0}', space=vmem, size = 0x400, scoped, tag = 'input window, operand 6, single buffered']
    #allocation14 [shape = 'u8[131072]{0}', space=vmem, size = 0x20000, scoped, tag = 'input window, operand 7, single buffered']
    #allocation15 [shape = 's32[1]{0}', space=sflag, size = 0x4, scoped, tag = 'scoped memory for tpu_custom_call.1']
    #allocation16 [shape = 'u8[65536]{0}', space=vmem, size = 0x10000, scoped, tag = 'input window, operand 9, single buffered']
    #allocation17 [shape = 'u8[131072]{0}', space=vmem, size = 0x20000, scoped, tag = 'input window, operand 13, single buffered']
    #allocation18 [shape = 's32[1]{0}', space=sflag, size = 0x4, scoped, tag = 'scoped memory for tpu_custom_call.1']
    #allocation19 [shape = 'u8[65536]{0}', space=vmem, size = 0x10000, scoped, tag = 'input window, operand 15, single buffered']
    #allocation20 [shape = 'u8[131072]{0}', space=vmem, size = 0x20000, scoped, tag = 'input window, operand 19, single buffered']
    #allocation21 [shape = 's32[1]{0}', space=sflag, size = 0x4, scoped, tag = 'scoped memory for tpu_custom_call.1']
    #allocation22 [shape = 'u8[65536]{0}', space=vmem, size = 0x10000, scoped, tag = 'input window, operand 21, single buffered']
    #allocation23 [shape = 'u8[4096]{0}', space=vmem, size = 0x1000, scoped, tag = 'output window, operand 0, single buffered']
    %30 = vsyncpa [#allocation3], 0
    %31 = vsyncpa [#allocation6], 0
    %32 = vsyncpa [#allocation9], 0
    %33 = vsyncpa [#allocation12], 0
    %34 = vsyncpa [#allocation15], 0
    %35 = vsyncpa [#allocation18], 0
    %36 = vsyncpa [#allocation21], 0
    %37 = vsyncpa [#allocation4], 0
    // Predicated region
    $region2: #{tpu_custom_call.1} parent=1 // pred_check
      _
    $region3: #{tpu_custom_call.1} parent=1 // pred_check_branch
      %39 = sbr.rel (0) target = $region5
    $region4: #{tpu_custom_call.1} parent=1 // pred_region
      %41 = vsyncadd [#allocation3], 0
      %s43 = sshll.u32 %s0, 4
      %s44 = int_to_ptr.hbm [resolvable:$true] %s43
      %s45 = sshll.u32 [#allocation2], 4
      %s46 = int_to_ptr.vmem [resolvable:$true] %s45
      %48 = dma.hbm_to_vmem [thread:$0]  %s44, 128, %s46, [#allocation3]
    $region5: #{tpu_custom_call.1} parent=1 // pred_fallthru
      _
    // Predicated region
    $region6: #{tpu_custom_call.1} parent=1 // pred_check
      _
    $region7: #{tpu_custom_call.1} parent=1 // pred_check_branch
      %50 = sbr.rel (0) target = $region9
    $region8: #{tpu_custom_call.1} parent=1 // pred_region
      %52 = vsyncadd [#allocation6], 0
      %s53 = sshll.u32 %s1, 4
      %s54 = int_to_ptr.hbm [resolvable:$true] %s53
      %s55 = sshll.u32 [#allocation5], 4
      %s56 = int_to_ptr.vmem [resolvable:$true] %s55
      %61 = dma.hbm_to_vmem [thread:$0]  %s54, 4096, %s56, [#allocation6], 256, 256, 16
    $region9: #{tpu_custom_call.1} parent=1 // pred_fallthru
      _
    // Predicated region
    $region10: #{tpu_custom_call.1} parent=1 // pred_check
      _
    $region11: #{tpu_custom_call.1} parent=1 // pred_check_branch
      %63 = sbr.rel (0) target = $region13
    $region12: #{tpu_custom_call.1} parent=1 // pred_region
      %65 = vsyncadd [#allocation6], 0
      %s67 = sshll.u32 %s2, 4
      %s68 = int_to_ptr.hbm [resolvable:$true] %s67
      %s69 = sshll.u32 [#allocation7], 4
      %s70 = int_to_ptr.vmem [resolvable:$true] %s69
      %72 = dma.hbm_to_vmem [thread:$0]  %s68, 32, %s70, [#allocation6]
    $region13: #{tpu_custom_call.1} parent=1 // pred_fallthru
      _
    // Predicated region
    $region14: #{tpu_custom_call.1} parent=1 // pred_check
      _
    $region15: #{tpu_custom_call.1} parent=1 // pred_check_branch
      %74 = sbr.rel (0) target = $region17
    $region16: #{tpu_custom_call.1} parent=1 // pred_region
      %76 = vsyncadd [#allocation9], 0
      %s77 = sshll.u32 %s3, 4
      %s78 = int_to_ptr.hbm [resolvable:$true] %s77
      %s79 = sshll.u32 [#allocation8], 4
      %s80 = int_to_ptr.vmem [resolvable:$true] %s79
      %85 = dma.hbm_to_vmem [thread:$0]  %s78, 2048, %s80, [#allocation9], 128, 128, 8
    $region17: #{tpu_custom_call.1} parent=1 // pred_fallthru
      _
    // Predicated region
    $region18: #{tpu_custom_call.1} parent=1 // pred_check
      _
    $region19: #{tpu_custom_call.1} parent=1 // pred_check_branch
      %87 = sbr.rel (0) target = $region21
    $region20: #{tpu_custom_call.1} parent=1 // pred_region
      %89 = vsyncadd [#allocation9], 0
      %s91 = sshll.u32 %s4, 4
      %s92 = int_to_ptr.hbm [resolvable:$true] %s91
      %s93 = sshll.u32 [#allocation10], 4
      %s94 = int_to_ptr.vmem [resolvable:$true] %s93
      %96 = dma.hbm_to_vmem [thread:$0]  %s92, 16, %s94, [#allocation9]
    $region21: #{tpu_custom_call.1} parent=1 // pred_fallthru
      _
    // Predicated region
    $region22: #{tpu_custom_call.1} parent=1 // pred_check
      _
    $region23: #{tpu_custom_call.1} parent=1 // pred_check_branch
      %98 = sbr.rel (0) target = $region25
    $region24: #{tpu_custom_call.1} parent=1 // pred_region
      %100 = vsyncadd [#allocation12], 0
      %s102 = sshll.u32 %s5, 4
      %s103 = int_to_ptr.hbm [resolvable:$true] %s102
      %s104 = sshll.u32 [#allocation11], 4
      %s105 = int_to_ptr.vmem [resolvable:$true] %s104
      %107 = dma.hbm_to_vmem [thread:$0]  %s103, 16, %s105, [#allocation12]
    $region25: #{tpu_custom_call.1} parent=1 // pred_fallthru
      _
    // Predicated region
    $region26: #{tpu_custom_call.1} parent=1 // pred_check
      _
    $region27: #{tpu_custom_call.1} parent=1 // pred_check_branch
      %109 = sbr.rel (0) target = $region29
    $region28: #{tpu_custom_call.1} parent=1 // pred_region
      %111 = vsyncadd [#allocation12], 0
      %s113 = sshll.u32 %s6, 4
      %s114 = int_to_ptr.hbm [resolvable:$true] %s113
      %s115 = sshll.u32 [#allocation13], 4
      %s116 = int_to_ptr.vmem [resolvable:$true] %s115
      %118 = dma.hbm_to_vmem [thread:$0]  %s114, 16, %s116, [#allocation12]
    $region29: #{tpu_custom_call.1} parent=1 // pred_fallthru
      _
    // Predicated region
    $region30: #{tpu_custom_call.1} parent=1 // pred_check
      _
    $region31: #{tpu_custom_call.1} parent=1 // pred_check_branch
      %120 = sbr.rel (0) target = $region33
    $region32: #{tpu_custom_call.1} parent=1 // pred_region
      %122 = vsyncadd [#allocation15], 0
      %s123 = sshll.u32 %s7, 4
      %s124 = int_to_ptr.hbm [resolvable:$true] %s123
      %s125 = sshll.u32 [#allocation14], 4
      %s126 = int_to_ptr.vmem [resolvable:$true] %s125
      %131 = dma.hbm_to_vmem [thread:$0]  %s124, 4096, %s126, [#allocation15], 256, 256, 16
    $region33: #{tpu_custom_call.1} parent=1 // pred_fallthru
      _
    // Predicated region
    $region34: #{tpu_custom_call.1} parent=1 // pred_check
      _
    $region35: #{tpu_custom_call.1} parent=1 // pred_check_branch
      %133 = sbr.rel (0) target = $region37
    $region36: #{tpu_custom_call.1} parent=1 // pred_region
      _
    $region37: #{tpu_custom_call.1} parent=1 // pred_fallthru
      _
    // Predicated region
    $region38: #{tpu_custom_call.1} parent=1 // pred_check
      _
    $region39: #{tpu_custom_call.1} parent=1 // pred_check_branch
      %135 = sbr.rel (0) target = $region41
    $region40: #{tpu_custom_call.1} parent=1 // pred_region
      %137 = vsyncadd [#allocation15], 0
      %s138 = sshll.u32 %s9, 4
      %s139 = int_to_ptr.hbm [resolvable:$true] %s138
      %s140 = sshll.u32 [#allocation16], 4
      %s141 = int_to_ptr.vmem [resolvable:$true] %s140
      %146 = dma.hbm_to_vmem [thread:$0]  %s139, 2048, %s141, [#allocation15], 128, 128, 8
    $region41: #{tpu_custom_call.1} parent=1 // pred_fallthru
      _
    // Predicated region
    $region42: #{tpu_custom_call.1} parent=1 // pred_check
      _
    $region43: #{tpu_custom_call.1} parent=1 // pred_check_branch
      %148 = sbr.rel (0) target = $region45
    $region44: #{tpu_custom_call.1} parent=1 // pred_region
      _
    $region45: #{tpu_custom_call.1} parent=1 // pred_fallthru
      _
    // Predicated region
    $region46: #{tpu_custom_call.1} parent=1 // pred_check
      _
    $region47: #{tpu_custom_call.1} parent=1 // pred_check_branch
      %150 = sbr.rel (0) target = $region49
    $region48: #{tpu_custom_call.1} parent=1 // pred_region
      _
    $region49: #{tpu_custom_call.1} parent=1 // pred_fallthru
      _
    // Predicated region
    $region50: #{tpu_custom_call.1} parent=1 // pred_check
      _
    $region51: #{tpu_custom_call.1} parent=1 // pred_check_branch
      %152 = sbr.rel (0) target = $region53
    $region52: #{tpu_custom_call.1} parent=1 // pred_region
      _
    $region53: #{tpu_custom_call.1} parent=1 // pred_fallthru
      _
    // Predicated region
    $region54: #{tpu_custom_call.1} parent=1 // pred_check
      _
    $region55: #{tpu_custom_call.1} parent=1 // pred_check_branch
      %154 = sbr.rel (0) target = $region57
    $region56: #{tpu_custom_call.1} parent=1 // pred_region
      %156 = vsyncadd [#allocation18], 0
      %s157 = sshll.u32 %s13, 4
      %s158 = int_to_ptr.hbm [resolvable:$true] %s157
      %s159 = sshll.u32 [#allocation17], 4
      %s160 = int_to_ptr.vmem [resolvable:$true] %s159
      %165 = dma.hbm_to_vmem [thread:$0]  %s158, 4096, %s160, [#allocation18], 256, 256, 16
    $region57: #{tpu_custom_call.1} parent=1 // pred_fallthru
      _
    // Predicated region
    $region58: #{tpu_custom_call.1} parent=1 // pred_check
      _
    $region59: #{tpu_custom_call.1} parent=1 // pred_check_branch
      %167 = sbr.rel (0) target = $region61
    $region60: #{tpu_custom_call.1} parent=1 // pred_region
      _
    $region61: #{tpu_custom_call.1} parent=1 // pred_fallthru
      _
    // Predicated region
    $region62: #{tpu_custom_call.1} parent=1 // pred_check
      _
    $region63: #{tpu_custom_call.1} parent=1 // pred_check_branch
      %169 = sbr.rel (0) target = $region65
    $region64: #{tpu_custom_call.1} parent=1 // pred_region
      %171 = vsyncadd [#allocation18], 0
      %s172 = sshll.u32 %s15, 4
      %s173 = int_to_ptr.hbm [resolvable:$true] %s172
      %s174 = sshll.u32 [#allocation19], 4
      %s175 = int_to_ptr.vmem [resolvable:$true] %s174
      %180 = dma.hbm_to_vmem [thread:$0]  %s173, 2048, %s175, [#allocation18], 128, 128, 8
    $region65: #{tpu_custom_call.1} parent=1 // pred_fallthru
      _
    // Predicated region
    $region66: #{tpu_custom_call.1} parent=1 // pred_check
      _
    $region67: #{tpu_custom_call.1} parent=1 // pred_check_branch
      %182 = sbr.rel (0) target = $region69
    $region68: #{tpu_custom_call.1} parent=1 // pred_region
      _
    $region69: #{tpu_custom_call.1} parent=1 // pred_fallthru
      _
    // Predicated region
    $region70: #{tpu_custom_call.1} parent=1 // pred_check
      _
    $region71: #{tpu_custom_call.1} parent=1 // pred_check_branch
      %184 = sbr.rel (0) target = $region73
    $region72: #{tpu_custom_call.1} parent=1 // pred_region
      _
    $region73: #{tpu_custom_call.1} parent=1 // pred_fallthru
      _
    // Predicated region
    $region74: #{tpu_custom_call.1} parent=1 // pred_check
      _
    $region75: #{tpu_custom_call.1} parent=1 // pred_check_branch
      %186 = sbr.rel (0) target = $region77
    $region76: #{tpu_custom_call.1} parent=1 // pred_region
      _
    $region77: #{tpu_custom_call.1} parent=1 // pred_fallthru
      _
    // Predicated region
    $region78: #{tpu_custom_call.1} parent=1 // pred_check
      _
    $region79: #{tpu_custom_call.1} parent=1 // pred_check_branch
      %188 = sbr.rel (0) target = $region81
    $region80: #{tpu_custom_call.1} parent=1 // pred_region
      %190 = vsyncadd [#allocation21], 0
      %s191 = sshll.u32 %s19, 4
      %s192 = int_to_ptr.hbm [resolvable:$true] %s191
      %s193 = sshll.u32 [#allocation20], 4
      %s194 = int_to_ptr.vmem [resolvable:$true] %s193
      %199 = dma.hbm_to_vmem [thread:$0]  %s192, 4096, %s194, [#allocation21], 256, 256, 16
    $region81: #{tpu_custom_call.1} parent=1 // pred_fallthru
      _
    // Predicated region
    $region82: #{tpu_custom_call.1} parent=1 // pred_check
      _
    $region83: #{tpu_custom_call.1} parent=1 // pred_check_branch
      %201 = sbr.rel (0) target = $region85
    $region84: #{tpu_custom_call.1} parent=1 // pred_region
      _
    $region85: #{tpu_custom_call.1} parent=1 // pred_fallthru
      _
    // Predicated region
    $region86: #{tpu_custom_call.1} parent=1 // pred_check
      _
    $region87: #{tpu_custom_call.1} parent=1 // pred_check_branch
      %203 = sbr.rel (0) target = $region89
    $region88: #{tpu_custom_call.1} parent=1 // pred_region
      %205 = vsyncadd [#allocation21], 0
      %s206 = sshll.u32 %s21, 4
      %s207 = int_to_ptr.hbm [resolvable:$true] %s206
      %s208 = sshll.u32 [#allocation22], 4
      %s209 = int_to_ptr.vmem [resolvable:$true] %s208
      %214 = dma.hbm_to_vmem [thread:$0]  %s207, 2048, %s209, [#allocation21], 128, 128, 8
    $region89: #{tpu_custom_call.1} parent=1 // pred_fallthru
      _
    // Predicated region
    $region90: #{tpu_custom_call.1} parent=1 // pred_check
      _
    $region91: #{tpu_custom_call.1} parent=1 // pred_check_branch
      %216 = sbr.rel (0) target = $region93
    $region92: #{tpu_custom_call.1} parent=1 // pred_region
      _
    $region93: #{tpu_custom_call.1} parent=1 // pred_fallthru
      _
    // Predicated region
    $region94: #{tpu_custom_call.1} parent=1 // pred_check
      _
    $region95: #{tpu_custom_call.1} parent=1 // pred_check_branch
      %218 = sbr.rel (0) target = $region97
    $region96: #{tpu_custom_call.1} parent=1 // pred_region
      _
    $region97: #{tpu_custom_call.1} parent=1 // pred_fallthru
      _
    // Predicated region
    $region98: #{tpu_custom_call.1} parent=1 // pred_check
      _
    $region99: #{tpu_custom_call.1} parent=1 // pred_check_branch
      %220 = sbr.rel (0) target = $region101
    $region100: #{tpu_custom_call.1} parent=1 // pred_region
      _
    $region101: #{tpu_custom_call.1} parent=1 // pred_fallthru
      _
    // Predicated region
    $region102: #{tpu_custom_call.1} parent=1 // pred_check
      _
    $region103: #{tpu_custom_call.1} parent=1 // pred_check_branch
      %222 = sbr.rel (0) target = $region105
    $region104: #{tpu_custom_call.1} parent=1 // pred_region
      %224 = dma.done [#allocation3], 128
    $region105: #{tpu_custom_call.1} parent=1 // pred_fallthru
      _
    // Predicated region
    $region106: #{tpu_custom_call.1} parent=1 // pred_check
      _
    $region107: #{tpu_custom_call.1} parent=1 // pred_check_branch
      %226 = sbr.rel (0) target = $region109
    $region108: #{tpu_custom_call.1} parent=1 // pred_region
      %228 = dma.done [#allocation6], 4096
    $region109: #{tpu_custom_call.1} parent=1 // pred_fallthru
      _
    // Predicated region
    $region110: #{tpu_custom_call.1} parent=1 // pred_check
      _
    $region111: #{tpu_custom_call.1} parent=1 // pred_check_branch
      %230 = sbr.rel (0) target = $region113
    $region112: #{tpu_custom_call.1} parent=1 // pred_region
      %232 = dma.done [#allocation6], 32
    $region113: #{tpu_custom_call.1} parent=1 // pred_fallthru
      _
    // Predicated region
    $region114: #{tpu_custom_call.1} parent=1 // pred_check
      _
    $region115: #{tpu_custom_call.1} parent=1 // pred_check_branch
      %234 = sbr.rel (0) target = $region117
    $region116: #{tpu_custom_call.1} parent=1 // pred_region
      %236 = dma.done [#allocation9], 2048
    $region117: #{tpu_custom_call.1} parent=1 // pred_fallthru
      _
    // Predicated region
    $region118: #{tpu_custom_call.1} parent=1 // pred_check
      _
    $region119: #{tpu_custom_call.1} parent=1 // pred_check_branch
      %238 = sbr.rel (0) target = $region121
    $region120: #{tpu_custom_call.1} parent=1 // pred_region
      %240 = dma.done [#allocation9], 16
    $region121: #{tpu_custom_call.1} parent=1 // pred_fallthru
      _
    // Predicated region
    $region122: #{tpu_custom_call.1} parent=1 // pred_check
      _
    $region123: #{tpu_custom_call.1} parent=1 // pred_check_branch
      %242 = sbr.rel (0) target = $region125
    $region124: #{tpu_custom_call.1} parent=1 // pred_region
      %244 = dma.done [#allocation12], 16
    $region125: #{tpu_custom_call.1} parent=1 // pred_fallthru
      _
    // Predicated region
    $region126: #{tpu_custom_call.1} parent=1 // pred_check
      _
    $region127: #{tpu_custom_call.1} parent=1 // pred_check_branch
      %246 = sbr.rel (0) target = $region129
    $region128: #{tpu_custom_call.1} parent=1 // pred_region
      %248 = dma.done [#allocation12], 16
    $region129: #{tpu_custom_call.1} parent=1 // pred_fallthru
      _
    // Predicated region
    $region130: #{tpu_custom_call.1} parent=1 // pred_check
      _
    $region131: #{tpu_custom_call.1} parent=1 // pred_check_branch
      %250 = sbr.rel (0) target = $region133
    $region132: #{tpu_custom_call.1} parent=1 // pred_region
      %252 = dma.done [#allocation15], 4096
    $region133: #{tpu_custom_call.1} parent=1 // pred_fallthru
      _
    // Predicated region
    $region134: #{tpu_custom_call.1} parent=1 // pred_check
      _
    $region135: #{tpu_custom_call.1} parent=1 // pred_check_branch
      %254 = sbr.rel (0) target = $region137
    $region136: #{tpu_custom_call.1} parent=1 // pred_region
      %256 = dma.done [#allocation15], 2048
    $region137: #{tpu_custom_call.1} parent=1 // pred_fallthru
      _
    // Predicated region
    $region138: #{tpu_custom_call.1} parent=1 // pred_check
      _
    $region139: #{tpu_custom_call.1} parent=1 // pred_check_branch
      %258 = sbr.rel (0) target = $region141
    $region140: #{tpu_custom_call.1} parent=1 // pred_region
      %260 = dma.done [#allocation18], 4096
    $region141: #{tpu_custom_call.1} parent=1 // pred_fallthru
      _
    // Predicated region
    $region142: #{tpu_custom_call.1} parent=1 // pred_check
      _
    $region143: #{tpu_custom_call.1} parent=1 // pred_check_branch
      %262 = sbr.rel (0) target = $region145
    $region144: #{tpu_custom_call.1} parent=1 // pred_region
      %264 = dma.done [#allocation18], 2048
    $region145: #{tpu_custom_call.1} parent=1 // pred_fallthru
      _
    // Predicated region
    $region146: #{tpu_custom_call.1} parent=1 // pred_check
      _
    $region147: #{tpu_custom_call.1} parent=1 // pred_check_branch
      %266 = sbr.rel (0) target = $region149
    $region148: #{tpu_custom_call.1} parent=1 // pred_region
      %268 = dma.done [#allocation21], 4096
    $region149: #{tpu_custom_call.1} parent=1 // pred_fallthru
      _
    // Predicated region
    $region150: #{tpu_custom_call.1} parent=1 // pred_check
      _
    $region151: #{tpu_custom_call.1} parent=1 // pred_check_branch
      %270 = sbr.rel (0) target = $region153
    $region152: #{tpu_custom_call.1} parent=1 // pred_region
      %272 = dma.done [#allocation21], 2048
    $region153: #{tpu_custom_call.1} parent=1 // pred_fallthru
      _
    %v273 = vld [vmem:[#allocation2] sm:$0xff]
    %v274 = vld [vmem:[#allocation5] sm:$0xff]
    %v275 = vld [vmem:[#allocation5 + $0x8] sm:$0xff]
    %v276 = vld [vmem:[#allocation5 + $0x10] sm:$0xff]
    %v277 = vld [vmem:[#allocation5 + $0x18] sm:$0xff]
    %v278 = vld [vmem:[#allocation5 + $0x20] sm:$0xff]
    %v279 = vld [vmem:[#allocation5 + $0x28] sm:$0xff]
    %v280 = vld [vmem:[#allocation5 + $0x30] sm:$0xff]
    %v281 = vld [vmem:[#allocation5 + $0x38] sm:$0xff]
    %v282 = vld [vmem:[#allocation5 + $0x40] sm:$0xff]
    %v283 = vld [vmem:[#allocation5 + $0x48] sm:$0xff]
    %v284 = vld [vmem:[#allocation5 + $0x50] sm:$0xff]
    %v285 = vld [vmem:[#allocation5 + $0x58] sm:$0xff]
    %v286 = vld [vmem:[#allocation5 + $0x60] sm:$0xff]
    %v287 = vld [vmem:[#allocation5 + $0x68] sm:$0xff]
    %v288 = vld [vmem:[#allocation5 + $0x70] sm:$0xff]
    %v289 = vld [vmem:[#allocation5 + $0x78] sm:$0xff]
    %v290 = vld [vmem:[#allocation5 + $0x80] sm:$0xff]
    %v291 = vld [vmem:[#allocation5 + $0x88] sm:$0xff]
    %v292 = vld [vmem:[#allocation5 + $0x90] sm:$0xff]
    %v293 = vld [vmem:[#allocation5 + $0x98] sm:$0xff]
    %v294 = vld [vmem:[#allocation5 + $0xa0] sm:$0xff]
    %v295 = vld [vmem:[#allocation5 + $0xa8] sm:$0xff]
    %v296 = vld [vmem:[#allocation5 + $0xb0] sm:$0xff]
    %v297 = vld [vmem:[#allocation5 + $0xb8] sm:$0xff]
    %v298 = vld [vmem:[#allocation5 + $0xc0] sm:$0xff]
    %v299 = vld [vmem:[#allocation5 + $0xc8] sm:$0xff]
    %v300 = vld [vmem:[#allocation5 + $0xd0] sm:$0xff]
    %v301 = vld [vmem:[#allocation5 + $0xd8] sm:$0xff]
    %v302 = vld [vmem:[#allocation5 + $0xe0] sm:$0xff]
    %v303 = vld [vmem:[#allocation5 + $0xe8] sm:$0xff]
    %v304 = vld [vmem:[#allocation5 + $0xf0] sm:$0xff]
    %v305 = vld [vmem:[#allocation5 + $0xf8] sm:$0xff]
    %v306 = vld [vmem:[#allocation7] sm:$0x3]
    %v308 = vperm.slane %v306, 0
    %v309 = vperm.slane %v306, 1
    %312 = vmatpush.msra.mxu0 %v304
    %313 = vmatpush.msra.mxu0 %v302
    %314 = vmatpush.msra.mxu0 %v300
    %315 = vmatpush.msra.mxu0 %v298
    %316 = vmatpush.msra.mxu0 %v296
    %317 = vmatpush.msra.mxu0 %v294
    %318 = vmatpush.msra.mxu0 %v292
    %319 = vmatpush.msra.mxu0 %v290
    %320 = vmatpush.msra.mxu0 %v288
    %321 = vmatpush.msra.mxu0 %v286
    %322 = vmatpush.msra.mxu0 %v284
    %323 = vmatpush.msra.mxu0 %v282
    %324 = vmatpush.msra.mxu0 %v280
    %325 = vmatpush.msra.mxu0 %v278
    %326 = vmatpush.msra.mxu0 %v276
    %327 = vmatpush.msra.mxu0 %v274
    %328 = vmatmul.f32.gmra.mxu0 %v273
    %v329 = vpop.f32.mrf.mxu0
    %v330 = vadd.f32 %v308, %v329
    %331 = vdwg.mxu0
    %332 = vmatpush.msra.mxu0 %v305
    %333 = vmatpush.msra.mxu0 %v303
    %334 = vmatpush.msra.mxu0 %v301
    %335 = vmatpush.msra.mxu0 %v299
    %336 = vmatpush.msra.mxu0 %v297
    %337 = vmatpush.msra.mxu0 %v295
    %338 = vmatpush.msra.mxu0 %v293
    %339 = vmatpush.msra.mxu0 %v291
    %340 = vmatpush.msra.mxu0 %v289
    %341 = vmatpush.msra.mxu0 %v287
    %342 = vmatpush.msra.mxu0 %v285
    %343 = vmatpush.msra.mxu0 %v283
    %344 = vmatpush.msra.mxu0 %v281
    %345 = vmatpush.msra.mxu0 %v279
    %346 = vmatpush.msra.mxu0 %v277
    %347 = vmatpush.msra.mxu0 %v275
    %348 = vmatmul.f32.gmra.mxu0 %v273
    %v349 = vpop.f32.mrf.mxu0
    %v350 = vadd.f32 %v309, %v349
    %351 = vdwg.mxu0
    %v352 = vmax.f32 %v330, 0.0
    %v353 = vld [vmem:[#allocation8] sm:$0xff]
    %v354 = vld [vmem:[#allocation8 + $0x8] sm:$0xff]
    %v355 = vld [vmem:[#allocation8 + $0x10] sm:$0xff]
    %v356 = vld [vmem:[#allocation8 + $0x18] sm:$0xff]
    %v357 = vld [vmem:[#allocation8 + $0x20] sm:$0xff]
    %v358 = vld [vmem:[#allocation8 + $0x28] sm:$0xff]
    %v359 = vld [vmem:[#allocation8 + $0x30] sm:$0xff]
    %v360 = vld [vmem:[#allocation8 + $0x38] sm:$0xff]
    %v361 = vld [vmem:[#allocation8 + $0x40] sm:$0xff]
    %v362 = vld [vmem:[#allocation8 + $0x48] sm:$0xff]
    %v363 = vld [vmem:[#allocation8 + $0x50] sm:$0xff]
    %v364 = vld [vmem:[#allocation8 + $0x58] sm:$0xff]
    %v365 = vld [vmem:[#allocation8 + $0x60] sm:$0xff]
    %v366 = vld [vmem:[#allocation8 + $0x68] sm:$0xff]
    %v367 = vld [vmem:[#allocation8 + $0x70] sm:$0xff]
    %v368 = vld [vmem:[#allocation8 + $0x78] sm:$0xff]
    %v369 = vld [vmem:[#allocation10] sm:$0x1]
    %v371 = vperm.slane %v369, 0
    %373 = vmatpush.msra.mxu0 %v368
    %374 = vmatpush.msra.mxu0 %v367
    %375 = vmatpush.msra.mxu0 %v366
    %376 = vmatpush.msra.mxu0 %v365
    %377 = vmatpush.msra.mxu0 %v364
    %378 = vmatpush.msra.mxu0 %v363
    %379 = vmatpush.msra.mxu0 %v362
    %380 = vmatpush.msra.mxu0 %v361
    %381 = vmatpush.msra.mxu0 %v360
    %382 = vmatpush.msra.mxu0 %v359
    %383 = vmatpush.msra.mxu0 %v358
    %384 = vmatpush.msra.mxu0 %v357
    %385 = vmatpush.msra.mxu0 %v356
    %386 = vmatpush.msra.mxu0 %v355
    %387 = vmatpush.msra.mxu0 %v354
    %388 = vmatpush.msra.mxu0 %v353
    %389 = vmatmul.f32.gmra.mxu0 %v352
    %v390 = vpop.f32.mrf.mxu0
    %v391 = vadd.f32 %v371, %v390
    %392 = vdwg.mxu0
    %v393 = vadd.f32 %v391, %v350
    %394 = vadd.xlane.f32.xlu0 %v393
    %v395 = vpop.xlane.xlu0 %394
    %v396 = vmul.f32 %v395, 0.05
    %v397 = vsub.f32 %v393, %v396
    %v398 = vmul.f32 %v397, %v397
    %399 = vadd.xlane.f32.xlu0 %v398
    %v400 = vpop.xlane.xlu0 %399
    %v401 = vmul.f32 %v396, %v396
    %v402 = vmul.f32 %v401, 108.0
    %v403 = vsub.f32 %v400, %v402
    %v404 = vmul.f32 %v403, 0.05
    %v405 = vmax.f32 %v404, 0.0
    %v406 = vadd.f32 %v405, 1e-05
    %v407 = vrsqrt.pop %v406
    %v408 = vmul.f32 %v407, %v406
    %v409 = vmul.f32 %v408, %v407
    %v410 = vmul.f32 0.5, %v409
    %v411 = vsub.f32 1.5, %v410
    %v412 = vmul.f32 %v407, %v411
    %vm413 = vweird.f32 %v406
    %vm414 = vweird.f32 %v407
    %vm415 = vmor %vm413, %vm414
    %v416 = vsel %vm415, %v407, %v412
    %v417 = vmul.f32 %v397, %v416
    %v418 = vld [vmem:[#allocation11] sm:$0x1]
    %v420 = vperm.slane %v418, 0
    %v422 = vmul.f32 %v417, %v420
    %v423 = vld [vmem:[#allocation13] sm:$0x1]
    %v425 = vperm.slane %v423, 0
    %v427 = vadd.f32 %v422, %v425
    %v428 = vld [vmem:[#allocation14] sm:$0xff]
    %v429 = vld [vmem:[#allocation14 + $0x8] sm:$0xff]
    %v430 = vld [vmem:[#allocation14 + $0x10] sm:$0xff]
    %v431 = vld [vmem:[#allocation14 + $0x18] sm:$0xff]
    %v432 = vld [vmem:[#allocation14 + $0x20] sm:$0xff]
    %v433 = vld [vmem:[#allocation14 + $0x28] sm:$0xff]
    %v434 = vld [vmem:[#allocation14 + $0x30] sm:$0xff]
    %v435 = vld [vmem:[#allocation14 + $0x38] sm:$0xff]
    %v436 = vld [vmem:[#allocation14 + $0x40] sm:$0xff]
    %v437 = vld [vmem:[#allocation14 + $0x48] sm:$0xff]
    %v438 = vld [vmem:[#allocation14 + $0x50] sm:$0xff]
    %v439 = vld [vmem:[#allocation14 + $0x58] sm:$0xff]
    %v440 = vld [vmem:[#allocation14 + $0x60] sm:$0xff]
    %v441 = vld [vmem:[#allocation14 + $0x68] sm:$0xff]
    %v442 = vld [vmem:[#allocation14 + $0x70] sm:$0xff]
    %v443 = vld [vmem:[#allocation14 + $0x78] sm:$0xff]
    %v444 = vld [vmem:[#allocation14 + $0x80] sm:$0xff]
    %v445 = vld [vmem:[#allocation14 + $0x88] sm:$0xff]
    %v446 = vld [vmem:[#allocation14 + $0x90] sm:$0xff]
    %v447 = vld [vmem:[#allocation14 + $0x98] sm:$0xff]
    %v448 = vld [vmem:[#allocation14 + $0xa0] sm:$0xff]
    %v449 = vld [vmem:[#allocation14 + $0xa8] sm:$0xff]
    %v450 = vld [vmem:[#allocation14 + $0xb0] sm:$0xff]
    %v451 = vld [vmem:[#allocation14 + $0xb8] sm:$0xff]
    %v452 = vld [vmem:[#allocation14 + $0xc0] sm:$0xff]
    %v453 = vld [vmem:[#allocation14 + $0xc8] sm:$0xff]
    %v454 = vld [vmem:[#allocation14 + $0xd0] sm:$0xff]
    %v455 = vld [vmem:[#allocation14 + $0xd8] sm:$0xff]
    %v456 = vld [vmem:[#allocation14 + $0xe0] sm:$0xff]
    %v457 = vld [vmem:[#allocation14 + $0xe8] sm:$0xff]
    %v458 = vld [vmem:[#allocation14 + $0xf0] sm:$0xff]
    %v459 = vld [vmem:[#allocation14 + $0xf8] sm:$0xff]
    %v460 = vld [vmem:[%s8] sm:$0x3]
    %v462 = vperm.slane %v460, 0
    %v463 = vperm.slane %v460, 1
    %466 = vmatpush.msra.mxu0 %v458
    %467 = vmatpush.msra.mxu0 %v456
    %468 = vmatpush.msra.mxu0 %v454
    %469 = vmatpush.msra.mxu0 %v452
    %470 = vmatpush.msra.mxu0 %v450
    %471 = vmatpush.msra.mxu0 %v448
    %472 = vmatpush.msra.mxu0 %v446
    %473 = vmatpush.msra.mxu0 %v444
    %474 = vmatpush.msra.mxu0 %v442
    %475 = vmatpush.msra.mxu0 %v440
    %476 = vmatpush.msra.mxu0 %v438
    %477 = vmatpush.msra.mxu0 %v436
    %478 = vmatpush.msra.mxu0 %v434
    %479 = vmatpush.msra.mxu0 %v432
    %480 = vmatpush.msra.mxu0 %v430
    %481 = vmatpush.msra.mxu0 %v428
    %482 = vmatmul.f32.gmra.mxu0 %v427
    %v483 = vpop.f32.mrf.mxu0
    %v484 = vadd.f32 %v462, %v483
    %485 = vdwg.mxu0
    %486 = vmatpush.msra.mxu0 %v459
    %487 = vmatpush.msra.mxu0 %v457
    %488 = vmatpush.msra.mxu0 %v455
    %489 = vmatpush.msra.mxu0 %v453
    %490 = vmatpush.msra.mxu0 %v451
    %491 = vmatpush.msra.mxu0 %v449
    %492 = vmatpush.msra.mxu0 %v447
    %493 = vmatpush.msra.mxu0 %v445
    %494 = vmatpush.msra.mxu0 %v443
    %495 = vmatpush.msra.mxu0 %v441
    %496 = vmatpush.msra.mxu0 %v439
    %497 = vmatpush.msra.mxu0 %v437
    %498 = vmatpush.msra.mxu0 %v435
    %499 = vmatpush.msra.mxu0 %v433
    %500 = vmatpush.msra.mxu0 %v431
    %501 = vmatpush.msra.mxu0 %v429
    %502 = vmatmul.f32.gmra.mxu0 %v427
    %v503 = vpop.f32.mrf.mxu0
    %v504 = vadd.f32 %v463, %v503
    %505 = vdwg.mxu0
    %v506 = vmax.f32 %v484, 0.0
    %v507 = vld [vmem:[#allocation16] sm:$0xff]
    %v508 = vld [vmem:[#allocation16 + $0x8] sm:$0xff]
    %v509 = vld [vmem:[#allocation16 + $0x10] sm:$0xff]
    %v510 = vld [vmem:[#allocation16 + $0x18] sm:$0xff]
    %v511 = vld [vmem:[#allocation16 + $0x20] sm:$0xff]
    %v512 = vld [vmem:[#allocation16 + $0x28] sm:$0xff]
    %v513 = vld [vmem:[#allocation16 + $0x30] sm:$0xff]
    %v514 = vld [vmem:[#allocation16 + $0x38] sm:$0xff]
    %v515 = vld [vmem:[#allocation16 + $0x40] sm:$0xff]
    %v516 = vld [vmem:[#allocation16 + $0x48] sm:$0xff]
    %v517 = vld [vmem:[#allocation16 + $0x50] sm:$0xff]
    %v518 = vld [vmem:[#allocation16 + $0x58] sm:$0xff]
    %v519 = vld [vmem:[#allocation16 + $0x60] sm:$0xff]
    %v520 = vld [vmem:[#allocation16 + $0x68] sm:$0xff]
    %v521 = vld [vmem:[#allocation16 + $0x70] sm:$0xff]
    %v522 = vld [vmem:[#allocation16 + $0x78] sm:$0xff]
    %v523 = vld [vmem:[%s10] sm:$0x1]
    %v525 = vperm.slane %v523, 0
    %527 = vmatpush.msra.mxu0 %v522
    %528 = vmatpush.msra.mxu0 %v521
    %529 = vmatpush.msra.mxu0 %v520
    %530 = vmatpush.msra.mxu0 %v519
    %531 = vmatpush.msra.mxu0 %v518
    %532 = vmatpush.msra.mxu0 %v517
    %533 = vmatpush.msra.mxu0 %v516
    %534 = vmatpush.msra.mxu0 %v515
    %535 = vmatpush.msra.mxu0 %v514
    %536 = vmatpush.msra.mxu0 %v513
    %537 = vmatpush.msra.mxu0 %v512
    %538 = vmatpush.msra.mxu0 %v511
    %539 = vmatpush.msra.mxu0 %v510
    %540 = vmatpush.msra.mxu0 %v509
    %541 = vmatpush.msra.mxu0 %v508
    %542 = vmatpush.msra.mxu0 %v507
    %543 = vmatmul.f32.gmra.mxu0 %v506
    %v544 = vpop.f32.mrf.mxu0
    %v545 = vadd.f32 %v525, %v544
    %546 = vdwg.mxu0
    %v547 = vadd.f32 %v545, %v504
    %548 = vadd.xlane.f32.xlu0 %v547
    %v549 = vpop.xlane.xlu0 %548
    %v550 = vmul.f32 %v549, 0.0625
    %v551 = vsub.f32 %v547, %v550
    %v552 = vmul.f32 %v551, %v551
    %553 = vadd.xlane.f32.xlu0 %v552
    %v554 = vpop.xlane.xlu0 %553
    %v555 = vmul.f32 %v550, %v550
    %v556 = vmul.f32 %v555, 112.0
    %v557 = vsub.f32 %v554, %v556
    %v558 = vmul.f32 %v557, 0.0625
    %v559 = vmax.f32 %v558, 0.0
    %v560 = vadd.f32 %v559, 1e-05
    %v561 = vrsqrt.pop %v560
    %v562 = vmul.f32 %v561, %v560
    %v563 = vmul.f32 %v562, %v561
    %v564 = vmul.f32 0.5, %v563
    %v565 = vsub.f32 1.5, %v564
    %v566 = vmul.f32 %v561, %v565
    %vm567 = vweird.f32 %v560
    %vm568 = vweird.f32 %v561
    %vm569 = vmor %vm567, %vm568
    %v570 = vsel %vm569, %v561, %v566
    %v571 = vmul.f32 %v551, %v570
    %v572 = vld [vmem:[%s11] sm:$0x1]
    %v574 = vperm.slane %v572, 0
    %v576 = vmul.f32 %v571, %v574
    %v577 = vld [vmem:[%s12] sm:$0x1]
    %v579 = vperm.slane %v577, 0
    %v581 = vadd.f32 %v576, %v579
    %v582 = vld [vmem:[#allocation17] sm:$0xff]
    %v583 = vld [vmem:[#allocation17 + $0x8] sm:$0xff]
    %v584 = vld [vmem:[#allocation17 + $0x10] sm:$0xff]
    %v585 = vld [vmem:[#allocation17 + $0x18] sm:$0xff]
    %v586 = vld [vmem:[#allocation17 + $0x20] sm:$0xff]
    %v587 = vld [vmem:[#allocation17 + $0x28] sm:$0xff]
    %v588 = vld [vmem:[#allocation17 + $0x30] sm:$0xff]
    %v589 = vld [vmem:[#allocation17 + $0x38] sm:$0xff]
    %v590 = vld [vmem:[#allocation17 + $0x40] sm:$0xff]
    %v591 = vld [vmem:[#allocation17 + $0x48] sm:$0xff]
    %v592 = vld [vmem:[#allocation17 + $0x50] sm:$0xff]
    %v593 = vld [vmem:[#allocation17 + $0x58] sm:$0xff]
    %v594 = vld [vmem:[#allocation17 + $0x60] sm:$0xff]
    %v595 = vld [vmem:[#allocation17 + $0x68] sm:$0xff]
    %v596 = vld [vmem:[#allocation17 + $0x70] sm:$0xff]
    %v597 = vld [vmem:[#allocation17 + $0x78] sm:$0xff]
    %v598 = vld [vmem:[#allocation17 + $0x80] sm:$0xff]
    %v599 = vld [vmem:[#allocation17 + $0x88] sm:$0xff]
    %v600 = vld [vmem:[#allocation17 + $0x90] sm:$0xff]
    %v601 = vld [vmem:[#allocation17 + $0x98] sm:$0xff]
    %v602 = vld [vmem:[#allocation17 + $0xa0] sm:$0xff]
    %v603 = vld [vmem:[#allocation17 + $0xa8] sm:$0xff]
    %v604 = vld [vmem:[#allocation17 + $0xb0] sm:$0xff]
    %v605 = vld [vmem:[#allocation17 + $0xb8] sm:$0xff]
    %v606 = vld [vmem:[#allocation17 + $0xc0] sm:$0xff]
    %v607 = vld [vmem:[#allocation17 + $0xc8] sm:$0xff]
    %v608 = vld [vmem:[#allocation17 + $0xd0] sm:$0xff]
    %v609 = vld [vmem:[#allocation17 + $0xd8] sm:$0xff]
    %v610 = vld [vmem:[#allocation17 + $0xe0] sm:$0xff]
    %v611 = vld [vmem:[#allocation17 + $0xe8] sm:$0xff]
    %v612 = vld [vmem:[#allocation17 + $0xf0] sm:$0xff]
    %v613 = vld [vmem:[#allocation17 + $0xf8] sm:$0xff]
    %v614 = vld [vmem:[%s14] sm:$0x3]
    %v616 = vperm.slane %v614, 0
    %v617 = vperm.slane %v614, 1
    %620 = vmatpush.msra.mxu0 %v612
    %621 = vmatpush.msra.mxu0 %v610
    %622 = vmatpush.msra.mxu0 %v608
    %623 = vmatpush.msra.mxu0 %v606
    %624 = vmatpush.msra.mxu0 %v604
    %625 = vmatpush.msra.mxu0 %v602
    %626 = vmatpush.msra.mxu0 %v600
    %627 = vmatpush.msra.mxu0 %v598
    %628 = vmatpush.msra.mxu0 %v596
    %629 = vmatpush.msra.mxu0 %v594
    %630 = vmatpush.msra.mxu0 %v592
    %631 = vmatpush.msra.mxu0 %v590
    %632 = vmatpush.msra.mxu0 %v588
    %633 = vmatpush.msra.mxu0 %v586
    %634 = vmatpush.msra.mxu0 %v584
    %635 = vmatpush.msra.mxu0 %v582
    %636 = vmatmul.f32.gmra.mxu0 %v581
    %v637 = vpop.f32.mrf.mxu0
    %v638 = vadd.f32 %v616, %v637
    %639 = vdwg.mxu0
    %640 = vmatpush.msra.mxu0 %v613
    %641 = vmatpush.msra.mxu0 %v611
    %642 = vmatpush.msra.mxu0 %v609
    %643 = vmatpush.msra.mxu0 %v607
    %644 = vmatpush.msra.mxu0 %v605
    %645 = vmatpush.msra.mxu0 %v603
    %646 = vmatpush.msra.mxu0 %v601
    %647 = vmatpush.msra.mxu0 %v599
    %648 = vmatpush.msra.mxu0 %v597
    %649 = vmatpush.msra.mxu0 %v595
    %650 = vmatpush.msra.mxu0 %v593
    %651 = vmatpush.msra.mxu0 %v591
    %652 = vmatpush.msra.mxu0 %v589
    %653 = vmatpush.msra.mxu0 %v587
    %654 = vmatpush.msra.mxu0 %v585
    %655 = vmatpush.msra.mxu0 %v583
    %656 = vmatmul.f32.gmra.mxu0 %v581
    %v657 = vpop.f32.mrf.mxu0
    %v658 = vadd.f32 %v617, %v657
    %659 = vdwg.mxu0
    %v660 = vmax.f32 %v638, 0.0
    %v661 = vld [vmem:[#allocation19] sm:$0xff]
    %v662 = vld [vmem:[#allocation19 + $0x8] sm:$0xff]
    %v663 = vld [vmem:[#allocation19 + $0x10] sm:$0xff]
    %v664 = vld [vmem:[#allocation19 + $0x18] sm:$0xff]
    %v665 = vld [vmem:[#allocation19 + $0x20] sm:$0xff]
    %v666 = vld [vmem:[#allocation19 + $0x28] sm:$0xff]
    %v667 = vld [vmem:[#allocation19 + $0x30] sm:$0xff]
    %v668 = vld [vmem:[#allocation19 + $0x38] sm:$0xff]
    %v669 = vld [vmem:[#allocation19 + $0x40] sm:$0xff]
    %v670 = vld [vmem:[#allocation19 + $0x48] sm:$0xff]
    %v671 = vld [vmem:[#allocation19 + $0x50] sm:$0xff]
    %v672 = vld [vmem:[#allocation19 + $0x58] sm:$0xff]
    %v673 = vld [vmem:[#allocation19 + $0x60] sm:$0xff]
    %v674 = vld [vmem:[#allocation19 + $0x68] sm:$0xff]
    %v675 = vld [vmem:[#allocation19 + $0x70] sm:$0xff]
    %v676 = vld [vmem:[#allocation19 + $0x78] sm:$0xff]
    %v677 = vld [vmem:[%s16] sm:$0x1]
    %v679 = vperm.slane %v677, 0
    %681 = vmatpush.msra.mxu0 %v676
    %682 = vmatpush.msra.mxu0 %v675
    %683 = vmatpush.msra.mxu0 %v674
    %684 = vmatpush.msra.mxu0 %v673
    %685 = vmatpush.msra.mxu0 %v672
    %686 = vmatpush.msra.mxu0 %v671
    %687 = vmatpush.msra.mxu0 %v670
    %688 = vmatpush.msra.mxu0 %v669
    %689 = vmatpush.msra.mxu0 %v668
    %690 = vmatpush.msra.mxu0 %v667
    %691 = vmatpush.msra.mxu0 %v666
    %692 = vmatpush.msra.mxu0 %v665
    %693 = vmatpush.msra.mxu0 %v664
    %694 = vmatpush.msra.mxu0 %v663
    %695 = vmatpush.msra.mxu0 %v662
    %696 = vmatpush.msra.mxu0 %v661
    %697 = vmatmul.f32.gmra.mxu0 %v660
    %v698 = vpop.f32.mrf.mxu0
    %v699 = vadd.f32 %v679, %v698
    %700 = vdwg.mxu0
    %v701 = vadd.f32 %v699, %v658
    %702 = vadd.xlane.f32.xlu0 %v701
    %v703 = vpop.xlane.xlu0 %702
    %v704 = vmul.f32 %v703, 0.05
    %v705 = vsub.f32 %v701, %v704
    %v706 = vmul.f32 %v705, %v705
    %707 = vadd.xlane.f32.xlu0 %v706
    %v708 = vpop.xlane.xlu0 %707
    %v709 = vmul.f32 %v704, %v704
    %v710 = vmul.f32 %v709, 108.0
    %v711 = vsub.f32 %v708, %v710
    %v712 = vmul.f32 %v711, 0.05
    %v713 = vmax.f32 %v712, 0.0
    %v714 = vadd.f32 %v713, 1e-05
    %v715 = vrsqrt.pop %v714
    %v716 = vmul.f32 %v715, %v714
    %v717 = vmul.f32 %v716, %v715
    %v718 = vmul.f32 0.5, %v717
    %v719 = vsub.f32 1.5, %v718
    %v720 = vmul.f32 %v715, %v719
    %vm721 = vweird.f32 %v714
    %vm722 = vweird.f32 %v715
    %vm723 = vmor %vm721, %vm722
    %v724 = vsel %vm723, %v715, %v720
    %v725 = vmul.f32 %v705, %v724
    %v726 = vld [vmem:[%s17] sm:$0x1]
    %v728 = vperm.slane %v726, 0
    %v730 = vmul.f32 %v725, %v728
    %v731 = vld [vmem:[%s18] sm:$0x1]
    %v733 = vperm.slane %v731, 0
    %v735 = vadd.f32 %v730, %v733
    %v736 = vld [vmem:[#allocation20] sm:$0xff]
    %v737 = vld [vmem:[#allocation20 + $0x8] sm:$0xff]
    %v738 = vld [vmem:[#allocation20 + $0x10] sm:$0xff]
    %v739 = vld [vmem:[#allocation20 + $0x18] sm:$0xff]
    %v740 = vld [vmem:[#allocation20 + $0x20] sm:$0xff]
    %v741 = vld [vmem:[#allocation20 + $0x28] sm:$0xff]
    %v742 = vld [vmem:[#allocation20 + $0x30] sm:$0xff]
    %v743 = vld [vmem:[#allocation20 + $0x38] sm:$0xff]
    %v744 = vld [vmem:[#allocation20 + $0x40] sm:$0xff]
    %v745 = vld [vmem:[#allocation20 + $0x48] sm:$0xff]
    %v746 = vld [vmem:[#allocation20 + $0x50] sm:$0xff]
    %v747 = vld [vmem:[#allocation20 + $0x58] sm:$0xff]
    %v748 = vld [vmem:[#allocation20 + $0x60] sm:$0xff]
    %v749 = vld [vmem:[#allocation20 + $0x68] sm:$0xff]
    %v750 = vld [vmem:[#allocation20 + $0x70] sm:$0xff]
    %v751 = vld [vmem:[#allocation20 + $0x78] sm:$0xff]
    %v752 = vld [vmem:[#allocation20 + $0x80] sm:$0xff]
    %v753 = vld [vmem:[#allocation20 + $0x88] sm:$0xff]
    %v754 = vld [vmem:[#allocation20 + $0x90] sm:$0xff]
    %v755 = vld [vmem:[#allocation20 + $0x98] sm:$0xff]
    %v756 = vld [vmem:[#allocation20 + $0xa0] sm:$0xff]
    %v757 = vld [vmem:[#allocation20 + $0xa8] sm:$0xff]
    %v758 = vld [vmem:[#allocation20 + $0xb0] sm:$0xff]
    %v759 = vld [vmem:[#allocation20 + $0xb8] sm:$0xff]
    %v760 = vld [vmem:[#allocation20 + $0xc0] sm:$0xff]
    %v761 = vld [vmem:[#allocation20 + $0xc8] sm:$0xff]
    %v762 = vld [vmem:[#allocation20 + $0xd0] sm:$0xff]
    %v763 = vld [vmem:[#allocation20 + $0xd8] sm:$0xff]
    %v764 = vld [vmem:[#allocation20 + $0xe0] sm:$0xff]
    %v765 = vld [vmem:[#allocation20 + $0xe8] sm:$0xff]
    %v766 = vld [vmem:[#allocation20 + $0xf0] sm:$0xff]
    %v767 = vld [vmem:[#allocation20 + $0xf8] sm:$0xff]
    %v768 = vld [vmem:[%s20] sm:$0x3]
    %v770 = vperm.slane %v768, 0
    %v771 = vperm.slane %v768, 1
    %774 = vmatpush.msra.mxu0 %v766
    %775 = vmatpush.msra.mxu0 %v764
    %776 = vmatpush.msra.mxu0 %v762
    %777 = vmatpush.msra.mxu0 %v760
    %778 = vmatpush.msra.mxu0 %v758
    %779 = vmatpush.msra.mxu0 %v756
    %780 = vmatpush.msra.mxu0 %v754
    %781 = vmatpush.msra.mxu0 %v752
    %782 = vmatpush.msra.mxu0 %v750
    %783 = vmatpush.msra.mxu0 %v748
    %784 = vmatpush.msra.mxu0 %v746
    %785 = vmatpush.msra.mxu0 %v744
    %786 = vmatpush.msra.mxu0 %v742
    %787 = vmatpush.msra.mxu0 %v740
    %788 = vmatpush.msra.mxu0 %v738
    %789 = vmatpush.msra.mxu0 %v736
    %790 = vmatmul.f32.gmra.mxu0 %v735
    %v791 = vpop.f32.mrf.mxu0
    %v792 = vadd.f32 %v770, %v791
    %793 = vdwg.mxu0
    %794 = vmatpush.msra.mxu0 %v767
    %795 = vmatpush.msra.mxu0 %v765
    %796 = vmatpush.msra.mxu0 %v763
    %797 = vmatpush.msra.mxu0 %v761
    %798 = vmatpush.msra.mxu0 %v759
    %799 = vmatpush.msra.mxu0 %v757
    %800 = vmatpush.msra.mxu0 %v755
    %801 = vmatpush.msra.mxu0 %v753
    %802 = vmatpush.msra.mxu0 %v751
    %803 = vmatpush.msra.mxu0 %v749
    %804 = vmatpush.msra.mxu0 %v747
    %805 = vmatpush.msra.mxu0 %v745
    %806 = vmatpush.msra.mxu0 %v743
    %807 = vmatpush.msra.mxu0 %v741
    %808 = vmatpush.msra.mxu0 %v739
    %809 = vmatpush.msra.mxu0 %v737
    %810 = vmatmul.f32.gmra.mxu0 %v735
    %v811 = vpop.f32.mrf.mxu0
    %v812 = vadd.f32 %v771, %v811
    %813 = vdwg.mxu0
    %v814 = vmax.f32 %v792, 0.0
    %v815 = vld [vmem:[#allocation22] sm:$0xff]
    %v816 = vld [vmem:[#allocation22 + $0x8] sm:$0xff]
    %v817 = vld [vmem:[#allocation22 + $0x10] sm:$0xff]
    %v818 = vld [vmem:[#allocation22 + $0x18] sm:$0xff]
    %v819 = vld [vmem:[#allocation22 + $0x20] sm:$0xff]
    %v820 = vld [vmem:[#allocation22 + $0x28] sm:$0xff]
    %v821 = vld [vmem:[#allocation22 + $0x30] sm:$0xff]
    %v822 = vld [vmem:[#allocation22 + $0x38] sm:$0xff]
    %v823 = vld [vmem:[#allocation22 + $0x40] sm:$0xff]
    %v824 = vld [vmem:[#allocation22 + $0x48] sm:$0xff]
    %v825 = vld [vmem:[#allocation22 + $0x50] sm:$0xff]
    %v826 = vld [vmem:[#allocation22 + $0x58] sm:$0xff]
    %v827 = vld [vmem:[#allocation22 + $0x60] sm:$0xff]
    %v828 = vld [vmem:[#allocation22 + $0x68] sm:$0xff]
    %v829 = vld [vmem:[#allocation22 + $0x70] sm:$0xff]
    %v830 = vld [vmem:[#allocation22 + $0x78] sm:$0xff]
    %v831 = vld [vmem:[%s22] sm:$0x1]
    %v833 = vperm.slane %v831, 0
    %835 = vmatpush.msra.mxu0 %v830
    %836 = vmatpush.msra.mxu0 %v829
    %837 = vmatpush.msra.mxu0 %v828
    %838 = vmatpush.msra.mxu0 %v827
    %839 = vmatpush.msra.mxu0 %v826
    %840 = vmatpush.msra.mxu0 %v825
    %841 = vmatpush.msra.mxu0 %v824
    %842 = vmatpush.msra.mxu0 %v823
    %843 = vmatpush.msra.mxu0 %v822
    %844 = vmatpush.msra.mxu0 %v821
    %845 = vmatpush.msra.mxu0 %v820
    %846 = vmatpush.msra.mxu0 %v819
    %847 = vmatpush.msra.mxu0 %v818
    %848 = vmatpush.msra.mxu0 %v817
    %849 = vmatpush.msra.mxu0 %v816
    %850 = vmatpush.msra.mxu0 %v815
    %851 = vmatmul.f32.gmra.mxu0 %v814
    %v852 = vpop.f32.mrf.mxu0
    %v853 = vadd.f32 %v833, %v852
    %854 = vdwg.mxu0
    %v855 = vadd.f32 %v853, %v812
    %856 = vadd.xlane.f32.xlu0 %v855
    %v857 = vpop.xlane.xlu0 %856
    %v858 = vmul.f32 %v857, 0.03125
    %v859 = vsub.f32 %v855, %v858
    %v860 = vmul.f32 %v859, %v859
    %861 = vadd.xlane.f32.xlu0 %v860
    %v862 = vpop.xlane.xlu0 %861
    %v863 = vmul.f32 %v858, %v858
    %v864 = vmul.f32 %v863, 96.0
    %v865 = vsub.f32 %v862, %v864
    %v866 = vmul.f32 %v865, 0.03125
    %v867 = vmax.f32 %v866, 0.0
    %v868 = vadd.f32 %v867, 1e-05
    %v869 = vrsqrt.pop %v868
    %v870 = vmul.f32 %v869, %v868
    %v871 = vmul.f32 %v870, %v869
    %v872 = vmul.f32 0.5, %v871
    %v873 = vsub.f32 1.5, %v872
    %v874 = vmul.f32 %v869, %v873
    %vm875 = vweird.f32 %v868
    %vm876 = vweird.f32 %v869
    %vm877 = vmor %vm875, %vm876
    %v878 = vsel %vm877, %v869, %v874
    %v879 = vmul.f32 %v859, %v878
    %v880 = vld [vmem:[%s23] sm:$0x1]
    %v882 = vperm.slane %v880, 0
    %v884 = vmul.f32 %v879, %v882
    %v885 = vld [vmem:[%s24] sm:$0x1]
    %v887 = vperm.slane %v885, 0
    %v889 = vadd.f32 %v884, %v887
    %890 = vst [vmem:[#allocation23] sm:$0xff] %v889
    // Predicated region
    $region154: #{tpu_custom_call.1} parent=1 // pred_check
      _
    $region155: #{tpu_custom_call.1} parent=1 // pred_check_branch
      %892 = sbr.rel (0) target = $region157
    $region156: #{tpu_custom_call.1} parent=1 // pred_region
      %894 = vsyncadd [#allocation4], 0
      %s896 = sshll.u32 [#allocation23], 4
      %s897 = int_to_ptr.vmem [resolvable:$true] %s896
      %s898 = sshll.u32 %s25, 4
      %s899 = int_to_ptr.hbm [resolvable:$true] %s898
      %901 = dma.vmem_to_hbm [thread:$0]  %s897, 128, %s899, [#allocation4]
    $region157: #{tpu_custom_call.1} parent=1 // pred_fallthru
      _
    // Predicated region
    $region158: #{tpu_custom_call.1} parent=1 // pred_check
      _
    $region159: #{tpu_custom_call.1} parent=1 // pred_check_branch
      %903 = sbr.rel (0) target = $region161
    $region160: #{tpu_custom_call.1} parent=1 // pred_region
      %905 = dma.done [#allocation4], 128
    $region161: #{tpu_custom_call.1} parent=1 // pred_fallthru
      _
    %906 = vsyncpa [#allocation3], 1
    %907 = vsyncpa [#allocation6], 1
    %908 = vsyncpa [#allocation9], 1
    %909 = vsyncpa [#allocation12], 1
    %910 = vsyncpa [#allocation15], 1
    %911 = vsyncpa [#allocation18], 1
    %912 = vsyncpa [#allocation21], 1
    %913 = vsyncpa [#allocation4], 1

</llo_original>
